<compile_context>
chip_gen: v7x
topology: tpu7x:2x2x1
jax: 0.10.0
libtpu: 0.0.40
codegen_flags: <defaults>
</compile_context>

<pallas_src>
import jax
import jax.numpy as jnp
from jax import lax
from jax.experimental import pallas as pl
from jax.experimental.pallas import tpu as pltpu

EPS = 1e-5
NEG_SLOPE = 0.01      # nn.LeakyReLU default negative_slope
LANES = 128


# ---------------------------------------------------------------------------
# Generation-aware VMEM budget
# ---------------------------------------------------------------------------
def _vmem_limit_bytes():
    cap = None
    try:
        info = pltpu.get_tpu_info()
        cap = int(getattr(info, "vmem_capacity_bytes"))
    except Exception:
        cap = None
    if not cap or cap <= 0:
        cap = 64 * 1024 * 1024  # conservative fallback (v7x physical per-TC VMEM)
    # leave headroom for compiler-internal scratch; clamp to sane range
    return max(32 * 1024 * 1024, min((cap * 3) // 4, 112 * 1024 * 1024))


def _round_up(n, m):
    return (n + m - 1) // m * m


def _pick_row_tile(h, w, cin, coutp, vmem_budget):
    """Largest divisor TH of H with TH*W <= ~2048 rows and a rough VMEM fit."""
    best = 1
    for th in range(1, h + 1):
        if h % th:
            continue
        rows = th * w
        if rows > 2048:
            break
        est = (rows * 9 * cin * 2        # bf16 im2col (VMEM/vreg temporaries)
               + rows * coutp * 4        # f32 matmul result
               + 2 * rows * coutp * 2)   # double-buffered bf16 output block
        if est <= vmem_budget // 4:
            best = th
    # NOTE: prime H degrades to TH=1 (perf cliff, still correct).
    return best


# ---------------------------------------------------------------------------
# Pass 1: (optional fused BN+LeakyReLU on the input) -> conv-as-one-matmul
#         (K = 9*Cin packed into the contraction dim) + per-tile BN statistics
# ---------------------------------------------------------------------------
def _make_conv_stats_kernel(th, h, w, apply_preact):
    def body(x_ref, w_ref, scale_ref, shift_ref, y_ref, stats_ref):
        # x_ref:     (1, H, W, Cin)       bf16  (whole image; resident across row tiles)
        # w_ref:     (9*Cin, Coutp)       bf16  (taps packed into K)
        # scale_ref: (1, Cin) f32, shift_ref: (1, Cin) f32   [only when apply_preact]
        # y_ref:     (1, TH, W, Coutp)    bf16  pre-BN conv output tile
        # stats_ref: (1, 1, 2, Coutp)     f32   per-tile [sum, sum_of_squares]
        cin = x_ref.shape[3]
        coutp = y_ref.shape[3]
        t = pl.program_id(1)
        row0 = pl.multiple_of(t * th, th)

        def load_rows(start, size):
            v = x_ref[0, pl.ds(start, size), :, :]
            if apply_preact:
                sc = scale_ref[...].reshape(1, 1, cin)
                sh = shift_ref[...].reshape(1, 1, cin)
                vf = v.astype(jnp.float32) * sc + sh
                vf = jnp.where(vf >= 0, vf, NEG_SLOPE * vf)
                v = vf.astype(jnp.bfloat16)
            return v                                              # bf16

        mid = load_rows(row0, th)                                 # (TH, W, Cin)
        top = load_rows(jnp.maximum(row0 - 1, 0), 1)              # (1,  W, Cin)
        top = top * (row0 > 0).astype(jnp.bfloat16)               # zero halo at image top
        bot = load_rows(jnp.minimum(row0 + th, h - 1), 1)         # (1,  W, Cin)
        bot = bot * (row0 + th < h).astype(jnp.bfloat16)          # zero halo at image bottom

        xt = jnp.concatenate([top, mid, bot], axis=0)             # (TH+2, W, Cin)
        zc = jnp.zeros((th + 2, 1, cin), jnp.bfloat16)
        xp = jnp.concatenate([zc, xt, zc], axis=1)                # (TH+2, W+2, Cin)

        # In-VMEM im2col: pack the 9 taps into the contraction dim -> one MXU matmul.
        cols = []
        for ky in range(3):
            for kx in range(3):
                cols.append(xp[ky:ky + th, kx:kx + w, :].reshape(th * w, cin))
        lhs = jnp.concatenate(cols, axis=1)                       # (TH*W, 9*Cin) bf16

        acc = jnp.dot(lhs, w_ref[...],
                      preferred_element_type=jnp.float32)         # (TH*W, Coutp) f32

        s1 = jnp.sum(acc, axis=0, keepdims=True)                  # (1, Coutp)
        s2 = jnp.sum(acc * acc, axis=0, keepdims=True)            # (1, Coutp)
        stats_ref[...] = jnp.concatenate([s1, s2], axis=0).reshape(1, 1, 2, coutp)
        y_ref[...] = acc.reshape(1, th, w, coutp).astype(y_ref.dtype)

    if apply_preact:
        return body

    def body_noact(x_ref, w_ref, y_ref, stats_ref):
        return body(x_ref, w_ref, None, None, y_ref, stats_ref)
    return body_noact


# ---------------------------------------------------------------------------
# Pass 2 (final stage only): fused BatchNorm affine (single FMA) + LeakyReLU
# ---------------------------------------------------------------------------
def bn_lrelu_kernel(y_ref, scale_ref, shift_ref, o_ref):
    t = y_ref[...].astype(jnp.float32) * scale_ref[...] + shift_ref[...]
    o_ref[...] = jnp.where(t >= 0, t, NEG_SLOPE * t).astype(o_ref.dtype)


# ---------------------------------------------------------------------------
# Wrappers
# ---------------------------------------------------------------------------
def _conv_pass(x_img, weight_oihw, gamma, beta, preact=None):
    """One conv stage: [optional fused BN+LReLU of x] -> Conv3x3(pad=1, no bias).
    x_img: (N,H,W,Cx) with Cx >= weight's Cin (extra channels are zero).
    Returns (y_bf16 (N,H,W,Coutp) pre-BN conv output, scale (Coutp,), shift (Coutp,))
    where scale/shift fold this stage's train-mode BatchNorm."""
    vmem_limit = _vmem_limit_bytes()
    n, h, w, cx = x_img.shape
    cout, cin_w = weight_oihw.shape[0], weight_oihw.shape[1]
    coutp = _round_up(max(cout, LANES), LANES)        # lane-dense output channels

    # Pack weight: (Cout,Cin,3,3) -> (3,3,Cx,Coutp) -> (9*Cx, Coutp), bf16.
    wk = jnp.transpose(weight_oihw, (2, 3, 1, 0))
    wk = jnp.pad(wk, ((0, 0), (0, 0), (0, cx - cin_w), (0, coutp - cout)))
    wk = wk.reshape(9 * cx, coutp).astype(jnp.bfloat16)

    x_bf = x_img.astype(jnp.bfloat16)

    th = _pick_row_tile(h, w, cx, coutp, vmem_limit)
    n_tiles = h // th
    kernel = _make_conv_stats_kernel(th, h, w, apply_preact=preact is not None)

    in_specs = [
        pl.BlockSpec((1, h, w, cx), lambda b, t: (b, 0, 0, 0)),
        pl.BlockSpec((9 * cx, coutp), lambda b, t: (0, 0)),
    ]
    args = [x_bf, wk]
    if preact is not None:
        pre_scale, pre_shift = preact
        in_specs += [pl.BlockSpec((1, cx), lambda b, t: (0, 0)),
                     pl.BlockSpec((1, cx), lambda b, t: (0, 0))]
        args += [pre_scale.reshape(1, cx).astype(jnp.float32),
                 pre_shift.reshape(1, cx).astype(jnp.float32)]

    y, stats = pl.pallas_call(
        kernel,
        out_shape=(
            jax.ShapeDtypeStruct((n, h, w, coutp), jnp.bfloat16),
            jax.ShapeDtypeStruct((n, n_tiles, 2, coutp), jnp.float32),
        ),
        grid=(n, n_tiles),
        in_specs=in_specs,
        out_specs=(
            pl.BlockSpec((1, th, w, coutp), lambda b, t: (b, t, 0, 0)),
            pl.BlockSpec((1, 1, 2, coutp), lambda b, t: (b, t, 0, 0)),
        ),
        compiler_params=pltpu.CompilerParams(
            dimension_semantics=("parallel", "parallel"),
            vmem_limit_bytes=vmem_limit),
    )(*args)

    # Fold this stage's BatchNorm (batch statistics) into one scale/shift FMA.
    m_total = n * h * w
    tot = jnp.sum(stats, axis=(0, 1))                 # (2, Coutp) f32
    mean = tot[0] / m_total
    var = jnp.maximum(tot[1] / m_total - mean * mean, 0.0)
    gamma_p = jnp.pad(gamma.astype(jnp.float32), (0, coutp - cout))
    beta_p = jnp.pad(beta.astype(jnp.float32), (0, coutp - cout))
    scale = gamma_p * lax.rsqrt(var + EPS)
    shift = beta_p - mean * scale
    # NOTE: the conv bias is dropped on purpose -- mean subtraction cancels it exactly.
    return y, scale, shift


def _bn_lrelu(y, scale, shift, out_dtype):
    """Final BN affine + LeakyReLU over the bf16 pre-BN activation."""
    vmem_limit = _vmem_limit_bytes()
    n, h, w, coutp = y.shape
    m_total = n * h * w
    y2 = y.reshape(m_total, coutp)
    mt = min(_round_up(m_total, 8), 2048)             # large lane-dense row tiles
    out = pl.pallas_call(
        bn_lrelu_kernel,
        out_shape=jax.ShapeDtypeStruct((m_total, coutp), out_dtype),
        grid=(pl.cdiv(m_total, mt),),
        in_specs=[
            pl.BlockSpec((mt, coutp), lambda i: (i, 0)),
            pl.BlockSpec((1, coutp), lambda i: (0, 0)),
            pl.BlockSpec((1, coutp), lambda i: (0, 0)),
        ],
        out_specs=pl.BlockSpec((mt, coutp), lambda i: (i, 0)),
        compiler_params=pltpu.CompilerParams(
            dimension_semantics=("parallel",),
            vmem_limit_bytes=vmem_limit),
    )(y2, scale.reshape(1, coutp), shift.reshape(1, coutp))
    return out.reshape(n, h, w, coutp)


def conv_block_forward(x_nchw, w1, b1, g1, be1, w2, b2, g2, be2):
    """Matches PyTorch conv_block.forward (training-mode BatchNorm)."""
    del b1, b2  # conv biases are mathematically cancelled by the following BatchNorms
    x = jnp.transpose(x_nchw, (0, 2, 3, 1))           # NCHW -> NHWC
    # Stage 1: conv1 -> (stats -> folded BN1 scale/shift)
    y1, sc1, sh1 = _conv_pass(x, w1, g1, be1, preact=None)
    # Stage 2: BN1 + LeakyReLU fused into conv2's kernel, then conv2 -> folded BN2
    y2, sc2, sh2 = _conv_pass(y1, w2, g2, be2, preact=(sc1, sh1))
    # Final BN2 + LeakyReLU
    out = _bn_lrelu(y2, sc2, sh2, out_dtype=x_nchw.dtype)
    cout = w2.shape[0]
    return jnp.transpose(out[..., :cout], (0, 3, 1, 2))   # NHWC -> NCHW


def conv_block_reference(x, w1, b1, g1, be1, w2, b2, g2, be2):
    """Plain-JAX f32 reference with full PyTorch semantics (incl. conv bias)."""
    def stage(x, w, b, g, be):
        y = lax.conv_general_dilated(x, w, (1, 1), ((1, 1), (1, 1)),
                                     dimension_numbers=("NCHW", "OIHW", "NCHW"))
        y = y + b.reshape(1, -1, 1, 1)
        mean = jnp.mean(y, axis=(0, 2, 3), keepdims=True)
        var = jnp.mean(jnp.square(y - mean), axis=(0, 2, 3), keepdims=True)
        y = (y - mean) * (g.reshape(1, -1, 1, 1) * lax.rsqrt(var + EPS)) \
            + be.reshape(1, -1, 1, 1)
        return jnp.where(y >= 0, y, NEG_SLOPE * y)
    return stage(stage(x, w1, b1, g1, be1), w2, b2, g2, be2)


if __name__ == "__main__":
    N, Cin, Cout, H, W = 2, 4, 8, 16, 16

    key = jax.random.PRNGKey(0)
    k_x, k_w1, k_b1, k_w2, k_b2 = jax.random.split(key, 5)

    x = jax.random.normal(k_x, (N, Cin, H, W), dtype=jnp.float32)
    fan1 = Cin * 9
    w1 = jax.random.uniform(k_w1, (Cout, Cin, 3, 3), jnp.float32, -1.0, 1.0) / jnp.sqrt(float(fan1))
    b1 = jax.random.uniform(k_b1, (Cout,), jnp.float32, -0.1, 0.1)
    fan2 = Cout * 9
    w2 = jax.random.uniform(k_w2, (Cout, Cout, 3, 3), jnp.float32, -1.0, 1.0) / jnp.sqrt(float(fan2))
    b2 = jax.random.uniform(k_b2, (Cout,), jnp.float32, -0.1, 0.1)
    g1 = jnp.ones((Cout,), jnp.float32)
    be1 = jnp.zeros((Cout,), jnp.float32)
    g2 = jnp.ones((Cout,), jnp.float32)
    be2 = jnp.zeros((Cout,), jnp.float32)

    fwd = jax.jit(conv_block_forward)
    out = jax.block_until_ready(fwd(x, w1, b1, g1, be1, w2, b2, g2, be2))
    ref = jax.block_until_ready(conv_block_reference(x, w1, b1, g1, be1, w2, b2, g2, be2))

    assert out.shape == (N, Cout, H, W), out.shape
    max_err = float(jnp.max(jnp.abs(out - ref)))
    # bf16 matmul operands / bf16 intermediate activations vs. the pure-f32 reference.
    assert jnp.allclose(out, ref, atol=5e-2, rtol=5e-2), max_err

    print("KERNEL_OK")
</pallas_src>

<mosaic_0001>
module attributes {stable_mosaic.version = 11 : i64} {
  func.func @body_noact(%arg0: i32, %arg1: i32, %arg2: memref<1x16x16x4xbf16, #tpu.memory_space<vmem>>, %arg3: memref<36x128xbf16, #tpu.memory_space<vmem>>, %arg4: memref<1x16x16x128xbf16, #tpu.memory_space<vmem>>, %arg5: memref<1x1x2x128xf32, #tpu.memory_space<vmem>>) attributes {dimension_semantics = [#tpu.dimension_semantics<parallel>, #tpu.dimension_semantics<parallel>], iteration_bounds = array<i64: 2, 1>, scalar_prefetch = 0 : i64, scratch_operands = 0 : i64, tpu.core_type = #tpu.core_type<tc>, window_params = [{transform_indices = @transform_0, window_bounds = array<i64: 1, 16, 16, 4>}, {pipeline_mode = #tpu.pipeline_mode<synchronous>, transform_indices = @transform_1, window_bounds = array<i64: 36, 128>}, {transform_indices = @transform_2, window_bounds = array<i64: 1, 16, 16, 128>}, {transform_indices = @transform_3, window_bounds = array<i64: 1, 1, 2, 128>}]} {
    %c16_i32 = arith.constant 16 : i32
    %0 = arith.muli %arg1, %c16_i32 : i32
    %1 = tpu.assume_multiple %0, 16 : i32
    %c0 = arith.constant 0 : index
    %2 = arith.index_cast %1 : i32 to index
    %c0_0 = arith.constant 0 : index
    %c0_1 = arith.constant 0 : index
    %3 = vector.load %arg2[%c0, %2, %c0_0, %c0_1] : memref<1x16x16x4xbf16, #tpu.memory_space<vmem>>, vector<1x16x16x4xbf16>
    %4 = vector.shape_cast %3 : vector<1x16x16x4xbf16> to vector<16x16x4xbf16>
    %c1_i32 = arith.constant 1 : i32
    %5 = arith.subi %1, %c1_i32 : i32
    %c0_i32 = arith.constant 0 : i32
    %6 = arith.maxsi %5, %c0_i32 : i32
    %c0_2 = arith.constant 0 : index
    %7 = arith.index_cast %6 : i32 to index
    %c0_3 = arith.constant 0 : index
    %c0_4 = arith.constant 0 : index
    %8 = vector.load %arg2[%c0_2, %7, %c0_3, %c0_4] : memref<1x16x16x4xbf16, #tpu.memory_space<vmem>>, vector<1x1x16x4xbf16>
    %9 = vector.shape_cast %8 : vector<1x1x16x4xbf16> to vector<1x16x4xbf16>
    %c0_i32_5 = arith.constant 0 : i32
    %10 = arith.cmpi sgt, %1, %c0_i32_5 : i32
    %11 = arith.extui %10 : i1 to i32
    %12 = arith.sitofp %11 : i32 to f32
    %13 = arith.truncf %12 : f32 to bf16
    %14 = vector.broadcast %13 : bf16 to vector<1x16x4xbf16>
    %15 = arith.mulf %9, %14 : vector<1x16x4xbf16>
    %c16_i32_6 = arith.constant 16 : i32
    %16 = arith.addi %1, %c16_i32_6 : i32
    %c15_i32 = arith.constant 15 : i32
    %17 = arith.minsi %16, %c15_i32 : i32
    %c0_7 = arith.constant 0 : index
    %18 = arith.index_cast %17 : i32 to index
    %c0_8 = arith.constant 0 : index
    %c0_9 = arith.constant 0 : index
    %19 = vector.load %arg2[%c0_7, %18, %c0_8, %c0_9] : memref<1x16x16x4xbf16, #tpu.memory_space<vmem>>, vector<1x1x16x4xbf16>
    %20 = vector.shape_cast %19 : vector<1x1x16x4xbf16> to vector<1x16x4xbf16>
    %c16_i32_10 = arith.constant 16 : i32
    %21 = arith.addi %1, %c16_i32_10 : i32
    %c16_i32_11 = arith.constant 16 : i32
    %22 = arith.cmpi slt, %21, %c16_i32_11 : i32
    %23 = arith.extui %22 : i1 to i32
    %24 = arith.sitofp %23 : i32 to f32
    %25 = arith.truncf %24 : f32 to bf16
    %26 = vector.broadcast %25 : bf16 to vector<1x16x4xbf16>
    %27 = arith.mulf %20, %26 : vector<1x16x4xbf16>
    %28 = tpu.concatenate %15, %4, %27 in 0 : vector<1x16x4xbf16>, vector<16x16x4xbf16>, vector<1x16x4xbf16> -> vector<18x16x4xbf16>
    %cst = arith.constant 0.000000e+00 : bf16
    %29 = vector.broadcast %cst : bf16 to vector<18x1x4xbf16>
    %30 = tpu.concatenate %29, %28, %29 in 1 : vector<18x1x4xbf16>, vector<18x16x4xbf16>, vector<18x1x4xbf16> -> vector<18x18x4xbf16>
    %31 = vector.extract_strided_slice %30 {offsets = [0, 0, 0], sizes = [16, 16, 4], strides = [1, 1, 1]} : vector<18x18x4xbf16> to vector<16x16x4xbf16>
    %32 = vector.shape_cast %31 : vector<16x16x4xbf16> to vector<256x4xbf16>
    %33 = vector.extract_strided_slice %30 {offsets = [0, 1, 0], sizes = [16, 16, 4], strides = [1, 1, 1]} : vector<18x18x4xbf16> to vector<16x16x4xbf16>
    %34 = vector.shape_cast %33 : vector<16x16x4xbf16> to vector<256x4xbf16>
    %35 = vector.extract_strided_slice %30 {offsets = [0, 2, 0], sizes = [16, 16, 4], strides = [1, 1, 1]} : vector<18x18x4xbf16> to vector<16x16x4xbf16>
    %36 = vector.shape_cast %35 : vector<16x16x4xbf16> to vector<256x4xbf16>
    %37 = vector.extract_strided_slice %30 {offsets = [1, 0, 0], sizes = [16, 16, 4], strides = [1, 1, 1]} : vector<18x18x4xbf16> to vector<16x16x4xbf16>
    %38 = vector.shape_cast %37 : vector<16x16x4xbf16> to vector<256x4xbf16>
    %39 = vector.extract_strided_slice %30 {offsets = [1, 1, 0], sizes = [16, 16, 4], strides = [1, 1, 1]} : vector<18x18x4xbf16> to vector<16x16x4xbf16>
    %40 = vector.shape_cast %39 : vector<16x16x4xbf16> to vector<256x4xbf16>
    %41 = vector.extract_strided_slice %30 {offsets = [1, 2, 0], sizes = [16, 16, 4], strides = [1, 1, 1]} : vector<18x18x4xbf16> to vector<16x16x4xbf16>
    %42 = vector.shape_cast %41 : vector<16x16x4xbf16> to vector<256x4xbf16>
    %43 = vector.extract_strided_slice %30 {offsets = [2, 0, 0], sizes = [16, 16, 4], strides = [1, 1, 1]} : vector<18x18x4xbf16> to vector<16x16x4xbf16>
    %44 = vector.shape_cast %43 : vector<16x16x4xbf16> to vector<256x4xbf16>
    %45 = vector.extract_strided_slice %30 {offsets = [2, 1, 0], sizes = [16, 16, 4], strides = [1, 1, 1]} : vector<18x18x4xbf16> to vector<16x16x4xbf16>
    %46 = vector.shape_cast %45 : vector<16x16x4xbf16> to vector<256x4xbf16>
    %47 = vector.extract_strided_slice %30 {offsets = [2, 2, 0], sizes = [16, 16, 4], strides = [1, 1, 1]} : vector<18x18x4xbf16> to vector<16x16x4xbf16>
    %48 = vector.shape_cast %47 : vector<16x16x4xbf16> to vector<256x4xbf16>
    %49 = tpu.concatenate %32, %34, %36, %38, %40, %42, %44, %46, %48 in 1 : vector<256x4xbf16>, vector<256x4xbf16>, vector<256x4xbf16>, vector<256x4xbf16>, vector<256x4xbf16>, vector<256x4xbf16>, vector<256x4xbf16>, vector<256x4xbf16>, vector<256x4xbf16> -> vector<256x36xbf16>
    %c0_12 = arith.constant 0 : index
    %c0_13 = arith.constant 0 : index
    %50 = vector.load %arg3[%c0_12, %c0_13] : memref<36x128xbf16, #tpu.memory_space<vmem>>, vector<36x128xbf16>
    %cst_14 = arith.constant dense<0.000000e+00> : vector<256x128xf32>
    %51 = tpu.matmul %49, %50, %cst_14 {dimension_numbers = #tpu.dot_dimension_numbers<[1], [0], [0], [1], [0, 0, 1, 1], [], []>} : vector<256x36xbf16>, vector<36x128xbf16>, vector<256x128xf32> -> vector<256x128xf32>
    %cst_15 = arith.constant dense<0.000000e+00> : vector<128xf32>
    %52 = vector.multi_reduction <add>, %51, %cst_15 [0] : vector<256x128xf32> to vector<128xf32>
    %53 = vector.shape_cast %52 : vector<128xf32> to vector<1x128xf32>
    %54 = arith.mulf %51, %51 : vector<256x128xf32>
    %cst_16 = arith.constant dense<0.000000e+00> : vector<128xf32>
    %55 = vector.multi_reduction <add>, %54, %cst_16 [0] : vector<256x128xf32> to vector<128xf32>
    %56 = vector.shape_cast %55 : vector<128xf32> to vector<1x128xf32>
    %57 = tpu.concatenate %53, %56 in 0 : vector<1x128xf32>, vector<1x128xf32> -> vector<2x128xf32>
    %58 = vector.shape_cast %57 : vector<2x128xf32> to vector<1x1x2x128xf32>
    %c0_17 = arith.constant 0 : index
    %c0_18 = arith.constant 0 : index
    %c0_19 = arith.constant 0 : index
    %c0_20 = arith.constant 0 : index
    %59 = vector.load %arg5[%c0_17, %c0_18, %c0_19, %c0_20] : memref<1x1x2x128xf32, #tpu.memory_space<vmem>>, vector<1x1x2x128xf32>
    tpu.vector_store %arg5[%c0_17, %c0_18, %c0_19, %c0_20], %58 {strides = array<i32>} : memref<1x1x2x128xf32, #tpu.memory_space<vmem>>, vector<1x1x2x128xf32>,
    %60 = vector.shape_cast %51 : vector<256x128xf32> to vector<1x16x16x128xf32>
    %61 = arith.truncf %60 : vector<1x16x16x128xf32> to vector<1x16x16x128xbf16>
    %c0_21 = arith.constant 0 : index
    %c0_22 = arith.constant 0 : index
    %c0_23 = arith.constant 0 : index
    %c0_24 = arith.constant 0 : index
    %62 = vector.load %arg4[%c0_21, %c0_22, %c0_23, %c0_24] : memref<1x16x16x128xbf16, #tpu.memory_space<vmem>>, vector<1x16x16x128xbf16>
    tpu.vector_store %arg4[%c0_21, %c0_22, %c0_23, %c0_24], %61 {strides = array<i32>} : memref<1x16x16x128xbf16, #tpu.memory_space<vmem>>, vector<1x16x16x128xbf16>,
    return
  }
  func.func @transform_0(%arg0: i32, %arg1: i32) -> (i32, i32, i32, i32) {
    %c0_i32 = arith.constant 0 : i32
    %c0_i32_0 = arith.constant 0 : i32
    %c0_i32_1 = arith.constant 0 : i32
    %c0_i32_2 = arith.constant 0 : i32
    return %arg0, %c0_i32, %c0_i32_0, %c0_i32_1 : i32, i32, i32, i32
  }
  func.func @transform_1(%arg0: i32, %arg1: i32) -> (i32, i32) {
    %c0_i32 = arith.constant 0 : i32
    %c0_i32_0 = arith.constant 0 : i32
    %c0_i32_1 = arith.constant 0 : i32
    return %c0_i32, %c0_i32_0 : i32, i32
  }
  func.func @transform_2(%arg0: i32, %arg1: i32) -> (i32, i32, i32, i32) {
    %c0_i32 = arith.constant 0 : i32
    %c0_i32_0 = arith.constant 0 : i32
    %c0_i32_1 = arith.constant 0 : i32
    return %arg0, %arg1, %c0_i32, %c0_i32_0 : i32, i32, i32, i32
  }
  func.func @transform_3(%arg0: i32, %arg1: i32) -> (i32, i32, i32, i32) {
    %c0_i32 = arith.constant 0 : i32
    %c0_i32_0 = arith.constant 0 : i32
    %c0_i32_1 = arith.constant 0 : i32
    return %arg0, %arg1, %c0_i32, %c0_i32_0 : i32, i32, i32, i32
  }
}

module attributes {stable_mosaic.version = 11 : i64} {
  func.func @body(%arg0: i32, %arg1: i32, %arg2: memref<1x16x16x128xbf16, #tpu.memory_space<vmem>>, %arg3: memref<1152x128xbf16, #tpu.memory_space<vmem>>, %arg4: memref<1x128xf32, #tpu.memory_space<vmem>>, %arg5: memref<1x128xf32, #tpu.memory_space<vmem>>, %arg6: memref<1x16x16x128xbf16, #tpu.memory_space<vmem>>, %arg7: memref<1x1x2x128xf32, #tpu.memory_space<vmem>>) attributes {dimension_semantics = [#tpu.dimension_semantics<parallel>, #tpu.dimension_semantics<parallel>], iteration_bounds = array<i64: 2, 1>, scalar_prefetch = 0 : i64, scratch_operands = 0 : i64, tpu.core_type = #tpu.core_type<tc>, window_params = [{transform_indices = @transform_0, window_bounds = array<i64: 1, 16, 16, 128>}, {pipeline_mode = #tpu.pipeline_mode<synchronous>, transform_indices = @transform_1, window_bounds = array<i64: 1152, 128>}, {pipeline_mode = #tpu.pipeline_mode<synchronous>, transform_indices = @transform_2, window_bounds = array<i64: 1, 128>}, {pipeline_mode = #tpu.pipeline_mode<synchronous>, transform_indices = @transform_3, window_bounds = array<i64: 1, 128>}, {transform_indices = @transform_4, window_bounds = array<i64: 1, 16, 16, 128>}, {transform_indices = @transform_5, window_bounds = array<i64: 1, 1, 2, 128>}]} {
    %c16_i32 = arith.constant 16 : i32
    %0 = arith.muli %arg1, %c16_i32 : i32
    %1 = tpu.assume_multiple %0, 16 : i32
    %c0 = arith.constant 0 : index
    %2 = arith.index_cast %1 : i32 to index
    %c0_0 = arith.constant 0 : index
    %c0_1 = arith.constant 0 : index
    %3 = vector.load %arg2[%c0, %2, %c0_0, %c0_1] : memref<1x16x16x128xbf16, #tpu.memory_space<vmem>>, vector<1x16x16x128xbf16>
    %4 = vector.shape_cast %3 : vector<1x16x16x128xbf16> to vector<16x16x128xbf16>
    %c0_2 = arith.constant 0 : index
    %c0_3 = arith.constant 0 : index
    %5 = vector.load %arg4[%c0_2, %c0_3] : memref<1x128xf32, #tpu.memory_space<vmem>>, vector<1x128xf32>
    %6 = vector.shape_cast %5 : vector<1x128xf32> to vector<1x1x128xf32>
    %c0_4 = arith.constant 0 : index
    %c0_5 = arith.constant 0 : index
    %7 = vector.load %arg5[%c0_4, %c0_5] : memref<1x128xf32, #tpu.memory_space<vmem>>, vector<1x128xf32>
    %8 = vector.shape_cast %7 : vector<1x128xf32> to vector<1x1x128xf32>
    %9 = arith.extf %4 : vector<16x16x128xbf16> to vector<16x16x128xf32>
    %10 = vector.broadcast %6 : vector<1x1x128xf32> to vector<16x16x128xf32>
    %11 = arith.mulf %9, %10 : vector<16x16x128xf32>
    %12 = vector.broadcast %8 : vector<1x1x128xf32> to vector<16x16x128xf32>
    %13 = arith.addf %11, %12 : vector<16x16x128xf32>
    %cst = arith.constant 0.000000e+00 : f32
    %14 = vector.broadcast %cst : f32 to vector<16x16x128xf32>
    %15 = arith.cmpf oge, %13, %14 : vector<16x16x128xf32>
    %cst_6 = arith.constant 0.00999999977 : f32
    %16 = vector.broadcast %cst_6 : f32 to vector<16x16x128xf32>
    %17 = arith.mulf %16, %13 : vector<16x16x128xf32>
    %18 = arith.select %15, %13, %17 : vector<16x16x128xi1>, vector<16x16x128xf32>
    %19 = arith.truncf %18 : vector<16x16x128xf32> to vector<16x16x128xbf16>
    %c1_i32 = arith.constant 1 : i32
    %20 = arith.subi %1, %c1_i32 : i32
    %c0_i32 = arith.constant 0 : i32
    %21 = arith.maxsi %20, %c0_i32 : i32
    %c0_7 = arith.constant 0 : index
    %22 = arith.index_cast %21 : i32 to index
    %c0_8 = arith.constant 0 : index
    %c0_9 = arith.constant 0 : index
    %23 = vector.load %arg2[%c0_7, %22, %c0_8, %c0_9] : memref<1x16x16x128xbf16, #tpu.memory_space<vmem>>, vector<1x1x16x128xbf16>
    %24 = vector.shape_cast %23 : vector<1x1x16x128xbf16> to vector<1x16x128xbf16>
    %c0_10 = arith.constant 0 : index
    %c0_11 = arith.constant 0 : index
    %25 = vector.load %arg4[%c0_10, %c0_11] : memref<1x128xf32, #tpu.memory_space<vmem>>, vector<1x128xf32>
    %26 = vector.shape_cast %25 : vector<1x128xf32> to vector<1x1x128xf32>
    %c0_12 = arith.constant 0 : index
    %c0_13 = arith.constant 0 : index
    %27 = vector.load %arg5[%c0_12, %c0_13] : memref<1x128xf32, #tpu.memory_space<vmem>>, vector<1x128xf32>
    %28 = vector.shape_cast %27 : vector<1x128xf32> to vector<1x1x128xf32>
    %29 = arith.extf %24 : vector<1x16x128xbf16> to vector<1x16x128xf32>
    %30 = vector.broadcast %26 : vector<1x1x128xf32> to vector<1x16x128xf32>
    %31 = arith.mulf %29, %30 : vector<1x16x128xf32>
    %32 = vector.broadcast %28 : vector<1x1x128xf32> to vector<1x16x128xf32>
    %33 = arith.addf %31, %32 : vector<1x16x128xf32>
    %cst_14 = arith.constant 0.000000e+00 : f32
    %34 = vector.broadcast %cst_14 : f32 to vector<1x16x128xf32>
    %35 = arith.cmpf oge, %33, %34 : vector<1x16x128xf32>
    %cst_15 = arith.constant 0.00999999977 : f32
    %36 = vector.broadcast %cst_15 : f32 to vector<1x16x128xf32>
    %37 = arith.mulf %36, %33 : vector<1x16x128xf32>
    %38 = arith.select %35, %33, %37 : vector<1x16x128xi1>, vector<1x16x128xf32>
    %39 = arith.truncf %38 : vector<1x16x128xf32> to vector<1x16x128xbf16>
    %c0_i32_16 = arith.constant 0 : i32
    %40 = arith.cmpi sgt, %1, %c0_i32_16 : i32
    %41 = arith.extui %40 : i1 to i32
    %42 = arith.sitofp %41 : i32 to f32
    %43 = arith.truncf %42 : f32 to bf16
    %44 = vector.broadcast %43 : bf16 to vector<1x16x128xbf16>
    %45 = arith.mulf %39, %44 : vector<1x16x128xbf16>
    %c16_i32_17 = arith.constant 16 : i32
    %46 = arith.addi %1, %c16_i32_17 : i32
    %c15_i32 = arith.constant 15 : i32
    %47 = arith.minsi %46, %c15_i32 : i32
    %c0_18 = arith.constant 0 : index
    %48 = arith.index_cast %47 : i32 to index
    %c0_19 = arith.constant 0 : index
    %c0_20 = arith.constant 0 : index
    %49 = vector.load %arg2[%c0_18, %48, %c0_19, %c0_20] : memref<1x16x16x128xbf16, #tpu.memory_space<vmem>>, vector<1x1x16x128xbf16>
    %50 = vector.shape_cast %49 : vector<1x1x16x128xbf16> to vector<1x16x128xbf16>
    %c0_21 = arith.constant 0 : index
    %c0_22 = arith.constant 0 : index
    %51 = vector.load %arg4[%c0_21, %c0_22] : memref<1x128xf32, #tpu.memory_space<vmem>>, vector<1x128xf32>
    %52 = vector.shape_cast %51 : vector<1x128xf32> to vector<1x1x128xf32>
    %c0_23 = arith.constant 0 : index
    %c0_24 = arith.constant 0 : index
    %53 = vector.load %arg5[%c0_23, %c0_24] : memref<1x128xf32, #tpu.memory_space<vmem>>, vector<1x128xf32>
    %54 = vector.shape_cast %53 : vector<1x128xf32> to vector<1x1x128xf32>
    %55 = arith.extf %50 : vector<1x16x128xbf16> to vector<1x16x128xf32>
    %56 = vector.broadcast %52 : vector<1x1x128xf32> to vector<1x16x128xf32>
    %57 = arith.mulf %55, %56 : vector<1x16x128xf32>
    %58 = vector.broadcast %54 : vector<1x1x128xf32> to vector<1x16x128xf32>
    %59 = arith.addf %57, %58 : vector<1x16x128xf32>
    %cst_25 = arith.constant 0.000000e+00 : f32
    %60 = vector.broadcast %cst_25 : f32 to vector<1x16x128xf32>
    %61 = arith.cmpf oge, %59, %60 : vector<1x16x128xf32>
    %cst_26 = arith.constant 0.00999999977 : f32
    %62 = vector.broadcast %cst_26 : f32 to vector<1x16x128xf32>
    %63 = arith.mulf %62, %59 : vector<1x16x128xf32>
    %64 = arith.select %61, %59, %63 : vector<1x16x128xi1>, vector<1x16x128xf32>
    %65 = arith.truncf %64 : vector<1x16x128xf32> to vector<1x16x128xbf16>
    %c16_i32_27 = arith.constant 16 : i32
    %66 = arith.addi %1, %c16_i32_27 : i32
    %c16_i32_28 = arith.constant 16 : i32
    %67 = arith.cmpi slt, %66, %c16_i32_28 : i32
    %68 = arith.extui %67 : i1 to i32
    %69 = arith.sitofp %68 : i32 to f32
    %70 = arith.truncf %69 : f32 to bf16
    %71 = vector.broadcast %70 : bf16 to vector<1x16x128xbf16>
    %72 = arith.mulf %65, %71 : vector<1x16x128xbf16>
    %73 = tpu.concatenate %45, %19, %72 in 0 : vector<1x16x128xbf16>, vector<16x16x128xbf16>, vector<1x16x128xbf16> -> vector<18x16x128xbf16>
    %cst_29 = arith.constant 0.000000e+00 : bf16
    %74 = vector.broadcast %cst_29 : bf16 to vector<18x1x128xbf16>
    %75 = tpu.concatenate %74, %73, %74 in 1 : vector<18x1x128xbf16>, vector<18x16x128xbf16>, vector<18x1x128xbf16> -> vector<18x18x128xbf16>
    %76 = vector.extract_strided_slice %75 {offsets = [0, 0, 0], sizes = [16, 16, 128], strides = [1, 1, 1]} : vector<18x18x128xbf16> to vector<16x16x128xbf16>
    %77 = vector.shape_cast %76 : vector<16x16x128xbf16> to vector<256x128xbf16>
    %78 = vector.extract_strided_slice %75 {offsets = [0, 1, 0], sizes = [16, 16, 128], strides = [1, 1, 1]} : vector<18x18x128xbf16> to vector<16x16x128xbf16>
    %79 = vector.shape_cast %78 : vector<16x16x128xbf16> to vector<256x128xbf16>
    %80 = vector.extract_strided_slice %75 {offsets = [0, 2, 0], sizes = [16, 16, 128], strides = [1, 1, 1]} : vector<18x18x128xbf16> to vector<16x16x128xbf16>
    %81 = vector.shape_cast %80 : vector<16x16x128xbf16> to vector<256x128xbf16>
    %82 = vector.extract_strided_slice %75 {offsets = [1, 0, 0], sizes = [16, 16, 128], strides = [1, 1, 1]} : vector<18x18x128xbf16> to vector<16x16x128xbf16>
    %83 = vector.shape_cast %82 : vector<16x16x128xbf16> to vector<256x128xbf16>
    %84 = vector.extract_strided_slice %75 {offsets = [1, 1, 0], sizes = [16, 16, 128], strides = [1, 1, 1]} : vector<18x18x128xbf16> to vector<16x16x128xbf16>
    %85 = vector.shape_cast %84 : vector<16x16x128xbf16> to vector<256x128xbf16>
    %86 = vector.extract_strided_slice %75 {offsets = [1, 2, 0], sizes = [16, 16, 128], strides = [1, 1, 1]} : vector<18x18x128xbf16> to vector<16x16x128xbf16>
    %87 = vector.shape_cast %86 : vector<16x16x128xbf16> to vector<256x128xbf16>
    %88 = vector.extract_strided_slice %75 {offsets = [2, 0, 0], sizes = [16, 16, 128], strides = [1, 1, 1]} : vector<18x18x128xbf16> to vector<16x16x128xbf16>
    %89 = vector.shape_cast %88 : vector<16x16x128xbf16> to vector<256x128xbf16>
    %90 = vector.extract_strided_slice %75 {offsets = [2, 1, 0], sizes = [16, 16, 128], strides = [1, 1, 1]} : vector<18x18x128xbf16> to vector<16x16x128xbf16>
    %91 = vector.shape_cast %90 : vector<16x16x128xbf16> to vector<256x128xbf16>
    %92 = vector.extract_strided_slice %75 {offsets = [2, 2, 0], sizes = [16, 16, 128], strides = [1, 1, 1]} : vector<18x18x128xbf16> to vector<16x16x128xbf16>
    %93 = vector.shape_cast %92 : vector<16x16x128xbf16> to vector<256x128xbf16>
    %94 = tpu.concatenate %77, %79, %81, %83, %85, %87, %89, %91, %93 in 1 : vector<256x128xbf16>, vector<256x128xbf16>, vector<256x128xbf16>, vector<256x128xbf16>, vector<256x128xbf16>, vector<256x128xbf16>, vector<256x128xbf16>, vector<256x128xbf16>, vector<256x128xbf16> -> vector<256x1152xbf16>
    %c0_30 = arith.constant 0 : index
    %c0_31 = arith.constant 0 : index
    %95 = vector.load %arg3[%c0_30, %c0_31] : memref<1152x128xbf16, #tpu.memory_space<vmem>>, vector<1152x128xbf16>
    %cst_32 = arith.constant dense<0.000000e+00> : vector<256x128xf32>
    %96 = tpu.matmul %94, %95, %cst_32 {dimension_numbers = #tpu.dot_dimension_numbers<[1], [0], [0], [1], [0, 0, 1, 1], [], []>} : vector<256x1152xbf16>, vector<1152x128xbf16>, vector<256x128xf32> -> vector<256x128xf32>
    %cst_33 = arith.constant dense<0.000000e+00> : vector<128xf32>
    %97 = vector.multi_reduction <add>, %96, %cst_33 [0] : vector<256x128xf32> to vector<128xf32>
    %98 = vector.shape_cast %97 : vector<128xf32> to vector<1x128xf32>
    %99 = arith.mulf %96, %96 : vector<256x128xf32>
    %cst_34 = arith.constant dense<0.000000e+00> : vector<128xf32>
    %100 = vector.multi_reduction <add>, %99, %cst_34 [0] : vector<256x128xf32> to vector<128xf32>
    %101 = vector.shape_cast %100 : vector<128xf32> to vector<1x128xf32>
    %102 = tpu.concatenate %98, %101 in 0 : vector<1x128xf32>, vector<1x128xf32> -> vector<2x128xf32>
    %103 = vector.shape_cast %102 : vector<2x128xf32> to vector<1x1x2x128xf32>
    %c0_35 = arith.constant 0 : index
    %c0_36 = arith.constant 0 : index
    %c0_37 = arith.constant 0 : index
    %c0_38 = arith.constant 0 : index
    %104 = vector.load %arg7[%c0_35, %c0_36, %c0_37, %c0_38] : memref<1x1x2x128xf32, #tpu.memory_space<vmem>>, vector<1x1x2x128xf32>
    tpu.vector_store %arg7[%c0_35, %c0_36, %c0_37, %c0_38], %103 {strides = array<i32>} : memref<1x1x2x128xf32, #tpu.memory_space<vmem>>, vector<1x1x2x128xf32>,
    %105 = vector.shape_cast %96 : vector<256x128xf32> to vector<1x16x16x128xf32>
    %106 = arith.truncf %105 : vector<1x16x16x128xf32> to vector<1x16x16x128xbf16>
    %c0_39 = arith.constant 0 : index
    %c0_40 = arith.constant 0 : index
    %c0_41 = arith.constant 0 : index
    %c0_42 = arith.constant 0 : index
    %107 = vector.load %arg6[%c0_39, %c0_40, %c0_41, %c0_42] : memref<1x16x16x128xbf16, #tpu.memory_space<vmem>>, vector<1x16x16x128xbf16>
    tpu.vector_store %arg6[%c0_39, %c0_40, %c0_41, %c0_42], %106 {strides = array<i32>} : memref<1x16x16x128xbf16, #tpu.memory_space<vmem>>, vector<1x16x16x128xbf16>,
    return
  }
  func.func @transform_0(%arg0: i32, %arg1: i32) -> (i32, i32, i32, i32) {
    %c0_i32 = arith.constant 0 : i32
    %c0_i32_0 = arith.constant 0 : i32
    %c0_i32_1 = arith.constant 0 : i32
    %c0_i32_2 = arith.constant 0 : i32
    return %arg0, %c0_i32, %c0_i32_0, %c0_i32_1 : i32, i32, i32, i32
  }
  func.func @transform_1(%arg0: i32, %arg1: i32) -> (i32, i32) {
    %c0_i32 = arith.constant 0 : i32
    %c0_i32_0 = arith.constant 0 : i32
    %c0_i32_1 = arith.constant 0 : i32
    return %c0_i32, %c0_i32_0 : i32, i32
  }
  func.func @transform_2(%arg0: i32, %arg1: i32) -> (i32, i32) {
    %c0_i32 = arith.constant 0 : i32
    %c0_i32_0 = arith.constant 0 : i32
    %c0_i32_1 = arith.constant 0 : i32
    return %c0_i32, %c0_i32_0 : i32, i32
  }
  func.func @transform_3(%arg0: i32, %arg1: i32) -> (i32, i32) {
    %c0_i32 = arith.constant 0 : i32
    %c0_i32_0 = arith.constant 0 : i32
    %c0_i32_1 = arith.constant 0 : i32
    return %c0_i32, %c0_i32_0 : i32, i32
  }
  func.func @transform_4(%arg0: i32, %arg1: i32) -> (i32, i32, i32, i32) {
    %c0_i32 = arith.constant 0 : i32
    %c0_i32_0 = arith.constant 0 : i32
    %c0_i32_1 = arith.constant 0 : i32
    return %arg0, %arg1, %c0_i32, %c0_i32_0 : i32, i32, i32, i32
  }
  func.func @transform_5(%arg0: i32, %arg1: i32) -> (i32, i32, i32, i32) {
    %c0_i32 = arith.constant 0 : i32
    %c0_i32_0 = arith.constant 0 : i32
    %c0_i32_1 = arith.constant 0 : i32
    return %arg0, %arg1, %c0_i32, %c0_i32_0 : i32, i32, i32, i32
  }
}

module attributes {stable_mosaic.version = 11 : i64} {
  func.func @bn_lrelu_kernel(%arg0: i32, %arg1: memref<512x128xbf16, #tpu.memory_space<vmem>>, %arg2: memref<1x128xf32, #tpu.memory_space<vmem>>, %arg3: memref<1x128xf32, #tpu.memory_space<vmem>>, %arg4: memref<512x128xf32, #tpu.memory_space<vmem>>) attributes {dimension_semantics = [#tpu.dimension_semantics<parallel>], iteration_bounds = array<i64: 1>, scalar_prefetch = 0 : i64, scratch_operands = 0 : i64, tpu.core_type = #tpu.core_type<tc>, window_params = [{transform_indices = @transform_0, window_bounds = array<i64: 512, 128>}, {pipeline_mode = #tpu.pipeline_mode<synchronous>, transform_indices = @transform_1, window_bounds = array<i64: 1, 128>}, {pipeline_mode = #tpu.pipeline_mode<synchronous>, transform_indices = @transform_2, window_bounds = array<i64: 1, 128>}, {transform_indices = @transform_3, window_bounds = array<i64: 512, 128>}]} {
    %c0 = arith.constant 0 : index
    %c0_0 = arith.constant 0 : index
    %0 = vector.load %arg1[%c0, %c0_0] : memref<512x128xbf16, #tpu.memory_space<vmem>>, vector<512x128xbf16>
    %1 = arith.extf %0 : vector<512x128xbf16> to vector<512x128xf32>
    %c0_1 = arith.constant 0 : index
    %c0_2 = arith.constant 0 : index
    %2 = vector.load %arg2[%c0_1, %c0_2] : memref<1x128xf32, #tpu.memory_space<vmem>>, vector<1x128xf32>
    %3 = vector.broadcast %2 : vector<1x128xf32> to vector<512x128xf32>
    %4 = arith.mulf %1, %3 : vector<512x128xf32>
    %c0_3 = arith.constant 0 : index
    %c0_4 = arith.constant 0 : index
    %5 = vector.load %arg3[%c0_3, %c0_4] : memref<1x128xf32, #tpu.memory_space<vmem>>, vector<1x128xf32>
    %6 = vector.broadcast %5 : vector<1x128xf32> to vector<512x128xf32>
    %7 = arith.addf %4, %6 : vector<512x128xf32>
    %cst = arith.constant 0.000000e+00 : f32
    %8 = vector.broadcast %cst : f32 to vector<512x128xf32>
    %9 = arith.cmpf oge, %7, %8 : vector<512x128xf32>
    %cst_5 = arith.constant 0.00999999977 : f32
    %10 = vector.broadcast %cst_5 : f32 to vector<512x128xf32>
    %11 = arith.mulf %10, %7 : vector<512x128xf32>
    %12 = arith.select %9, %7, %11 : vector<512x128xi1>, vector<512x128xf32>
    %c0_6 = arith.constant 0 : index
    %c0_7 = arith.constant 0 : index
    %13 = vector.load %arg4[%c0_6, %c0_7] : memref<512x128xf32, #tpu.memory_space<vmem>>, vector<512x128xf32>
    tpu.vector_store %arg4[%c0_6, %c0_7], %12 {strides = array<i32>} : memref<512x128xf32, #tpu.memory_space<vmem>>, vector<512x128xf32>,
    return
  }
  func.func @transform_0(%arg0: i32) -> (i32, i32) {
    %c0_i32 = arith.constant 0 : i32
    %c0_i32_0 = arith.constant 0 : i32
    return %arg0, %c0_i32 : i32, i32
  }
  func.func @transform_1(%arg0: i32) -> (i32, i32) {
    %c0_i32 = arith.constant 0 : i32
    %c0_i32_0 = arith.constant 0 : i32
    %c0_i32_1 = arith.constant 0 : i32
    return %c0_i32, %c0_i32_0 : i32, i32
  }
  func.func @transform_2(%arg0: i32) -> (i32, i32) {
    %c0_i32 = arith.constant 0 : i32
    %c0_i32_0 = arith.constant 0 : i32
    %c0_i32_1 = arith.constant 0 : i32
    return %c0_i32, %c0_i32_0 : i32, i32
  }
  func.func @transform_3(%arg0: i32) -> (i32, i32) {
    %c0_i32 = arith.constant 0 : i32
    %c0_i32_0 = arith.constant 0 : i32
    return %arg0, %c0_i32 : i32, i32
  }
}

</mosaic_0001>

<llo_original>
// kernel: conv_block_forward.5
$region0: #{conv_block_forward.5}
  #allocation0 [shape = 'u32[]', space=smem, size = 0x4, offset = 0x4, fixed_abs, tag = 'smem constant byte address 0x4 - core index']
  #allocation1 [shape = 'u32[144,128]{1,0:T(1,128)}', space=vmem, size = 0x12000, scoped, tag = 'internal scratch']
  %s0 = inlined_call_operand.vmem [shape: bf16[512,128], index: 0, kind: input, shape index: {}]
  %s1 = inlined_call_operand.vmem [shape: f32[1,128], index: 1, kind: input, shape index: {}]
  %s2 = inlined_call_operand.vmem [shape: f32[1,128], index: 2, kind: input, shape index: {}]
  %s3 = inlined_call_operand.vmem [shape: f32[512,128], index: 3, kind: output, shape index: {}]
  %s4 = sld [smem:[#allocation0]]
  $region22: #{conv_block_forward.5} parent=0
    _
  %s6 = ssub.s32 1, %s4
  %s7 = scalar_select 0, %s6, %s4
  // Predicated region
  $region2: #{conv_block_forward.5} parent=0 // pred_check
    _
  $region3: #{conv_block_forward.5} parent=0 // pred_check_branch
    %9 = sbr.rel (0) target = $region5
  $region4: #{conv_block_forward.5} parent=0 // pred_region
    _
  $region5: #{conv_block_forward.5} parent=0 // pred_fallthru
    _
  // Predicated region
  $region6: #{conv_block_forward.5} parent=0 // pred_check
    _
  $region7: #{conv_block_forward.5} parent=0 // pred_check_branch
    %11 = sbr.rel (0) target = $region9
  $region8: #{conv_block_forward.5} parent=0 // pred_region
    _
  $region9: #{conv_block_forward.5} parent=0 // pred_fallthru
    _
  // Predicated region
  $region10: #{conv_block_forward.5} parent=0 // pred_check
    _
  $region11: #{conv_block_forward.5} parent=0 // pred_check_branch
    %13 = sbr.rel (0) target = $region13
  $region12: #{conv_block_forward.5} parent=0 // pred_region
    _
  $region13: #{conv_block_forward.5} parent=0 // pred_fallthru
    _
  %v14 = vld [vmem:[%s0] sm:$0xf]
  %v15 = vld [vmem:[%s0 + $0x4] sm:$0xf]
  %v16 = vld [vmem:[%s0 + $0x8] sm:$0xf]
  %v17 = vld [vmem:[%s0 + $0xc] sm:$0xf]
  %v18 = vld [vmem:[%s0 + $0x10] sm:$0xf]
  %v19 = vld [vmem:[%s0 + $0x14] sm:$0xf]
  %v20 = vld [vmem:[%s0 + $0x18] sm:$0xf]
  %v21 = vld [vmem:[%s0 + $0x1c] sm:$0xf]
  %v22 = vld [vmem:[%s0 + $0x20] sm:$0xf]
  %v23 = vld [vmem:[%s0 + $0x24] sm:$0xf]
  %v24 = vld [vmem:[%s0 + $0x28] sm:$0xf]
  %v25 = vld [vmem:[%s0 + $0x2c] sm:$0xf]
  %v26 = vld [vmem:[%s0 + $0x30] sm:$0xf]
  %v27 = vld [vmem:[%s0 + $0x34] sm:$0xf]
  %v28 = vld [vmem:[%s0 + $0x38] sm:$0xf]
  %v29 = vld [vmem:[%s0 + $0x3c] sm:$0xf]
  %v30 = vld [vmem:[%s0 + $0x40] sm:$0xf]
  %v31 = vld [vmem:[%s0 + $0x44] sm:$0xf]
  %v32 = vld [vmem:[%s0 + $0x48] sm:$0xf]
  %v33 = vld [vmem:[%s0 + $0x4c] sm:$0xf]
  %v34 = vld [vmem:[%s0 + $0x50] sm:$0xf]
  %v35 = vld [vmem:[%s0 + $0x54] sm:$0xf]
  %v36 = vld [vmem:[%s0 + $0x58] sm:$0xf]
  %v37 = vld [vmem:[%s0 + $0x5c] sm:$0xf]
  %v38 = vld [vmem:[%s0 + $0x60] sm:$0xf]
  %v39 = vld [vmem:[%s0 + $0x64] sm:$0xf]
  %v40 = vld [vmem:[%s0 + $0x68] sm:$0xf]
  %v41 = vld [vmem:[%s0 + $0x6c] sm:$0xf]
  %v42 = vld [vmem:[%s0 + $0x70] sm:$0xf]
  %v43 = vld [vmem:[%s0 + $0x74] sm:$0xf]
  %v44 = vld [vmem:[%s0 + $0x78] sm:$0xf]
  %v45 = vld [vmem:[%s0 + $0x7c] sm:$0xf]
  %v46 = vld [vmem:[%s0 + $0x80] sm:$0xf]
  %v47 = vld [vmem:[%s0 + $0x84] sm:$0xf]
  %v48 = vld [vmem:[%s0 + $0x88] sm:$0xf]
  %v49 = vld [vmem:[%s0 + $0x8c] sm:$0xf]
  %v50 = vld [vmem:[%s0 + $0x90] sm:$0xf]
  %v51 = vld [vmem:[%s0 + $0x94] sm:$0xf]
  %v52 = vld [vmem:[%s0 + $0x98] sm:$0xf]
  %v53 = vld [vmem:[%s0 + $0x9c] sm:$0xf]
  %v54 = vld [vmem:[%s0 + $0xa0] sm:$0xf]
  %v55 = vld [vmem:[%s0 + $0xa4] sm:$0xf]
  %v56 = vld [vmem:[%s0 + $0xa8] sm:$0xf]
  %v57 = vld [vmem:[%s0 + $0xac] sm:$0xf]
  %v58 = vld [vmem:[%s0 + $0xb0] sm:$0xf]
  %v59 = vld [vmem:[%s0 + $0xb4] sm:$0xf]
  %v60 = vld [vmem:[%s0 + $0xb8] sm:$0xf]
  %v61 = vld [vmem:[%s0 + $0xbc] sm:$0xf]
  %v62 = vld [vmem:[%s0 + $0xc0] sm:$0xf]
  %v63 = vld [vmem:[%s0 + $0xc4] sm:$0xf]
  %v64 = vld [vmem:[%s0 + $0xc8] sm:$0xf]
  %v65 = vld [vmem:[%s0 + $0xcc] sm:$0xf]
  %v66 = vld [vmem:[%s0 + $0xd0] sm:$0xf]
  %v67 = vld [vmem:[%s0 + $0xd4] sm:$0xf]
  %v68 = vld [vmem:[%s0 + $0xd8] sm:$0xf]
  %v69 = vld [vmem:[%s0 + $0xdc] sm:$0xf]
  %v70 = vld [vmem:[%s0 + $0xe0] sm:$0xf]
  %v71 = vld [vmem:[%s0 + $0xe4] sm:$0xf]
  %v72 = vld [vmem:[%s0 + $0xe8] sm:$0xf]
  %v73 = vld [vmem:[%s0 + $0xec] sm:$0xf]
  %v74 = vld [vmem:[%s0 + $0xf0] sm:$0xf]
  %v75 = vld [vmem:[%s0 + $0xf4] sm:$0xf]
  %v76 = vld [vmem:[%s0 + $0xf8] sm:$0xf]
  %v77 = vld [vmem:[%s0 + $0xfc] sm:$0xf]
  %v78 = vunpack.c.l.bf16 %v14
  %v79 = vunpack.c.l.bf16 %v15
  %v80 = vunpack.c.l.bf16 %v16
  %v81 = vunpack.c.l.bf16 %v17
  %v82 = vunpack.c.l.bf16 %v18
  %v83 = vunpack.c.l.bf16 %v19
  %v84 = vunpack.c.l.bf16 %v20
  %v85 = vunpack.c.l.bf16 %v21
  %v86 = vunpack.c.l.bf16 %v22
  %v87 = vunpack.c.l.bf16 %v23
  %v88 = vunpack.c.l.bf16 %v24
  %v89 = vunpack.c.l.bf16 %v25
  %v90 = vunpack.c.l.bf16 %v26
  %v91 = vunpack.c.l.bf16 %v27
  %v92 = vunpack.c.l.bf16 %v28
  %v93 = vunpack.c.l.bf16 %v29
  %v94 = vunpack.c.l.bf16 %v30
  %v95 = vunpack.c.l.bf16 %v31
  %v96 = vunpack.c.l.bf16 %v32
  %v97 = vunpack.c.l.bf16 %v33
  %v98 = vunpack.c.l.bf16 %v34
  %v99 = vunpack.c.l.bf16 %v35
  %v100 = vunpack.c.l.bf16 %v36
  %v101 = vunpack.c.l.bf16 %v37
  %v102 = vunpack.c.l.bf16 %v38
  %v103 = vunpack.c.l.bf16 %v39
  %v104 = vunpack.c.l.bf16 %v40
  %v105 = vunpack.c.l.bf16 %v41
  %v106 = vunpack.c.l.bf16 %v42
  %v107 = vunpack.c.l.bf16 %v43
  %v108 = vunpack.c.l.bf16 %v44
  %v109 = vunpack.c.l.bf16 %v45
  %v110 = vunpack.c.l.bf16 %v46
  %v111 = vunpack.c.l.bf16 %v47
  %v112 = vunpack.c.l.bf16 %v48
  %v113 = vunpack.c.l.bf16 %v49
  %v114 = vunpack.c.l.bf16 %v50
  %v115 = vunpack.c.l.bf16 %v51
  %v116 = vunpack.c.l.bf16 %v52
  %v117 = vunpack.c.l.bf16 %v53
  %v118 = vunpack.c.l.bf16 %v54
  %v119 = vunpack.c.l.bf16 %v55
  %v120 = vunpack.c.l.bf16 %v56
  %v121 = vunpack.c.l.bf16 %v57
  %v122 = vunpack.c.l.bf16 %v58
  %v123 = vunpack.c.l.bf16 %v59
  %v124 = vunpack.c.l.bf16 %v60
  %v125 = vunpack.c.l.bf16 %v61
  %v126 = vunpack.c.l.bf16 %v62
  %v127 = vunpack.c.l.bf16 %v63
  %v128 = vunpack.c.l.bf16 %v64
  %v129 = vunpack.c.l.bf16 %v65
  %v130 = vunpack.c.l.bf16 %v66
  %v131 = vunpack.c.l.bf16 %v67
  %v132 = vunpack.c.l.bf16 %v68
  %v133 = vunpack.c.l.bf16 %v69
  %v134 = vunpack.c.l.bf16 %v70
  %v135 = vunpack.c.l.bf16 %v71
  %v136 = vunpack.c.l.bf16 %v72
  %v137 = vunpack.c.l.bf16 %v73
  %v138 = vunpack.c.l.bf16 %v74
  %v139 = vunpack.c.l.bf16 %v75
  %v140 = vunpack.c.l.bf16 %v76
  %v141 = vunpack.c.l.bf16 %v77
  %v142 = vld [vmem:[%s1] sm:$0x1]
  %v144 = vlaneseq
  %v145 = vshrl.u32 %v144, 7
  %v146 = vsub.s32 0, %v145
  %v147 = vrot.slane %v142, %v146
  %v149 = vmul.f32 %v78, %v147
  %v150 = vmul.f32 %v79, %v147
  %v151 = vmul.f32 %v80, %v147
  %v152 = vmul.f32 %v81, %v147
  %v153 = vmul.f32 %v82, %v147
  %v154 = vmul.f32 %v83, %v147
  %v155 = vmul.f32 %v84, %v147
  %v156 = vmul.f32 %v85, %v147
  %v157 = vmul.f32 %v86, %v147
  %v158 = vmul.f32 %v87, %v147
  %v159 = vmul.f32 %v88, %v147
  %v160 = vmul.f32 %v89, %v147
  %v161 = vmul.f32 %v90, %v147
  %v162 = vmul.f32 %v91, %v147
  %v163 = vmul.f32 %v92, %v147
  %v164 = vmul.f32 %v93, %v147
  %v165 = vmul.f32 %v94, %v147
  %v166 = vmul.f32 %v95, %v147
  %v167 = vmul.f32 %v96, %v147
  %v168 = vmul.f32 %v97, %v147
  %v169 = vmul.f32 %v98, %v147
  %v170 = vmul.f32 %v99, %v147
  %v171 = vmul.f32 %v100, %v147
  %v172 = vmul.f32 %v101, %v147
  %v173 = vmul.f32 %v102, %v147
  %v174 = vmul.f32 %v103, %v147
  %v175 = vmul.f32 %v104, %v147
  %v176 = vmul.f32 %v105, %v147
  %v177 = vmul.f32 %v106, %v147
  %v178 = vmul.f32 %v107, %v147
  %v179 = vmul.f32 %v108, %v147
  %v180 = vmul.f32 %v109, %v147
  %v181 = vmul.f32 %v110, %v147
  %v182 = vmul.f32 %v111, %v147
  %v183 = vmul.f32 %v112, %v147
  %v184 = vmul.f32 %v113, %v147
  %v185 = vmul.f32 %v114, %v147
  %v186 = vmul.f32 %v115, %v147
  %v187 = vmul.f32 %v116, %v147
  %v188 = vmul.f32 %v117, %v147
  %v189 = vmul.f32 %v118, %v147
  %v190 = vmul.f32 %v119, %v147
  %v191 = vmul.f32 %v120, %v147
  %v192 = vmul.f32 %v121, %v147
  %v193 = vmul.f32 %v122, %v147
  %v194 = vmul.f32 %v123, %v147
  %v195 = vmul.f32 %v124, %v147
  %v196 = vmul.f32 %v125, %v147
  %v197 = vmul.f32 %v126, %v147
  %v198 = vmul.f32 %v127, %v147
  %v199 = vmul.f32 %v128, %v147
  %v200 = vmul.f32 %v129, %v147
  %v201 = vmul.f32 %v130, %v147
  %v202 = vmul.f32 %v131, %v147
  %v203 = vmul.f32 %v132, %v147
  %v204 = vmul.f32 %v133, %v147
  %v205 = vmul.f32 %v134, %v147
  %v206 = vmul.f32 %v135, %v147
  %v207 = vmul.f32 %v136, %v147
  %v208 = vmul.f32 %v137, %v147
  %v209 = vmul.f32 %v138, %v147
  %v210 = vmul.f32 %v139, %v147
  %v211 = vmul.f32 %v140, %v147
  %v212 = vmul.f32 %v141, %v147
  %v213 = vld [vmem:[%s2] sm:$0x1]
  %v215 = vlaneseq
  %v216 = vshrl.u32 %v215, 7
  %v217 = vsub.s32 0, %v216
  %v218 = vrot.slane %v213, %v217
  %v220 = vadd.f32 %v149, %v218
  %v221 = vadd.f32 %v150, %v218
  %v222 = vadd.f32 %v151, %v218
  %v223 = vadd.f32 %v152, %v218
  %v224 = vadd.f32 %v153, %v218
  %v225 = vadd.f32 %v154, %v218
  %v226 = vadd.f32 %v155, %v218
  %v227 = vadd.f32 %v156, %v218
  %v228 = vadd.f32 %v157, %v218
  %v229 = vadd.f32 %v158, %v218
  %v230 = vadd.f32 %v159, %v218
  %v231 = vadd.f32 %v160, %v218
  %v232 = vadd.f32 %v161, %v218
  %v233 = vadd.f32 %v162, %v218
  %v234 = vadd.f32 %v163, %v218
  %v235 = vadd.f32 %v164, %v218
  %v236 = vadd.f32 %v165, %v218
  %v237 = vadd.f32 %v166, %v218
  %v238 = vadd.f32 %v167, %v218
  %v239 = vadd.f32 %v168, %v218
  %v240 = vadd.f32 %v169, %v218
  %v241 = vadd.f32 %v170, %v218
  %v242 = vadd.f32 %v171, %v218
  %v243 = vadd.f32 %v172, %v218
  %v244 = vadd.f32 %v173, %v218
  %v245 = vadd.f32 %v174, %v218
  %v246 = vadd.f32 %v175, %v218
  %v247 = vadd.f32 %v176, %v218
  %v248 = vadd.f32 %v177, %v218
  %v249 = vadd.f32 %v178, %v218
  %v250 = vadd.f32 %v179, %v218
  %v251 = vadd.f32 %v180, %v218
  %v252 = vadd.f32 %v181, %v218
  %v253 = vadd.f32 %v182, %v218
  %v254 = vadd.f32 %v183, %v218
  %v255 = vadd.f32 %v184, %v218
  %v256 = vadd.f32 %v185, %v218
  %v257 = vadd.f32 %v186, %v218
  %v258 = vadd.f32 %v187, %v218
  %v259 = vadd.f32 %v188, %v218
  %v260 = vadd.f32 %v189, %v218
  %v261 = vadd.f32 %v190, %v218
  %v262 = vadd.f32 %v191, %v218
  %v263 = vadd.f32 %v192, %v218
  %v264 = vadd.f32 %v193, %v218
  %v265 = vadd.f32 %v194, %v218
  %v266 = vadd.f32 %v195, %v218
  %v267 = vadd.f32 %v196, %v218
  %v268 = vadd.f32 %v197, %v218
  %v269 = vadd.f32 %v198, %v218
  %v270 = vadd.f32 %v199, %v218
  %v271 = vadd.f32 %v200, %v218
  %v272 = vadd.f32 %v201, %v218
  %v273 = vadd.f32 %v202, %v218
  %v274 = vadd.f32 %v203, %v218
  %v275 = vadd.f32 %v204, %v218
  %v276 = vadd.f32 %v205, %v218
  %v277 = vadd.f32 %v206, %v218
  %v278 = vadd.f32 %v207, %v218
  %v279 = vadd.f32 %v208, %v218
  %v280 = vadd.f32 %v209, %v218
  %v281 = vadd.f32 %v210, %v218
  %v282 = vadd.f32 %v211, %v218
  %v283 = vadd.f32 %v212, %v218
  %vm284 = vcmp.ge.f32.partialorder %v220, 0.0
  %vm285 = vcmp.ge.f32.partialorder %v221, 0.0
  %vm286 = vcmp.ge.f32.partialorder %v222, 0.0
  %vm287 = vcmp.ge.f32.partialorder %v223, 0.0
  %vm288 = vcmp.ge.f32.partialorder %v224, 0.0
  %vm289 = vcmp.ge.f32.partialorder %v225, 0.0
  %vm290 = vcmp.ge.f32.partialorder %v226, 0.0
  %vm291 = vcmp.ge.f32.partialorder %v227, 0.0
  %vm292 = vcmp.ge.f32.partialorder %v228, 0.0
  %vm293 = vcmp.ge.f32.partialorder %v229, 0.0
  %vm294 = vcmp.ge.f32.partialorder %v230, 0.0
  %vm295 = vcmp.ge.f32.partialorder %v231, 0.0
  %vm296 = vcmp.ge.f32.partialorder %v232, 0.0
  %vm297 = vcmp.ge.f32.partialorder %v233, 0.0
  %vm298 = vcmp.ge.f32.partialorder %v234, 0.0
  %vm299 = vcmp.ge.f32.partialorder %v235, 0.0
  %vm300 = vcmp.ge.f32.partialorder %v236, 0.0
  %vm301 = vcmp.ge.f32.partialorder %v237, 0.0
  %vm302 = vcmp.ge.f32.partialorder %v238, 0.0
  %vm303 = vcmp.ge.f32.partialorder %v239, 0.0
  %vm304 = vcmp.ge.f32.partialorder %v240, 0.0
  %vm305 = vcmp.ge.f32.partialorder %v241, 0.0
  %vm306 = vcmp.ge.f32.partialorder %v242, 0.0
  %vm307 = vcmp.ge.f32.partialorder %v243, 0.0
  %vm308 = vcmp.ge.f32.partialorder %v244, 0.0
  %vm309 = vcmp.ge.f32.partialorder %v245, 0.0
  %vm310 = vcmp.ge.f32.partialorder %v246, 0.0
  %vm311 = vcmp.ge.f32.partialorder %v247, 0.0
  %vm312 = vcmp.ge.f32.partialorder %v248, 0.0
  %vm313 = vcmp.ge.f32.partialorder %v249, 0.0
  %vm314 = vcmp.ge.f32.partialorder %v250, 0.0
  %vm315 = vcmp.ge.f32.partialorder %v251, 0.0
  %vm316 = vcmp.ge.f32.partialorder %v252, 0.0
  %vm317 = vcmp.ge.f32.partialorder %v253, 0.0
  %vm318 = vcmp.ge.f32.partialorder %v254, 0.0
  %vm319 = vcmp.ge.f32.partialorder %v255, 0.0
  %vm320 = vcmp.ge.f32.partialorder %v256, 0.0
  %vm321 = vcmp.ge.f32.partialorder %v257, 0.0
  %vm322 = vcmp.ge.f32.partialorder %v258, 0.0
  %vm323 = vcmp.ge.f32.partialorder %v259, 0.0
  %vm324 = vcmp.ge.f32.partialorder %v260, 0.0
  %vm325 = vcmp.ge.f32.partialorder %v261, 0.0
  %vm326 = vcmp.ge.f32.partialorder %v262, 0.0
  %vm327 = vcmp.ge.f32.partialorder %v263, 0.0
  %vm328 = vcmp.ge.f32.partialorder %v264, 0.0
  %vm329 = vcmp.ge.f32.partialorder %v265, 0.0
  %vm330 = vcmp.ge.f32.partialorder %v266, 0.0
  %vm331 = vcmp.ge.f32.partialorder %v267, 0.0
  %vm332 = vcmp.ge.f32.partialorder %v268, 0.0
  %vm333 = vcmp.ge.f32.partialorder %v269, 0.0
  %vm334 = vcmp.ge.f32.partialorder %v270, 0.0
  %vm335 = vcmp.ge.f32.partialorder %v271, 0.0
  %vm336 = vcmp.ge.f32.partialorder %v272, 0.0
  %vm337 = vcmp.ge.f32.partialorder %v273, 0.0
  %vm338 = vcmp.ge.f32.partialorder %v274, 0.0
  %vm339 = vcmp.ge.f32.partialorder %v275, 0.0
  %vm340 = vcmp.ge.f32.partialorder %v276, 0.0
  %vm341 = vcmp.ge.f32.partialorder %v277, 0.0
  %vm342 = vcmp.ge.f32.partialorder %v278, 0.0
  %vm343 = vcmp.ge.f32.partialorder %v279, 0.0
  %vm344 = vcmp.ge.f32.partialorder %v280, 0.0
  %vm345 = vcmp.ge.f32.partialorder %v281, 0.0
  %vm346 = vcmp.ge.f32.partialorder %v282, 0.0
  %vm347 = vcmp.ge.f32.partialorder %v283, 0.0
  %v348 = vmul.f32 %v220, 0.01
  %v349 = vmul.f32 %v221, 0.01
  %v350 = vmul.f32 %v222, 0.01
  %v351 = vmul.f32 %v223, 0.01
  %v352 = vmul.f32 %v224, 0.01
  %v353 = vmul.f32 %v225, 0.01
  %v354 = vmul.f32 %v226, 0.01
  %v355 = vmul.f32 %v227, 0.01
  %v356 = vmul.f32 %v228, 0.01
  %v357 = vmul.f32 %v229, 0.01
  %v358 = vmul.f32 %v230, 0.01
  %v359 = vmul.f32 %v231, 0.01
  %v360 = vmul.f32 %v232, 0.01
  %v361 = vmul.f32 %v233, 0.01
  %v362 = vmul.f32 %v234, 0.01
  %v363 = vmul.f32 %v235, 0.01
  %v364 = vmul.f32 %v236, 0.01
  %v365 = vmul.f32 %v237, 0.01
  %v366 = vmul.f32 %v238, 0.01
  %v367 = vmul.f32 %v239, 0.01
  %v368 = vmul.f32 %v240, 0.01
  %v369 = vmul.f32 %v241, 0.01
  %v370 = vmul.f32 %v242, 0.01
  %v371 = vmul.f32 %v243, 0.01
  %v372 = vmul.f32 %v244, 0.01
  %v373 = vmul.f32 %v245, 0.01
  %v374 = vmul.f32 %v246, 0.01
  %v375 = vmul.f32 %v247, 0.01
  %v376 = vmul.f32 %v248, 0.01
  %v377 = vmul.f32 %v249, 0.01
  %v378 = vmul.f32 %v250, 0.01
  %v379 = vmul.f32 %v251, 0.01
  %v380 = vmul.f32 %v252, 0.01
  %v381 = vmul.f32 %v253, 0.01
  %v382 = vmul.f32 %v254, 0.01
  %v383 = vmul.f32 %v255, 0.01
  %v384 = vmul.f32 %v256, 0.01
  %v385 = vmul.f32 %v257, 0.01
  %v386 = vmul.f32 %v258, 0.01
  %v387 = vmul.f32 %v259, 0.01
  %v388 = vmul.f32 %v260, 0.01
  %v389 = vmul.f32 %v261, 0.01
  %v390 = vmul.f32 %v262, 0.01
  %v391 = vmul.f32 %v263, 0.01
  %v392 = vmul.f32 %v264, 0.01
  %v393 = vmul.f32 %v265, 0.01
  %v394 = vmul.f32 %v266, 0.01
  %v395 = vmul.f32 %v267, 0.01
  %v396 = vmul.f32 %v268, 0.01
  %v397 = vmul.f32 %v269, 0.01
  %v398 = vmul.f32 %v270, 0.01
  %v399 = vmul.f32 %v271, 0.01
  %v400 = vmul.f32 %v272, 0.01
  %v401 = vmul.f32 %v273, 0.01
  %v402 = vmul.f32 %v274, 0.01
  %v403 = vmul.f32 %v275, 0.01
  %v404 = vmul.f32 %v276, 0.01
  %v405 = vmul.f32 %v277, 0.01
  %v406 = vmul.f32 %v278, 0.01
  %v407 = vmul.f32 %v279, 0.01
  %v408 = vmul.f32 %v280, 0.01
  %v409 = vmul.f32 %v281, 0.01
  %v410 = vmul.f32 %v282, 0.01
  %v411 = vmul.f32 %v283, 0.01
  %v412 = vsel %vm284, %v220, %v348
  %v413 = vsel %vm285, %v221, %v349
  %v414 = vsel %vm286, %v222, %v350
  %v415 = vsel %vm287, %v223, %v351
  %v416 = vsel %vm288, %v224, %v352
  %v417 = vsel %vm289, %v225, %v353
  %v418 = vsel %vm290, %v226, %v354
  %v419 = vsel %vm291, %v227, %v355
  %v420 = vsel %vm292, %v228, %v356
  %v421 = vsel %vm293, %v229, %v357
  %v422 = vsel %vm294, %v230, %v358
  %v423 = vsel %vm295, %v231, %v359
  %v424 = vsel %vm296, %v232, %v360
  %v425 = vsel %vm297, %v233, %v361
  %v426 = vsel %vm298, %v234, %v362
  %v427 = vsel %vm299, %v235, %v363
  %v428 = vsel %vm300, %v236, %v364
  %v429 = vsel %vm301, %v237, %v365
  %v430 = vsel %vm302, %v238, %v366
  %v431 = vsel %vm303, %v239, %v367
  %v432 = vsel %vm304, %v240, %v368
  %v433 = vsel %vm305, %v241, %v369
  %v434 = vsel %vm306, %v242, %v370
  %v435 = vsel %vm307, %v243, %v371
  %v436 = vsel %vm308, %v244, %v372
  %v437 = vsel %vm309, %v245, %v373
  %v438 = vsel %vm310, %v246, %v374
  %v439 = vsel %vm311, %v247, %v375
  %v440 = vsel %vm312, %v248, %v376
  %v441 = vsel %vm313, %v249, %v377
  %v442 = vsel %vm314, %v250, %v378
  %v443 = vsel %vm315, %v251, %v379
  %v444 = vsel %vm316, %v252, %v380
  %v445 = vsel %vm317, %v253, %v381
  %v446 = vsel %vm318, %v254, %v382
  %v447 = vsel %vm319, %v255, %v383
  %v448 = vsel %vm320, %v256, %v384
  %v449 = vsel %vm321, %v257, %v385
  %v450 = vsel %vm322, %v258, %v386
  %v451 = vsel %vm323, %v259, %v387
  %v452 = vsel %vm324, %v260, %v388
  %v453 = vsel %vm325, %v261, %v389
  %v454 = vsel %vm326, %v262, %v390
  %v455 = vsel %vm327, %v263, %v391
  %v456 = vsel %vm328, %v264, %v392
  %v457 = vsel %vm329, %v265, %v393
  %v458 = vsel %vm330, %v266, %v394
  %v459 = vsel %vm331, %v267, %v395
  %v460 = vsel %vm332, %v268, %v396
  %v461 = vsel %vm333, %v269, %v397
  %v462 = vsel %vm334, %v270, %v398
  %v463 = vsel %vm335, %v271, %v399
  %v464 = vsel %vm336, %v272, %v400
  %v465 = vsel %vm337, %v273, %v401
  %v466 = vsel %vm338, %v274, %v402
  %v467 = vsel %vm339, %v275, %v403
  %v468 = vsel %vm340, %v276, %v404
  %v469 = vsel %vm341, %v277, %v405
  %v470 = vsel %vm342, %v278, %v406
  %v471 = vsel %vm343, %v279, %v407
  %v472 = vsel %vm344, %v280, %v408
  %v473 = vsel %vm345, %v281, %v409
  %v474 = vsel %vm346, %v282, %v410
  %v475 = vsel %vm347, %v283, %v411
  %476 = vst [vmem:[%s3] sm:$0xff] %v412
  %477 = vst [vmem:[%s3 + $0x8] sm:$0xff] %v413
  %478 = vst [vmem:[%s3 + $0x10] sm:$0xff] %v414
  %479 = vst [vmem:[%s3 + $0x18] sm:$0xff] %v415
  %480 = vst [vmem:[%s3 + $0x20] sm:$0xff] %v416
  %481 = vst [vmem:[%s3 + $0x28] sm:$0xff] %v417
  %482 = vst [vmem:[%s3 + $0x30] sm:$0xff] %v418
  %483 = vst [vmem:[%s3 + $0x38] sm:$0xff] %v419
  %484 = vst [vmem:[%s3 + $0x40] sm:$0xff] %v420
  %485 = vst [vmem:[%s3 + $0x48] sm:$0xff] %v421
  %486 = vst [vmem:[%s3 + $0x50] sm:$0xff] %v422
  %487 = vst [vmem:[%s3 + $0x58] sm:$0xff] %v423
  %488 = vst [vmem:[%s3 + $0x60] sm:$0xff] %v424
  %489 = vst [vmem:[%s3 + $0x68] sm:$0xff] %v425
  %490 = vst [vmem:[%s3 + $0x70] sm:$0xff] %v426
  %491 = vst [vmem:[%s3 + $0x78] sm:$0xff] %v427
  %492 = vst [vmem:[%s3 + $0x80] sm:$0xff] %v428
  %493 = vst [vmem:[%s3 + $0x88] sm:$0xff] %v429
  %494 = vst [vmem:[%s3 + $0x90] sm:$0xff] %v430
  %495 = vst [vmem:[%s3 + $0x98] sm:$0xff] %v431
  %496 = vst [vmem:[%s3 + $0xa0] sm:$0xff] %v432
  %497 = vst [vmem:[%s3 + $0xa8] sm:$0xff] %v433
  %498 = vst [vmem:[%s3 + $0xb0] sm:$0xff] %v434
  %499 = vst [vmem:[%s3 + $0xb8] sm:$0xff] %v435
  %500 = vst [vmem:[%s3 + $0xc0] sm:$0xff] %v436
  %501 = vst [vmem:[%s3 + $0xc8] sm:$0xff] %v437
  %502 = vst [vmem:[%s3 + $0xd0] sm:$0xff] %v438
  %503 = vst [vmem:[%s3 + $0xd8] sm:$0xff] %v439
  %504 = vst [vmem:[%s3 + $0xe0] sm:$0xff] %v440
  %505 = vst [vmem:[%s3 + $0xe8] sm:$0xff] %v441
  %506 = vst [vmem:[%s3 + $0xf0] sm:$0xff] %v442
  %507 = vst [vmem:[%s3 + $0xf8] sm:$0xff] %v443
  %508 = vst [vmem:[%s3 + $0x100] sm:$0xff] %v444
  %509 = vst [vmem:[%s3 + $0x108] sm:$0xff] %v445
  %510 = vst [vmem:[%s3 + $0x110] sm:$0xff] %v446
  %511 = vst [vmem:[%s3 + $0x118] sm:$0xff] %v447
  %512 = vst [vmem:[%s3 + $0x120] sm:$0xff] %v448
  %513 = vst [vmem:[%s3 + $0x128] sm:$0xff] %v449
  %514 = vst [vmem:[%s3 + $0x130] sm:$0xff] %v450
  %515 = vst [vmem:[%s3 + $0x138] sm:$0xff] %v451
  %516 = vst [vmem:[%s3 + $0x140] sm:$0xff] %v452
  %517 = vst [vmem:[%s3 + $0x148] sm:$0xff] %v453
  %518 = vst [vmem:[%s3 + $0x150] sm:$0xff] %v454
  %519 = vst [vmem:[%s3 + $0x158] sm:$0xff] %v455
  %520 = vst [vmem:[%s3 + $0x160] sm:$0xff] %v456
  %521 = vst [vmem:[%s3 + $0x168] sm:$0xff] %v457
  %522 = vst [vmem:[%s3 + $0x170] sm:$0xff] %v458
  %523 = vst [vmem:[%s3 + $0x178] sm:$0xff] %v459
  %524 = vst [vmem:[%s3 + $0x180] sm:$0xff] %v460
  %525 = vst [vmem:[%s3 + $0x188] sm:$0xff] %v461
  %526 = vst [vmem:[%s3 + $0x190] sm:$0xff] %v462
  %527 = vst [vmem:[%s3 + $0x198] sm:$0xff] %v463
  %528 = vst [vmem:[%s3 + $0x1a0] sm:$0xff] %v464
  %529 = vst [vmem:[%s3 + $0x1a8] sm:$0xff] %v465
  %530 = vst [vmem:[%s3 + $0x1b0] sm:$0xff] %v466
  %531 = vst [vmem:[%s3 + $0x1b8] sm:$0xff] %v467
  %532 = vst [vmem:[%s3 + $0x1c0] sm:$0xff] %v468
  %533 = vst [vmem:[%s3 + $0x1c8] sm:$0xff] %v469
  %534 = vst [vmem:[%s3 + $0x1d0] sm:$0xff] %v470
  %535 = vst [vmem:[%s3 + $0x1d8] sm:$0xff] %v471
  %536 = vst [vmem:[%s3 + $0x1e0] sm:$0xff] %v472
  %537 = vst [vmem:[%s3 + $0x1e8] sm:$0xff] %v473
  %538 = vst [vmem:[%s3 + $0x1f0] sm:$0xff] %v474
  %539 = vst [vmem:[%s3 + $0x1f8] sm:$0xff] %v475
  // Predicated region
  $region14: #{conv_block_forward.5} parent=0 // pred_check
    _
  $region15: #{conv_block_forward.5} parent=0 // pred_check_branch
    %541 = sbr.rel (0) target = $region17
  $region16: #{conv_block_forward.5} parent=0 // pred_region
    _
  $region17: #{conv_block_forward.5} parent=0 // pred_fallthru
    _
  // Predicated region
  $region18: #{conv_block_forward.5} parent=0 // pred_check
    _
  $region19: #{conv_block_forward.5} parent=0 // pred_check_branch
    %543 = sbr.rel (0) target = $region21
  $region20: #{conv_block_forward.5} parent=0 // pred_region
    _
  $region21: #{conv_block_forward.5} parent=0 // pred_fallthru
    _

// kernel: conv_block_forward.3
$region0: #{conv_block_forward.3}
  #allocation0 [shape = 'u32[]', space=smem, size = 0x4, offset = 0x4, fixed_abs, tag = 'smem constant byte address 0x4 - core index']
  #allocation1 [shape = 'u32[144,128]{1,0:T(1,128)}', space=vmem, size = 0x12000, scoped, tag = 'internal scratch']
  %s0 = inlined_call_operand.vmem [shape: bf16[2,16,16,4], index: 0, kind: input, shape index: {}]
  %s1 = inlined_call_operand.vmem [shape: bf16[36,128], index: 1, kind: input, shape index: {}]
  %s2 = inlined_call_operand.vmem [shape: bf16[2,16,16,128], index: 2, kind: output, shape index: {0}]
  %s3 = inlined_call_operand.vmem [shape: f32[2,1,2,128], index: 3, kind: output, shape index: {1}]
  %4 = xla_tuple %s2, %s3
  %s5 = sld [smem:[#allocation0]]
  $region49: #{conv_block_forward.3} parent=0
    _
  %s7 = ssub.s32 1, %s5
  %s8 = scalar_select 0, %s7, %s5
  loop: start=0, step=1, limit=4
  $region2: #{conv_block_forward.3} parent=0 // loop_pre_header
    _
  $region3: #{conv_block_forward.3} parent=0 // loop_header
    %s10 = sphi 0, %s14
    %p11 = scmp.ge.s32.totalorder %s10, 4
    %s17 = sphi 0, %s29
    %s18 = sphi 0, %s25
    %s19 = sphi 0, %s17
    %s20 = sphi 0, %s18
    %s21 = sphi 0, %s19
    %s22 = sphi 0, %s20
    %s32 = sphi 0, %s34
    %s35 = sphi 0, %s32
    %s36 = sphi 0, %s35
    %s52 = sphi 0, %s36
    %s56 = sphi 0, %s56
    %s58 = sphi 0, %s56
    %s59 = sphi 0, %s58
    %s73 = sphi 0, %s59
    %s81 = sphi 0, %s83
    %s84 = sphi 0, %s81
    %s85 = sphi 0, %s84
    %s101 = sphi 0, %s85
    %s109 = sphi 0, %s111
    %s112 = sphi 0, %s109
    %s113 = sphi 0, %s112
    %s129 = sphi 0, %s113
  $region4: #{conv_block_forward.3} parent=0 // loop_header_branch
    %13 = sbr.rel (%p11) target = $region8
  $region5: #{conv_block_forward.3} parent=0 // loop_body
    %s15 = ssub.s32 %s10, 1
    %s16 = ssub.s32 %s10, 2
    %s23 = sadd.s32 1, %s18
    %p24 = scmp.ge.s32.totalorder %s23, 1
    %s25 = scalar_select %p24, 0, %s23
    %s26 = sadd.s32 1, %s17
    %s27 = scalar_select %p24, %s26, %s17
    %p28 = scmp.ge.s32.totalorder %s27, 2
    %s29 = scalar_select %p28, 0, %s27
    %s30 = ssub.s32 %s17, %s29
    %p31 = scmp.eq.s32.totalorder %s30, 0
    %s33 = sadd.s32 %s32, 1
    %s34 = scalar_select %p31, %s32, %s33
    %p37 = pneg %p31
    %p38 = scmp.eq.s32.totalorder %s10, 1
    %p39 = por %p37, %p38
    %p40 = scmp.ne.s32.totalorder %s32, %s35
    %p41 = scmp.eq.s32.totalorder %s10, 0
    %p42 = por %p40, %p41
    %p43 = scmp.ne.s32.totalorder %s32, %s35
    %p44 = scmp.eq.s32.totalorder %s15, 1
    %p45 = por %p43, %p44
    %p46 = scmp.ne.s32.totalorder %s35, %s36
    %p47 = scmp.eq.s32.totalorder %s15, 0
    %p48 = por %p46, %p47
    %p49 = scmp.ne.s32.totalorder %s35, %s36
    %p50 = scmp.eq.s32.totalorder %s16, 1
    %p51 = por %p49, %p50
    %p53 = scmp.ne.s32.totalorder %s36, %s52
    %p54 = scmp.eq.s32.totalorder %s16, 0
    %p55 = por %p53, %p54
    %s57 = sadd.s32 %s56, 1
    %p60 = scmp.eq.s32.totalorder %s10, 1
    %p61 = scmp.ne.s32.totalorder %s56, %s58
    %p62 = scmp.eq.s32.totalorder %s10, 0
    %p63 = por %p61, %p62
    %p64 = scmp.ne.s32.totalorder %s56, %s58
    %p65 = scmp.eq.s32.totalorder %s15, 1
    %p66 = por %p64, %p65
    %p67 = scmp.ne.s32.totalorder %s58, %s59
    %p68 = scmp.eq.s32.totalorder %s15, 0
    %p69 = por %p67, %p68
    %p70 = scmp.ne.s32.totalorder %s58, %s59
    %p71 = scmp.eq.s32.totalorder %s16, 1
    %p72 = por %p70, %p71
    %p74 = scmp.ne.s32.totalorder %s59, %s73
    %p75 = scmp.eq.s32.totalorder %s16, 0
    %p76 = por %p74, %p75
    %s77 = ssub.s32 %s17, %s29
    %s78 = ssub.s32 %s18, %s25
    %s79 = sor.u32 %s77, %s78
    %p80 = scmp.eq.s32.totalorder %s79, 0
    %s82 = sadd.s32 %s81, 1
    %s83 = scalar_select %p80, %s81, %s82
    %p86 = pneg %p80
    %p87 = scmp.eq.s32.totalorder %s10, 1
    %p88 = por %p86, %p87
    %p89 = scmp.ne.s32.totalorder %s81, %s84
    %p90 = scmp.eq.s32.totalorder %s10, 0
    %p91 = por %p89, %p90
    %p92 = scmp.ne.s32.totalorder %s81, %s84
    %p93 = scmp.eq.s32.totalorder %s15, 1
    %p94 = por %p92, %p93
    %p95 = scmp.ne.s32.totalorder %s84, %s85
    %p96 = scmp.eq.s32.totalorder %s15, 0
    %p97 = por %p95, %p96
    %p98 = scmp.ne.s32.totalorder %s84, %s85
    %p99 = scmp.eq.s32.totalorder %s16, 1
    %p100 = por %p98, %p99
    %p102 = scmp.ne.s32.totalorder %s85, %s101
    %p103 = scmp.eq.s32.totalorder %s16, 0
    %p104 = por %p102, %p103
    %s105 = ssub.s32 %s17, %s29
    %s106 = ssub.s32 %s18, %s25
    %s107 = sor.u32 %s105, %s106
    %p108 = scmp.eq.s32.totalorder %s107, 0
    %s110 = sadd.s32 %s109, 1
    %s111 = scalar_select %p108, %s109, %s110
    %p114 = pneg %p108
    %p115 = scmp.eq.s32.totalorder %s10, 1
    %p116 = por %p114, %p115
    %p117 = scmp.ne.s32.totalorder %s109, %s112
    %p118 = scmp.eq.s32.totalorder %s10, 0
    %p119 = por %p117, %p118
    %p120 = scmp.ne.s32.totalorder %s109, %s112
    %p121 = scmp.eq.s32.totalorder %s15, 1
    %p122 = por %p120, %p121
    %p123 = scmp.ne.s32.totalorder %s112, %s113
    %p124 = scmp.eq.s32.totalorder %s15, 0
    %p125 = por %p123, %p124
    %p126 = scmp.ne.s32.totalorder %s112, %s113
    %p127 = scmp.eq.s32.totalorder %s16, 1
    %p128 = por %p126, %p127
    %p130 = scmp.ne.s32.totalorder %s113, %s129
    %p131 = scmp.eq.s32.totalorder %s16, 0
    %p132 = por %p130, %p131
    %p133 = scmp.le.s32.totalorder 1, %s10
    %p134 = scmp.lt.s32.totalorder %s10, 3
    %p135 = pnand %p133, %p134
    %p136 = pneg %p135
    // Predicated region
    $region9: #{conv_block_forward.3} parent=5 // pred_check
      _
    $region10: #{conv_block_forward.3} parent=5 // pred_check_branch
      %138 = sbr.rel (%p135) target = $region12
    $region11: #{conv_block_forward.3} parent=5 // pred_region
      %s139 = ssub.s32 %s10, 1
      // Predicated region
      $region13: #{conv_block_forward.3} parent=11 // pred_check
        %p140 = pneg %p69
      $region14: #{conv_block_forward.3} parent=11 // pred_check_branch
        %142 = sbr.rel (%p140) target = $region16
      $region15: #{conv_block_forward.3} parent=11 // pred_region
        _
      $region16: #{conv_block_forward.3} parent=11 // pred_fallthru
        _
    $region12: #{conv_block_forward.3} parent=5 // pred_fallthru
      _
    %p143 = scmp.lt.s32.totalorder %s10, 2
    // Predicated region
    $region17: #{conv_block_forward.3} parent=5 // pred_check
      %p144 = pneg %p143
    $region18: #{conv_block_forward.3} parent=5 // pred_check_branch
      %146 = sbr.rel (%p144) target = $region20
    $region19: #{conv_block_forward.3} parent=5 // pred_region
      // Predicated region
      $region21: #{conv_block_forward.3} parent=19 // pred_check
        %p147 = pneg %p42
      $region22: #{conv_block_forward.3} parent=19 // pred_check_branch
        %149 = sbr.rel (%p147) target = $region24
      $region23: #{conv_block_forward.3} parent=19 // pred_region
        %p150 = scmp.lt.s32.totalorder %s17, 1
        %s151 = scalar_select %p150, %s17, 1
        %s152 = smul.addr %s151, 32
        %s153 = smul.addr %s152, 4
        %s154 = scalar_lea.vmem %s0, %s153
      $region24: #{conv_block_forward.3} parent=19 // pred_fallthru
        _
    $region20: #{conv_block_forward.3} parent=5 // pred_fallthru
      _
    %p155 = scmp.le.s32.totalorder 1, %s10
    %p156 = scmp.lt.s32.totalorder %s10, 3
    %p157 = pnand %p155, %p156
    %p158 = pneg %p157
    // Predicated region
    $region25: #{conv_block_forward.3} parent=5 // pred_check
      _
    $region26: #{conv_block_forward.3} parent=5 // pred_check_branch
      %160 = sbr.rel (%p157) target = $region28
    $region27: #{conv_block_forward.3} parent=5 // pred_region
      %s161 = ssub.s32 %s10, 1
      %p162 = scmp.lt.s32.totalorder %s19, 1
      %s163 = scalar_select %p162, %s19, 1
      %s164 = smul.addr %s163, 32
      %s165 = smul.addr %s164, 4
      %s166 = scalar_lea.vmem %s0, %s165
      %p167 = pneg %p48
      %p168 = pneg %p45
      %p169 = pneg %p69
      %p170 = pneg %p66
      %p171 = pneg %p97
      %p172 = pneg %p94
      %s173 = smul.u32 16, %s20
      %p174 = scmp.lt.s32.totalorder %s19, 1
      %s175 = scalar_select %p174, %s19, 1
      %p176 = scmp.lt.s32.totalorder %s173, 15
      %s177 = scalar_select %p176, %s173, 15
      %s178 = smul.addr %s177, 2
      %s179 = smul.addr %s175, 32
      %s180 = sadd.s32 %s178, %s179
      %s181 = smul.addr %s180, 4
      %s182 = scalar_lea.vmem %s2, %s181
      %p183 = pneg %p125
      %p184 = pneg %p122
      %p185 = scmp.lt.s32.totalorder %s19, 1
      %s186 = scalar_select %p185, %s19, 1
      %p187 = scmp.lt.s32.totalorder %s20, 0
      %s188 = scalar_select %p187, %s20, 0
      %s189 = sadd.s32 %s188, %s186
      %s190 = smul.addr %s189, 2
      %s191 = scalar_lea.vmem %s3, %s190
      %p192 = scmp.lt.s32.totalorder %s19, 1
      %s193 = scalar_select %p192, %s19, 1
      %s194 = smul.addr %s193, 32
      %s195 = smul.addr %s194, 4
      %s196 = scalar_lea.vmem %s0, %s195
      %s197 = smul.u32 16, %s20
      %p198 = scmp.lt.s32.totalorder %s19, 1
      %s199 = scalar_select %p198, %s19, 1
      %p200 = scmp.lt.s32.totalorder %s197, 15
      %s201 = scalar_select %p200, %s197, 15
      %s202 = smul.addr %s201, 2
      %s203 = smul.addr %s199, 32
      %s204 = sadd.s32 %s202, %s203
      %s205 = smul.addr %s204, 4
      %s206 = scalar_lea.vmem %s2, %s205
      %s207 = smul.u32 16, %s20
      %p208 = scmp.lt.s32.totalorder %s19, 1
      %s209 = scalar_select %p208, %s19, 1
      %p210 = scmp.lt.s32.totalorder %s20, 0
      %s211 = scalar_select %p210, %s20, 0
      %s212 = sadd.s32 %s211, %s209
      %s213 = smul.addr %s212, 2
      %s214 = scalar_lea.vmem %s3, %s213
      %s216 = smul.u32 %s20, 16
      %s217 = smul.u32 %s216, 2
      %s218 = smul.addr %s217, 4
      %s219 = scalar_lea.vmem %s196, %s218
      %v220 = vld [vmem:[%s219] sm:$0xf]
      %v221 = vld [vmem:[%s219 + $0x4] sm:$0xf]
      %v222 = vld [vmem:[%s219 + $0x8] sm:$0xf]
      %v223 = vld [vmem:[%s219 + $0xc] sm:$0xf]
      %v224 = vld [vmem:[%s219 + $0x10] sm:$0xf]
      %v225 = vld [vmem:[%s219 + $0x14] sm:$0xf]
      %v226 = vld [vmem:[%s219 + $0x18] sm:$0xf]
      %v227 = vld [vmem:[%s219 + $0x1c] sm:$0xf]
      %v228 = vld [vmem:[%s219 + $0x20] sm:$0xf]
      %v229 = vld [vmem:[%s219 + $0x24] sm:$0xf]
      %v230 = vld [vmem:[%s219 + $0x28] sm:$0xf]
      %v231 = vld [vmem:[%s219 + $0x2c] sm:$0xf]
      %v232 = vld [vmem:[%s219 + $0x30] sm:$0xf]
      %v233 = vld [vmem:[%s219 + $0x34] sm:$0xf]
      %v234 = vld [vmem:[%s219 + $0x38] sm:$0xf]
      %v235 = vld [vmem:[%s219 + $0x3c] sm:$0xf]
      %v236 = vld [vmem:[%s219 + $0x40] sm:$0xf]
      %v237 = vld [vmem:[%s219 + $0x44] sm:$0xf]
      %v238 = vld [vmem:[%s219 + $0x48] sm:$0xf]
      %v239 = vld [vmem:[%s219 + $0x4c] sm:$0xf]
      %v240 = vld [vmem:[%s219 + $0x50] sm:$0xf]
      %v241 = vld [vmem:[%s219 + $0x54] sm:$0xf]
      %v242 = vld [vmem:[%s219 + $0x58] sm:$0xf]
      %v243 = vld [vmem:[%s219 + $0x5c] sm:$0xf]
      %v244 = vld [vmem:[%s219 + $0x60] sm:$0xf]
      %v245 = vld [vmem:[%s219 + $0x64] sm:$0xf]
      %v246 = vld [vmem:[%s219 + $0x68] sm:$0xf]
      %v247 = vld [vmem:[%s219 + $0x6c] sm:$0xf]
      %v248 = vld [vmem:[%s219 + $0x70] sm:$0xf]
      %v249 = vld [vmem:[%s219 + $0x74] sm:$0xf]
      %v250 = vld [vmem:[%s219 + $0x78] sm:$0xf]
      %v251 = vld [vmem:[%s219 + $0x7c] sm:$0xf]
      %s252 = ssub.s32 %s216, 1
      %p253 = scmp.gt.s32.totalorder %s252, 0
      %s254 = scalar_select %p253, %s252, 0
      %s255 = smul.u32 %s254, 2
      %s256 = smul.addr %s255, 4
      %s257 = scalar_lea.vmem %s196, %s256
      %v258 = vld [vmem:[%s257] sm:$0xf]
      %v259 = vld [vmem:[%s257 + $0x4] sm:$0xf]
      %p260 = scmp.gt.s32.totalorder %s216, 0
      %s261 = scalar_select %p260, 1, 0
      %s262 = scvt.s32.f32 %s261
      %p264 = scmp.ne.f32.partialorder %s262, %s262
      %s265 = sshrl.u32 %s262, 16
      %s266 = sand.u32 %s265, 1
      %s267 = sadd.s32 32767, %s266
      %s268 = sadd.s32 %s262, %s267
      %s269 = sand.u32 %s268, 4294901760
      %s270 = scalar_select %p264, 2143289344, %s269
      %s272 = sshrl.u32 %s270, 16
      %s273 = sshll.u32 %s272, 16
      %s274 = sor.u32 %s272, %s273
      %v275 = vstv %s274
      %v277 = vmul.bf16 %v258, %v275
      %v278 = vmul.bf16 %v259, %v275
      %s279 = sadd.s32 %s216, 16
      %p280 = scmp.lt.s32.totalorder %s279, 15
      %s281 = scalar_select %p280, %s279, 15
      %s282 = smul.u32 %s281, 2
      %s283 = smul.addr %s282, 4
      %s284 = scalar_lea.vmem %s196, %s283
      %v285 = vld [vmem:[%s284] sm:$0xf]
      %v286 = vld [vmem:[%s284 + $0x4] sm:$0xf]
      %p287 = scmp.lt.s32.totalorder %s279, 16
      %s288 = scalar_select %p287, 1, 0
      %s289 = scvt.s32.f32 %s288
      %p291 = scmp.ne.f32.partialorder %s289, %s289
      %s292 = sshrl.u32 %s289, 16
      %s293 = sand.u32 %s292, 1
      %s294 = sadd.s32 32767, %s293
      %s295 = sadd.s32 %s289, %s294
      %s296 = sand.u32 %s295, 4294901760
      %s297 = scalar_select %p291, 2143289344, %s296
      %s299 = sshrl.u32 %s297, 16
      %s300 = sshll.u32 %s299, 16
      %s301 = sor.u32 %s299, %s300
      %v302 = vstv %s301
      %v304 = vmul.bf16 %v285, %v302
      %v305 = vmul.bf16 %v286, %v302
      %v342 = vunpack.c.l.b16 %v277
      %v343 = vunpack.c.l.b16 %v278
      %v344 = vunpack.c.l.b16 %v220
      %v345 = vunpack.c.l.b16 %v221
      %v346 = vunpack.c.l.b16 %v222
      %v347 = vunpack.c.l.b16 %v223
      %v348 = vunpack.c.l.b16 %v224
      %v349 = vunpack.c.l.b16 %v225
      %v350 = vunpack.c.l.b16 %v226
      %v351 = vunpack.c.l.b16 %v227
      %v352 = vunpack.c.l.b16 %v228
      %v353 = vunpack.c.l.b16 %v229
      %v354 = vunpack.c.l.b16 %v230
      %v355 = vunpack.c.l.b16 %v231
      %v356 = vunpack.c.l.b16 %v232
      %v357 = vunpack.c.l.b16 %v233
      %v358 = vunpack.c.l.b16 %v234
      %v359 = vunpack.c.l.b16 %v235
      %v360 = vunpack.c.l.b16 %v236
      %v361 = vunpack.c.l.b16 %v237
      %v362 = vunpack.c.l.b16 %v238
      %v363 = vunpack.c.l.b16 %v239
      %v364 = vunpack.c.l.b16 %v240
      %v365 = vunpack.c.l.b16 %v241
      %v366 = vunpack.c.l.b16 %v242
      %v367 = vunpack.c.l.b16 %v243
      %v368 = vunpack.c.l.b16 %v244
      %v369 = vunpack.c.l.b16 %v245
      %v370 = vunpack.c.l.b16 %v246
      %v371 = vunpack.c.l.b16 %v247
      %v372 = vunpack.c.l.b16 %v248
      %v373 = vunpack.c.l.b16 %v249
      %v374 = vunpack.c.l.b16 %v250
      %v375 = vunpack.c.l.b16 %v251
      %v376 = vunpack.c.l.b16 %v304
      %v377 = vunpack.c.l.b16 %v305
      %v378 = vpack.c.b16 %v343, %v342
      %v379 = vpack.c.b16 %v345, %v344
      %v380 = vpack.c.b16 %v347, %v346
      %v381 = vpack.c.b16 %v349, %v348
      %v382 = vpack.c.b16 %v351, %v350
      %v383 = vpack.c.b16 %v353, %v352
      %v384 = vpack.c.b16 %v355, %v354
      %v385 = vpack.c.b16 %v357, %v356
      %v386 = vpack.c.b16 %v359, %v358
      %v387 = vpack.c.b16 %v361, %v360
      %v388 = vpack.c.b16 %v363, %v362
      %v389 = vpack.c.b16 %v365, %v364
      %v390 = vpack.c.b16 %v367, %v366
      %v391 = vpack.c.b16 %v369, %v368
      %v392 = vpack.c.b16 %v371, %v370
      %v393 = vpack.c.b16 %v373, %v372
      %v394 = vpack.c.b16 %v375, %v374
      %v395 = vpack.c.b16 %v377, %v376
      %v397 = vshrl.u32 %v378, 16
      %v399 = vrot.slane %v397, 7
      %v400 = vshll.u32 %v378, 16
      %v402 = vor.u32 %v399, %v400
      %v404 = vshrl.u32 %v379, 16
      %v406 = vrot.slane %v404, 7
      %v407 = vshll.u32 %v379, 16
      %v409 = vor.u32 %v406, %v407
      %v411 = vshrl.u32 %v380, 16
      %v413 = vrot.slane %v411, 7
      %v414 = vshll.u32 %v380, 16
      %v416 = vor.u32 %v413, %v414
      %v418 = vshrl.u32 %v381, 16
      %v420 = vrot.slane %v418, 7
      %v421 = vshll.u32 %v381, 16
      %v423 = vor.u32 %v420, %v421
      %v425 = vshrl.u32 %v382, 16
      %v427 = vrot.slane %v425, 7
      %v428 = vshll.u32 %v382, 16
      %v430 = vor.u32 %v427, %v428
      %v432 = vshrl.u32 %v383, 16
      %v434 = vrot.slane %v432, 7
      %v435 = vshll.u32 %v383, 16
      %v437 = vor.u32 %v434, %v435
      %v439 = vshrl.u32 %v384, 16
      %v441 = vrot.slane %v439, 7
      %v442 = vshll.u32 %v384, 16
      %v444 = vor.u32 %v441, %v442
      %v446 = vshrl.u32 %v385, 16
      %v448 = vrot.slane %v446, 7
      %v449 = vshll.u32 %v385, 16
      %v451 = vor.u32 %v448, %v449
      %v453 = vshrl.u32 %v386, 16
      %v455 = vrot.slane %v453, 7
      %v456 = vshll.u32 %v386, 16
      %v458 = vor.u32 %v455, %v456
      %v460 = vshrl.u32 %v387, 16
      %v462 = vrot.slane %v460, 7
      %v463 = vshll.u32 %v387, 16
      %v465 = vor.u32 %v462, %v463
      %v467 = vshrl.u32 %v388, 16
      %v469 = vrot.slane %v467, 7
      %v470 = vshll.u32 %v388, 16
      %v472 = vor.u32 %v469, %v470
      %v474 = vshrl.u32 %v389, 16
      %v476 = vrot.slane %v474, 7
      %v477 = vshll.u32 %v389, 16
      %v479 = vor.u32 %v476, %v477
      %v481 = vshrl.u32 %v390, 16
      %v483 = vrot.slane %v481, 7
      %v484 = vshll.u32 %v390, 16
      %v486 = vor.u32 %v483, %v484
      %v488 = vshrl.u32 %v391, 16
      %v490 = vrot.slane %v488, 7
      %v491 = vshll.u32 %v391, 16
      %v493 = vor.u32 %v490, %v491
      %v495 = vshrl.u32 %v392, 16
      %v497 = vrot.slane %v495, 7
      %v498 = vshll.u32 %v392, 16
      %v500 = vor.u32 %v497, %v498
      %v502 = vshrl.u32 %v393, 16
      %v504 = vrot.slane %v502, 7
      %v505 = vshll.u32 %v393, 16
      %v507 = vor.u32 %v504, %v505
      %v509 = vshrl.u32 %v394, 16
      %v511 = vrot.slane %v509, 7
      %v512 = vshll.u32 %v394, 16
      %v514 = vor.u32 %v511, %v512
      %v516 = vshrl.u32 %v395, 16
      %v518 = vrot.slane %v516, 7
      %v519 = vshll.u32 %v395, 16
      %v521 = vor.u32 %v518, %v519
      %vm558 = vcmask 1040384
      %vm559 = vsmask.f32 256
      %vm560 = vmand %vm558, %vm559
      %v561 = vsel %vm560, 0, %v402
      %v562 = vsel %vm560, 0, %v409
      %v563 = vsel %vm560, 0, %v416
      %v564 = vsel %vm560, 0, %v423
      %v565 = vsel %vm560, 0, %v430
      %v566 = vsel %vm560, 0, %v437
      %v567 = vsel %vm560, 0, %v444
      %v568 = vsel %vm560, 0, %v451
      %v569 = vsel %vm560, 0, %v458
      %v570 = vsel %vm560, 0, %v465
      %v571 = vsel %vm560, 0, %v472
      %v572 = vsel %vm560, 0, %v479
      %v573 = vsel %vm560, 0, %v486
      %v574 = vsel %vm560, 0, %v493
      %v575 = vsel %vm560, 0, %v500
      %v576 = vsel %vm560, 0, %v507
      %v577 = vsel %vm560, 0, %v514
      %v578 = vsel %vm560, 0, %v521
      %v579 = vsel %vm560, %v399, 0
      %v580 = vsel %vm560, %v406, 0
      %v581 = vsel %vm560, %v413, 0
      %v582 = vsel %vm560, %v420, 0
      %v583 = vsel %vm560, %v427, 0
      %v584 = vsel %vm560, %v434, 0
      %v585 = vsel %vm560, %v441, 0
      %v586 = vsel %vm560, %v448, 0
      %v587 = vsel %vm560, %v455, 0
      %v588 = vsel %vm560, %v462, 0
      %v589 = vsel %vm560, %v469, 0
      %v590 = vsel %vm560, %v476, 0
      %v591 = vsel %vm560, %v483, 0
      %v592 = vsel %vm560, %v490, 0
      %v593 = vsel %vm560, %v497, 0
      %v594 = vsel %vm560, %v504, 0
      %v595 = vsel %vm560, %v511, 0
      %v596 = vsel %vm560, %v518, 0
      %vm597 = vsmask.f32 7424
      %v599 = vshrl.u32 %v561, 16
      %v601 = vshll.u32 %v561, 16
      %v603 = vrot.slane %v601, 1
      %v604 = vor.u32 %v599, %v603
      %v606 = vshll.u32 %v579, 16
      %v608 = vrot.slane %v606, 1
      %v609 = vsel %vm597, %v604, %v608
      %v611 = vshrl.u32 %v562, 16
      %v613 = vshll.u32 %v562, 16
      %v615 = vrot.slane %v613, 1
      %v616 = vor.u32 %v611, %v615
      %v618 = vshll.u32 %v580, 16
      %v620 = vrot.slane %v618, 1
      %v621 = vsel %vm597, %v616, %v620
      %v623 = vshrl.u32 %v563, 16
      %v625 = vshll.u32 %v563, 16
      %v627 = vrot.slane %v625, 1
      %v628 = vor.u32 %v623, %v627
      %v630 = vshll.u32 %v581, 16
      %v632 = vrot.slane %v630, 1
      %v633 = vsel %vm597, %v628, %v632
      %v635 = vshrl.u32 %v564, 16
      %v637 = vshll.u32 %v564, 16
      %v639 = vrot.slane %v637, 1
      %v640 = vor.u32 %v635, %v639
      %v642 = vshll.u32 %v582, 16
      %v644 = vrot.slane %v642, 1
      %v645 = vsel %vm597, %v640, %v644
      %v647 = vshrl.u32 %v565, 16
      %v649 = vshll.u32 %v565, 16
      %v651 = vrot.slane %v649, 1
      %v652 = vor.u32 %v647, %v651
      %v654 = vshll.u32 %v583, 16
      %v656 = vrot.slane %v654, 1
      %v657 = vsel %vm597, %v652, %v656
      %v659 = vshrl.u32 %v566, 16
      %v661 = vshll.u32 %v566, 16
      %v663 = vrot.slane %v661, 1
      %v664 = vor.u32 %v659, %v663
      %v666 = vshll.u32 %v584, 16
      %v668 = vrot.slane %v666, 1
      %v669 = vsel %vm597, %v664, %v668
      %v671 = vshrl.u32 %v567, 16
      %v673 = vshll.u32 %v567, 16
      %v675 = vrot.slane %v673, 1
      %v676 = vor.u32 %v671, %v675
      %v678 = vshll.u32 %v585, 16
      %v680 = vrot.slane %v678, 1
      %v681 = vsel %vm597, %v676, %v680
      %v683 = vshrl.u32 %v568, 16
      %v685 = vshll.u32 %v568, 16
      %v687 = vrot.slane %v685, 1
      %v688 = vor.u32 %v683, %v687
      %v690 = vshll.u32 %v586, 16
      %v692 = vrot.slane %v690, 1
      %v693 = vsel %vm597, %v688, %v692
      %v695 = vshrl.u32 %v569, 16
      %v697 = vshll.u32 %v569, 16
      %v699 = vrot.slane %v697, 1
      %v700 = vor.u32 %v695, %v699
      %v702 = vshll.u32 %v587, 16
      %v704 = vrot.slane %v702, 1
      %v705 = vsel %vm597, %v700, %v704
      %v707 = vshrl.u32 %v570, 16
      %v709 = vshll.u32 %v570, 16
      %v711 = vrot.slane %v709, 1
      %v712 = vor.u32 %v707, %v711
      %v714 = vshll.u32 %v588, 16
      %v716 = vrot.slane %v714, 1
      %v717 = vsel %vm597, %v712, %v716
      %v719 = vshrl.u32 %v571, 16
      %v721 = vshll.u32 %v571, 16
      %v723 = vrot.slane %v721, 1
      %v724 = vor.u32 %v719, %v723
      %v726 = vshll.u32 %v589, 16
      %v728 = vrot.slane %v726, 1
      %v729 = vsel %vm597, %v724, %v728
      %v731 = vshrl.u32 %v572, 16
      %v733 = vshll.u32 %v572, 16
      %v735 = vrot.slane %v733, 1
      %v736 = vor.u32 %v731, %v735
      %v738 = vshll.u32 %v590, 16
      %v740 = vrot.slane %v738, 1
      %v741 = vsel %vm597, %v736, %v740
      %v743 = vshrl.u32 %v573, 16
      %v745 = vshll.u32 %v573, 16
      %v747 = vrot.slane %v745, 1
      %v748 = vor.u32 %v743, %v747
      %v750 = vshll.u32 %v591, 16
      %v752 = vrot.slane %v750, 1
      %v753 = vsel %vm597, %v748, %v752
      %v755 = vshrl.u32 %v574, 16
      %v757 = vshll.u32 %v574, 16
      %v759 = vrot.slane %v757, 1
      %v760 = vor.u32 %v755, %v759
      %v762 = vshll.u32 %v592, 16
      %v764 = vrot.slane %v762, 1
      %v765 = vsel %vm597, %v760, %v764
      %v767 = vshrl.u32 %v575, 16
      %v769 = vshll.u32 %v575, 16
      %v771 = vrot.slane %v769, 1
      %v772 = vor.u32 %v767, %v771
      %v774 = vshll.u32 %v593, 16
      %v776 = vrot.slane %v774, 1
      %v777 = vsel %vm597, %v772, %v776
      %v779 = vshrl.u32 %v576, 16
      %v781 = vshll.u32 %v576, 16
      %v783 = vrot.slane %v781, 1
      %v784 = vor.u32 %v779, %v783
      %v786 = vshll.u32 %v594, 16
      %v788 = vrot.slane %v786, 1
      %v789 = vsel %vm597, %v784, %v788
      %vm822 = vcmask 1046528
      %v823 = vrot.slane %v561, 1
      %v824 = vrot.slane %v579, 1
      %v825 = vsel %vm822, %v823, %v824
      %v826 = vrot.slane %v562, 1
      %v827 = vrot.slane %v580, 1
      %v828 = vsel %vm822, %v826, %v827
      %v829 = vrot.slane %v563, 1
      %v830 = vrot.slane %v581, 1
      %v831 = vsel %vm822, %v829, %v830
      %v832 = vrot.slane %v564, 1
      %v833 = vrot.slane %v582, 1
      %v834 = vsel %vm822, %v832, %v833
      %v835 = vrot.slane %v565, 1
      %v836 = vrot.slane %v583, 1
      %v837 = vsel %vm822, %v835, %v836
      %v838 = vrot.slane %v566, 1
      %v839 = vrot.slane %v584, 1
      %v840 = vsel %vm822, %v838, %v839
      %v841 = vrot.slane %v567, 1
      %v842 = vrot.slane %v585, 1
      %v843 = vsel %vm822, %v841, %v842
      %v844 = vrot.slane %v568, 1
      %v845 = vrot.slane %v586, 1
      %v846 = vsel %vm822, %v844, %v845
      %v847 = vrot.slane %v569, 1
      %v848 = vrot.slane %v587, 1
      %v849 = vsel %vm822, %v847, %v848
      %v850 = vrot.slane %v570, 1
      %v851 = vrot.slane %v588, 1
      %v852 = vsel %vm822, %v850, %v851
      %v853 = vrot.slane %v571, 1
      %v854 = vrot.slane %v589, 1
      %v855 = vsel %vm822, %v853, %v854
      %v856 = vrot.slane %v572, 1
      %v857 = vrot.slane %v590, 1
      %v858 = vsel %vm822, %v856, %v857
      %v859 = vrot.slane %v573, 1
      %v860 = vrot.slane %v591, 1
      %v861 = vsel %vm822, %v859, %v860
      %v862 = vrot.slane %v574, 1
      %v863 = vrot.slane %v592, 1
      %v864 = vsel %vm822, %v862, %v863
      %v865 = vrot.slane %v575, 1
      %v866 = vrot.slane %v593, 1
      %v867 = vsel %vm822, %v865, %v866
      %v868 = vrot.slane %v576, 1
      %v869 = vrot.slane %v594, 1
      %v870 = vsel %vm822, %v868, %v869
      %v872 = vshrl.u32 %v577, 16
      %v874 = vshll.u32 %v577, 16
      %v876 = vrot.slane %v874, 1
      %v877 = vor.u32 %v872, %v876
      %v879 = vshll.u32 %v595, 16
      %v881 = vrot.slane %v879, 1
      %v882 = vsel %vm597, %v877, %v881
      %v885 = vrot.slane %v577, 1
      %v886 = vrot.slane %v595, 1
      %v887 = vsel %vm822, %v885, %v886
      %v889 = vshrl.u32 %v578, 16
      %v891 = vshll.u32 %v578, 16
      %v893 = vrot.slane %v891, 1
      %v894 = vor.u32 %v889, %v893
      %v896 = vshll.u32 %v596, 16
      %v898 = vrot.slane %v896, 1
      %v899 = vsel %vm597, %v894, %v898
      %v902 = vrot.slane %v578, 1
      %v903 = vrot.slane %v596, 1
      %v904 = vsel %vm822, %v902, %v903
      %905 = vrot.lane.b32.xlu0 %v609, 4
      %v906 = vpop.permute.xlu0 %905
      %907 = vrot.lane.b32.xlu0 %v621, 4
      %v908 = vpop.permute.xlu0 %907
      %909 = vrot.lane.b32.xlu0 %v633, 4
      %v910 = vpop.permute.xlu0 %909
      %911 = vrot.lane.b32.xlu0 %v645, 4
      %v912 = vpop.permute.xlu0 %911
      %913 = vrot.lane.b32.xlu0 %v657, 4
      %v914 = vpop.permute.xlu0 %913
      %915 = vrot.lane.b32.xlu0 %v669, 4
      %v916 = vpop.permute.xlu0 %915
      %917 = vrot.lane.b32.xlu0 %v681, 4
      %v918 = vpop.permute.xlu0 %917
      %919 = vrot.lane.b32.xlu0 %v693, 4
      %v920 = vpop.permute.xlu0 %919
      %921 = vrot.lane.b32.xlu0 %v705, 4
      %v922 = vpop.permute.xlu0 %921
      %923 = vrot.lane.b32.xlu0 %v717, 4
      %v924 = vpop.permute.xlu0 %923
      %925 = vrot.lane.b32.xlu0 %v729, 4
      %v926 = vpop.permute.xlu0 %925
      %927 = vrot.lane.b32.xlu0 %v741, 4
      %v928 = vpop.permute.xlu0 %927
      %929 = vrot.lane.b32.xlu0 %v753, 4
      %v930 = vpop.permute.xlu0 %929
      %931 = vrot.lane.b32.xlu0 %v765, 4
      %v932 = vpop.permute.xlu0 %931
      %933 = vrot.lane.b32.xlu0 %v777, 4
      %v934 = vpop.permute.xlu0 %933
      %935 = vrot.lane.b32.xlu0 %v789, 4
      %v936 = vpop.permute.xlu0 %935
      %937 = vrot.lane.b32.xlu0 %v825, 8
      %v938 = vpop.permute.xlu0 %937
      %939 = vrot.lane.b32.xlu0 %v828, 8
      %v940 = vpop.permute.xlu0 %939
      %941 = vrot.lane.b32.xlu0 %v831, 8
      %v942 = vpop.permute.xlu0 %941
      %943 = vrot.lane.b32.xlu0 %v834, 8
      %v944 = vpop.permute.xlu0 %943
      %945 = vrot.lane.b32.xlu0 %v837, 8
      %v946 = vpop.permute.xlu0 %945
      %947 = vrot.lane.b32.xlu0 %v840, 8
      %v948 = vpop.permute.xlu0 %947
      %949 = vrot.lane.b32.xlu0 %v843, 8
      %v950 = vpop.permute.xlu0 %949
      %951 = vrot.lane.b32.xlu0 %v846, 8
      %v952 = vpop.permute.xlu0 %951
      %953 = vrot.lane.b32.xlu0 %v849, 8
      %v954 = vpop.permute.xlu0 %953
      %955 = vrot.lane.b32.xlu0 %v852, 8
      %v956 = vpop.permute.xlu0 %955
      %957 = vrot.lane.b32.xlu0 %v855, 8
      %v958 = vpop.permute.xlu0 %957
      %959 = vrot.lane.b32.xlu0 %v858, 8
      %v960 = vpop.permute.xlu0 %959
      %961 = vrot.lane.b32.xlu0 %v861, 8
      %v962 = vpop.permute.xlu0 %961
      %963 = vrot.lane.b32.xlu0 %v864, 8
      %v964 = vpop.permute.xlu0 %963
      %965 = vrot.lane.b32.xlu0 %v867, 8
      %v966 = vpop.permute.xlu0 %965
      %967 = vrot.lane.b32.xlu0 %v870, 8
      %v968 = vpop.permute.xlu0 %967
      %969 = vrot.lane.b32.xlu0 %v562, 12
      %v970 = vpop.permute.xlu0 %969
      %971 = vrot.lane.b32.xlu0 %v563, 12
      %v972 = vpop.permute.xlu0 %971
      %973 = vrot.lane.b32.xlu0 %v564, 12
      %v974 = vpop.permute.xlu0 %973
      %975 = vrot.lane.b32.xlu0 %v565, 12
      %v976 = vpop.permute.xlu0 %975
      %977 = vrot.lane.b32.xlu0 %v566, 12
      %v978 = vpop.permute.xlu0 %977
      %979 = vrot.lane.b32.xlu0 %v567, 12
      %v980 = vpop.permute.xlu0 %979
      %981 = vrot.lane.b32.xlu0 %v568, 12
      %v982 = vpop.permute.xlu0 %981
      %983 = vrot.lane.b32.xlu0 %v569, 12
      %v984 = vpop.permute.xlu0 %983
      %985 = vrot.lane.b32.xlu0 %v570, 12
      %v986 = vpop.permute.xlu0 %985
      %987 = vrot.lane.b32.xlu0 %v571, 12
      %v988 = vpop.permute.xlu0 %987
      %989 = vrot.lane.b32.xlu0 %v572, 12
      %v990 = vpop.permute.xlu0 %989
      %991 = vrot.lane.b32.xlu0 %v573, 12
      %v992 = vpop.permute.xlu0 %991
      %993 = vrot.lane.b32.xlu0 %v574, 12
      %v994 = vpop.permute.xlu0 %993
      %995 = vrot.lane.b32.xlu0 %v575, 12
      %v996 = vpop.permute.xlu0 %995
      %997 = vrot.lane.b32.xlu0 %v576, 12
      %v998 = vpop.permute.xlu0 %997
      %999 = vrot.lane.b32.xlu0 %v577, 12
      %v1000 = vpop.permute.xlu0 %999
      %1001 = vrot.lane.b32.xlu0 %v621, 16
      %v1002 = vpop.permute.xlu0 %1001
      %1003 = vrot.lane.b32.xlu0 %v633, 16
      %v1004 = vpop.permute.xlu0 %1003
      %1005 = vrot.lane.b32.xlu0 %v645, 16
      %v1006 = vpop.permute.xlu0 %1005
      %1007 = vrot.lane.b32.xlu0 %v657, 16
      %v1008 = vpop.permute.xlu0 %1007
      %1009 = vrot.lane.b32.xlu0 %v669, 16
      %v1010 = vpop.permute.xlu0 %1009
      %1011 = vrot.lane.b32.xlu0 %v681, 16
      %v1012 = vpop.permute.xlu0 %1011
      %1013 = vrot.lane.b32.xlu0 %v693, 16
      %v1014 = vpop.permute.xlu0 %1013
      %1015 = vrot.lane.b32.xlu0 %v705, 16
      %v1016 = vpop.permute.xlu0 %1015
      %1017 = vrot.lane.b32.xlu0 %v717, 16
      %v1018 = vpop.permute.xlu0 %1017
      %1019 = vrot.lane.b32.xlu0 %v729, 16
      %v1020 = vpop.permute.xlu0 %1019
      %1021 = vrot.lane.b32.xlu0 %v741, 16
      %v1022 = vpop.permute.xlu0 %1021
      %1023 = vrot.lane.b32.xlu0 %v753, 16
      %v1024 = vpop.permute.xlu0 %1023
      %1025 = vrot.lane.b32.xlu0 %v765, 16
      %v1026 = vpop.permute.xlu0 %1025
      %1027 = vrot.lane.b32.xlu0 %v777, 16
      %v1028 = vpop.permute.xlu0 %1027
      %1029 = vrot.lane.b32.xlu0 %v789, 16
      %v1030 = vpop.permute.xlu0 %1029
      %1031 = vrot.lane.b32.xlu0 %v882, 16
      %v1032 = vpop.permute.xlu0 %1031
      %1033 = vrot.lane.b32.xlu0 %v828, 20
      %v1034 = vpop.permute.xlu0 %1033
      %1035 = vrot.lane.b32.xlu0 %v831, 20
      %v1036 = vpop.permute.xlu0 %1035
      %1037 = vrot.lane.b32.xlu0 %v834, 20
      %v1038 = vpop.permute.xlu0 %1037
      %1039 = vrot.lane.b32.xlu0 %v837, 20
      %v1040 = vpop.permute.xlu0 %1039
      %1041 = vrot.lane.b32.xlu0 %v840, 20
      %v1042 = vpop.permute.xlu0 %1041
      %1043 = vrot.lane.b32.xlu0 %v843, 20
      %v1044 = vpop.permute.xlu0 %1043
      %1045 = vrot.lane.b32.xlu0 %v846, 20
      %v1046 = vpop.permute.xlu0 %1045
      %1047 = vrot.lane.b32.xlu0 %v849, 20
      %v1048 = vpop.permute.xlu0 %1047
      %1049 = vrot.lane.b32.xlu0 %v852, 20
      %v1050 = vpop.permute.xlu0 %1049
      %1051 = vrot.lane.b32.xlu0 %v855, 20
      %v1052 = vpop.permute.xlu0 %1051
      %1053 = vrot.lane.b32.xlu0 %v858, 20
      %v1054 = vpop.permute.xlu0 %1053
      %1055 = vrot.lane.b32.xlu0 %v861, 20
      %v1056 = vpop.permute.xlu0 %1055
      %1057 = vrot.lane.b32.xlu0 %v864, 20
      %v1058 = vpop.permute.xlu0 %1057
      %1059 = vrot.lane.b32.xlu0 %v867, 20
      %v1060 = vpop.permute.xlu0 %1059
      %1061 = vrot.lane.b32.xlu0 %v870, 20
      %v1062 = vpop.permute.xlu0 %1061
      %1063 = vrot.lane.b32.xlu0 %v887, 20
      %v1064 = vpop.permute.xlu0 %1063
      %1065 = vrot.lane.b32.xlu0 %v563, 24
      %v1066 = vpop.permute.xlu0 %1065
      %1067 = vrot.lane.b32.xlu0 %v564, 24
      %v1068 = vpop.permute.xlu0 %1067
      %1069 = vrot.lane.b32.xlu0 %v565, 24
      %v1070 = vpop.permute.xlu0 %1069
      %1071 = vrot.lane.b32.xlu0 %v566, 24
      %v1072 = vpop.permute.xlu0 %1071
      %1073 = vrot.lane.b32.xlu0 %v567, 24
      %v1074 = vpop.permute.xlu0 %1073
      %1075 = vrot.lane.b32.xlu0 %v568, 24
      %v1076 = vpop.permute.xlu0 %1075
      %1077 = vrot.lane.b32.xlu0 %v569, 24
      %v1078 = vpop.permute.xlu0 %1077
      %1079 = vrot.lane.b32.xlu0 %v570, 24
      %v1080 = vpop.permute.xlu0 %1079
      %1081 = vrot.lane.b32.xlu0 %v571, 24
      %v1082 = vpop.permute.xlu0 %1081
      %1083 = vrot.lane.b32.xlu0 %v572, 24
      %v1084 = vpop.permute.xlu0 %1083
      %1085 = vrot.lane.b32.xlu0 %v573, 24
      %v1086 = vpop.permute.xlu0 %1085
      %1087 = vrot.lane.b32.xlu0 %v574, 24
      %v1088 = vpop.permute.xlu0 %1087
      %1089 = vrot.lane.b32.xlu0 %v575, 24
      %v1090 = vpop.permute.xlu0 %1089
      %1091 = vrot.lane.b32.xlu0 %v576, 24
      %v1092 = vpop.permute.xlu0 %1091
      %1093 = vrot.lane.b32.xlu0 %v577, 24
      %v1094 = vpop.permute.xlu0 %1093
      %1095 = vrot.lane.b32.xlu0 %v578, 24
      %v1096 = vpop.permute.xlu0 %1095
      %1097 = vrot.lane.b32.xlu0 %v633, 28
      %v1098 = vpop.permute.xlu0 %1097
      %1099 = vrot.lane.b32.xlu0 %v645, 28
      %v1100 = vpop.permute.xlu0 %1099
      %1101 = vrot.lane.b32.xlu0 %v657, 28
      %v1102 = vpop.permute.xlu0 %1101
      %1103 = vrot.lane.b32.xlu0 %v669, 28
      %v1104 = vpop.permute.xlu0 %1103
      %1105 = vrot.lane.b32.xlu0 %v681, 28
      %v1106 = vpop.permute.xlu0 %1105
      %1107 = vrot.lane.b32.xlu0 %v693, 28
      %v1108 = vpop.permute.xlu0 %1107
      %1109 = vrot.lane.b32.xlu0 %v705, 28
      %v1110 = vpop.permute.xlu0 %1109
      %1111 = vrot.lane.b32.xlu0 %v717, 28
      %v1112 = vpop.permute.xlu0 %1111
      %1113 = vrot.lane.b32.xlu0 %v729, 28
      %v1114 = vpop.permute.xlu0 %1113
      %1115 = vrot.lane.b32.xlu0 %v741, 28
      %v1116 = vpop.permute.xlu0 %1115
      %1117 = vrot.lane.b32.xlu0 %v753, 28
      %v1118 = vpop.permute.xlu0 %1117
      %1119 = vrot.lane.b32.xlu0 %v765, 28
      %v1120 = vpop.permute.xlu0 %1119
      %1121 = vrot.lane.b32.xlu0 %v777, 28
      %v1122 = vpop.permute.xlu0 %1121
      %1123 = vrot.lane.b32.xlu0 %v789, 28
      %v1124 = vpop.permute.xlu0 %1123
      %1125 = vrot.lane.b32.xlu0 %v882, 28
      %v1126 = vpop.permute.xlu0 %1125
      %1127 = vrot.lane.b32.xlu0 %v899, 28
      %v1128 = vpop.permute.xlu0 %1127
      %1129 = vrot.lane.b32.xlu0 %v831, 32
      %v1130 = vpop.permute.xlu0 %1129
      %1131 = vrot.lane.b32.xlu0 %v834, 32
      %v1132 = vpop.permute.xlu0 %1131
      %1133 = vrot.lane.b32.xlu0 %v837, 32
      %v1134 = vpop.permute.xlu0 %1133
      %1135 = vrot.lane.b32.xlu0 %v840, 32
      %v1136 = vpop.permute.xlu0 %1135
      %1137 = vrot.lane.b32.xlu0 %v843, 32
      %v1138 = vpop.permute.xlu0 %1137
      %1139 = vrot.lane.b32.xlu0 %v846, 32
      %v1140 = vpop.permute.xlu0 %1139
      %1141 = vrot.lane.b32.xlu0 %v849, 32
      %v1142 = vpop.permute.xlu0 %1141
      %1143 = vrot.lane.b32.xlu0 %v852, 32
      %v1144 = vpop.permute.xlu0 %1143
      %1145 = vrot.lane.b32.xlu0 %v855, 32
      %v1146 = vpop.permute.xlu0 %1145
      %1147 = vrot.lane.b32.xlu0 %v858, 32
      %v1148 = vpop.permute.xlu0 %1147
      %1149 = vrot.lane.b32.xlu0 %v861, 32
      %v1150 = vpop.permute.xlu0 %1149
      %1151 = vrot.lane.b32.xlu0 %v864, 32
      %v1152 = vpop.permute.xlu0 %1151
      %1153 = vrot.lane.b32.xlu0 %v867, 32
      %v1154 = vpop.permute.xlu0 %1153
      %1155 = vrot.lane.b32.xlu0 %v870, 32
      %v1156 = vpop.permute.xlu0 %1155
      %1157 = vrot.lane.b32.xlu0 %v887, 32
      %v1158 = vpop.permute.xlu0 %1157
      %1159 = vrot.lane.b32.xlu0 %v904, 32
      %v1160 = vpop.permute.xlu0 %1159
      %vm1161 = vcmask 31744
      %v1163 = vsel %vm1161, %v561, %v906
      %v1165 = vsel %vm1161, %v562, %v908
      %v1167 = vsel %vm1161, %v563, %v910
      %v1169 = vsel %vm1161, %v564, %v912
      %v1171 = vsel %vm1161, %v565, %v914
      %v1173 = vsel %vm1161, %v566, %v916
      %v1175 = vsel %vm1161, %v567, %v918
      %v1177 = vsel %vm1161, %v568, %v920
      %v1179 = vsel %vm1161, %v569, %v922
      %v1181 = vsel %vm1161, %v570, %v924
      %v1183 = vsel %vm1161, %v571, %v926
      %v1185 = vsel %vm1161, %v572, %v928
      %v1187 = vsel %vm1161, %v573, %v930
      %v1189 = vsel %vm1161, %v574, %v932
      %v1191 = vsel %vm1161, %v575, %v934
      %v1193 = vsel %vm1161, %v576, %v936
      %vm1194 = vcmask 64512
      %v1196 = vsel %vm1194, %v1163, %v938
      %v1198 = vsel %vm1194, %v1165, %v940
      %v1200 = vsel %vm1194, %v1167, %v942
      %v1202 = vsel %vm1194, %v1169, %v944
      %v1204 = vsel %vm1194, %v1171, %v946
      %v1206 = vsel %vm1194, %v1173, %v948
      %v1208 = vsel %vm1194, %v1175, %v950
      %v1210 = vsel %vm1194, %v1177, %v952
      %v1212 = vsel %vm1194, %v1179, %v954
      %v1214 = vsel %vm1194, %v1181, %v956
      %v1216 = vsel %vm1194, %v1183, %v958
      %v1218 = vsel %vm1194, %v1185, %v960
      %v1220 = vsel %vm1194, %v1187, %v962
      %v1222 = vsel %vm1194, %v1189, %v964
      %v1224 = vsel %vm1194, %v1191, %v966
      %v1226 = vsel %vm1194, %v1193, %v968
      %vm1227 = vcmask 97280
      %v1229 = vsel %vm1227, %v1196, %v970
      %v1231 = vsel %vm1227, %v1198, %v972
      %v1233 = vsel %vm1227, %v1200, %v974
      %v1235 = vsel %vm1227, %v1202, %v976
      %v1237 = vsel %vm1227, %v1204, %v978
      %v1239 = vsel %vm1227, %v1206, %v980
      %v1241 = vsel %vm1227, %v1208, %v982
      %v1243 = vsel %vm1227, %v1210, %v984
      %v1245 = vsel %vm1227, %v1212, %v986
      %v1247 = vsel %vm1227, %v1214, %v988
      %v1249 = vsel %vm1227, %v1216, %v990
      %v1251 = vsel %vm1227, %v1218, %v992
      %v1253 = vsel %vm1227, %v1220, %v994
      %v1255 = vsel %vm1227, %v1222, %v996
      %v1257 = vsel %vm1227, %v1224, %v998
      %v1259 = vsel %vm1227, %v1226, %v1000
      %vm1260 = vcmask 130048
      %v1262 = vsel %vm1260, %v1229, %v1002
      %v1264 = vsel %vm1260, %v1231, %v1004
      %v1266 = vsel %vm1260, %v1233, %v1006
      %v1268 = vsel %vm1260, %v1235, %v1008
      %v1270 = vsel %vm1260, %v1237, %v1010
      %v1272 = vsel %vm1260, %v1239, %v1012
      %v1274 = vsel %vm1260, %v1241, %v1014
      %v1276 = vsel %vm1260, %v1243, %v1016
      %v1278 = vsel %vm1260, %v1245, %v1018
      %v1280 = vsel %vm1260, %v1247, %v1020
      %v1282 = vsel %vm1260, %v1249, %v1022
      %v1284 = vsel %vm1260, %v1251, %v1024
      %v1286 = vsel %vm1260, %v1253, %v1026
      %v1288 = vsel %vm1260, %v1255, %v1028
      %v1290 = vsel %vm1260, %v1257, %v1030
      %v1292 = vsel %vm1260, %v1259, %v1032
      %vm1293 = vcmask 162816
      %v1295 = vsel %vm1293, %v1262, %v1034
      %v1297 = vsel %vm1293, %v1264, %v1036
      %v1299 = vsel %vm1293, %v1266, %v1038
      %v1301 = vsel %vm1293, %v1268, %v1040
      %v1303 = vsel %vm1293, %v1270, %v1042
      %v1305 = vsel %vm1293, %v1272, %v1044
      %v1307 = vsel %vm1293, %v1274, %v1046
      %v1309 = vsel %vm1293, %v1276, %v1048
      %v1311 = vsel %vm1293, %v1278, %v1050
      %v1313 = vsel %vm1293, %v1280, %v1052
      %v1315 = vsel %vm1293, %v1282, %v1054
      %v1317 = vsel %vm1293, %v1284, %v1056
      %v1319 = vsel %vm1293, %v1286, %v1058
      %v1321 = vsel %vm1293, %v1288, %v1060
      %v1323 = vsel %vm1293, %v1290, %v1062
      %v1325 = vsel %vm1293, %v1292, %v1064
      %vm1326 = vcmask 195584
      %v1328 = vsel %vm1326, %v1295, %v1066
      %v1330 = vsel %vm1326, %v1297, %v1068
      %v1332 = vsel %vm1326, %v1299, %v1070
      %v1334 = vsel %vm1326, %v1301, %v1072
      %v1336 = vsel %vm1326, %v1303, %v1074
      %v1338 = vsel %vm1326, %v1305, %v1076
      %v1340 = vsel %vm1326, %v1307, %v1078
      %v1342 = vsel %vm1326, %v1309, %v1080
      %v1344 = vsel %vm1326, %v1311, %v1082
      %v1346 = vsel %vm1326, %v1313, %v1084
      %v1348 = vsel %vm1326, %v1315, %v1086
      %v1350 = vsel %vm1326, %v1317, %v1088
      %v1352 = vsel %vm1326, %v1319, %v1090
      %v1354 = vsel %vm1326, %v1321, %v1092
      %v1356 = vsel %vm1326, %v1323, %v1094
      %v1358 = vsel %vm1326, %v1325, %v1096
      %vm1359 = vcmask 228352
      %v1361 = vsel %vm1359, %v1328, %v1098
      %v1363 = vsel %vm1359, %v1330, %v1100
      %v1365 = vsel %vm1359, %v1332, %v1102
      %v1367 = vsel %vm1359, %v1334, %v1104
      %v1369 = vsel %vm1359, %v1336, %v1106
      %v1371 = vsel %vm1359, %v1338, %v1108
      %v1373 = vsel %vm1359, %v1340, %v1110
      %v1375 = vsel %vm1359, %v1342, %v1112
      %v1377 = vsel %vm1359, %v1344, %v1114
      %v1379 = vsel %vm1359, %v1346, %v1116
      %v1381 = vsel %vm1359, %v1348, %v1118
      %v1383 = vsel %vm1359, %v1350, %v1120
      %v1385 = vsel %vm1359, %v1352, %v1122
      %v1387 = vsel %vm1359, %v1354, %v1124
      %v1389 = vsel %vm1359, %v1356, %v1126
      %v1391 = vsel %vm1359, %v1358, %v1128
      %vm1392 = vcmask 261120
      %v1394 = vsel %vm1392, %v1361, %v1130
      %v1396 = vsel %vm1392, %v1363, %v1132
      %v1398 = vsel %vm1392, %v1365, %v1134
      %v1400 = vsel %vm1392, %v1367, %v1136
      %v1402 = vsel %vm1392, %v1369, %v1138
      %v1404 = vsel %vm1392, %v1371, %v1140
      %v1406 = vsel %vm1392, %v1373, %v1142
      %v1408 = vsel %vm1392, %v1375, %v1144
      %v1410 = vsel %vm1392, %v1377, %v1146
      %v1412 = vsel %vm1392, %v1379, %v1148
      %v1414 = vsel %vm1392, %v1381, %v1150
      %v1416 = vsel %vm1392, %v1383, %v1152
      %v1418 = vsel %vm1392, %v1385, %v1154
      %v1420 = vsel %vm1392, %v1387, %v1156
      %v1422 = vsel %vm1392, %v1389, %v1158
      %v1424 = vsel %vm1392, %v1391, %v1160
      %v1425 = vld [vmem:[%s1] sm:$0xf]
      %v1426 = vld [vmem:[%s1 + $0x4] sm:$0xf]
      %v1427 = vld [vmem:[%s1 + $0x8] sm:$0xf]
      %v1428 = vld [vmem:[%s1 + $0xc] sm:$0xf]
      %v1429 = vld [vmem:[%s1 + $0x10] sm:$0x3]
      %v1435 = vunpack.c.l.b16 %v1425
      %v1436 = vunpack.c.l.b16 %v1426
      %v1437 = vunpack.c.l.b16 %v1427
      %v1438 = vunpack.c.l.b16 %v1428
      %v1439 = vunpack.c.l.b16 %v1429
      %v1440 = vpack.c.b16 %v1436, %v1435
      %v1441 = vpack.c.b16 %v1438, %v1437
      %v1442 = vpack.c.b16 %v1439, %v1439
      %vm1445 = vcmask 293888
      %v1446 = vsel %vm1445, %v1394, 0
      %v1448 = vsel %vm1445, %v1396, 0
      %v1450 = vsel %vm1445, %v1398, 0
      %v1452 = vsel %vm1445, %v1400, 0
      %v1454 = vsel %vm1445, %v1402, 0
      %v1456 = vsel %vm1445, %v1404, 0
      %v1458 = vsel %vm1445, %v1406, 0
      %v1460 = vsel %vm1445, %v1408, 0
      %v1462 = vsel %vm1445, %v1410, 0
      %v1464 = vsel %vm1445, %v1412, 0
      %v1466 = vsel %vm1445, %v1414, 0
      %v1468 = vsel %vm1445, %v1416, 0
      %v1470 = vsel %vm1445, %v1418, 0
      %v1472 = vsel %vm1445, %v1420, 0
      %v1474 = vsel %vm1445, %v1422, 0
      %v1476 = vsel %vm1445, %v1424, 0
      %vm1478 = vcmask 1041408
      %v1480 = vsel %vm1478, %v1442, 0
      %1482 = vmatprep.subr.bf16.mxu0 0
      %1483 = vmatpush1.bf16.msra.mxu0 %v1440
      %1484 = vmatprep.subr.bf16.mxu0 0
      %1485 = vmatpush1.bf16.msra.mxu0 %v1441
      %1486 = vmatprep.subr.bf16.mxu0 0
      %1487 = vmatpush1.bf16.msra.mxu0 %v1480
      %1488 = vmatprep.subr.bf16.mxu0 0
      %1489 = vmatpush1.bf16.msra.mxu0 0
      %1490 = vmatprep.subr.bf16.mxu0 0
      %1491 = vmatpush1.bf16.msra.mxu0 0
      %1492 = vmatprep.subr.bf16.mxu0 0
      %1493 = vmatpush1.bf16.msra.mxu0 0
      %1494 = vmatprep.subr.bf16.mxu0 0
      %1495 = vmatpush1.bf16.msra.mxu0 0
      %1496 = vmatprep.subr.bf16.mxu0 0
      %1497 = vmatpush1.bf16.msra.mxu0 0
      %1498 = vmatprep.subr.bf16.mxu0 0
      %1499 = vmatpush1.bf16.msra.mxu0 0
      %1500 = vmatprep.subr.bf16.mxu0 0
      %1501 = vmatpush1.bf16.msra.mxu0 0
      %1502 = vmatprep.subr.bf16.mxu0 0
      %1503 = vmatpush1.bf16.msra.mxu0 0
      %1504 = vmatprep.subr.bf16.mxu0 0
      %1505 = vmatpush1.bf16.msra.mxu0 0
      %1506 = vmatprep.subr.bf16.mxu0 0
      %1507 = vmatpush1.bf16.msra.mxu0 0
      %1508 = vmatprep.subr.bf16.mxu0 0
      %1509 = vmatpush1.bf16.msra.mxu0 0
      %1510 = vmatprep.subr.bf16.mxu0 0
      %1511 = vmatpush1.bf16.msra.mxu0 0
      %1512 = vmatprep.subr.bf16.mxu0 0
      %1513 = vmatpush1.bf16.msra.mxu0 0
      %1514 = vmatprep.mubr.bf16.mxu0 0
      %1515 = vmatmul.mubr.bf16.gmra.mrb[0].mxu0 %v1446
      %v1516 = vpop.f32.mrb[0].mxu0
      %v1517 = vadd.f32 0.0, %v1516
      %v1518 = vpop.f32.mrb[0].mxu0
      %v1519 = vpop.f32.mrb[0].mxu0
      %v1520 = vadd.f32 0.0, %v1519
      %v1521 = vpop.f32.mrb[0].mxu0
      %1522 = vmatprep.mubr.bf16.mxu0 0
      %1523 = vmatmul.mubr.bf16.gmra.mrb[0].mxu0 %v1448
      %v1524 = vpop.f32.mrb[0].mxu0
      %v1525 = vadd.f32 0.0, %v1524
      %v1526 = vpop.f32.mrb[0].mxu0
      %v1527 = vpop.f32.mrb[0].mxu0
      %v1528 = vadd.f32 0.0, %v1527
      %v1529 = vpop.f32.mrb[0].mxu0
      %1530 = vmatprep.mubr.bf16.mxu0 0
      %1531 = vmatmul.mubr.bf16.gmra.mrb[0].mxu0 %v1450
      %v1532 = vpop.f32.mrb[0].mxu0
      %v1533 = vadd.f32 0.0, %v1532
      %v1534 = vpop.f32.mrb[0].mxu0
      %v1535 = vpop.f32.mrb[0].mxu0
      %v1536 = vadd.f32 0.0, %v1535
      %v1537 = vpop.f32.mrb[0].mxu0
      %1538 = vmatprep.mubr.bf16.mxu0 0
      %1539 = vmatmul.mubr.bf16.gmra.mrb[0].mxu0 %v1452
      %v1540 = vpop.f32.mrb[0].mxu0
      %v1541 = vadd.f32 0.0, %v1540
      %v1542 = vpop.f32.mrb[0].mxu0
      %v1543 = vpop.f32.mrb[0].mxu0
      %v1544 = vadd.f32 0.0, %v1543
      %v1545 = vpop.f32.mrb[0].mxu0
      %1546 = vmatprep.mubr.bf16.mxu0 0
      %1547 = vmatmul.mubr.bf16.gmra.mrb[0].mxu0 %v1454
      %v1548 = vpop.f32.mrb[0].mxu0
      %v1549 = vadd.f32 0.0, %v1548
      %v1550 = vpop.f32.mrb[0].mxu0
      %v1551 = vpop.f32.mrb[0].mxu0
      %v1552 = vadd.f32 0.0, %v1551
      %v1553 = vpop.f32.mrb[0].mxu0
      %1554 = vmatprep.mubr.bf16.mxu0 0
      %1555 = vmatmul.mubr.bf16.gmra.mrb[0].mxu0 %v1456
      %v1556 = vpop.f32.mrb[0].mxu0
      %v1557 = vadd.f32 0.0, %v1556
      %v1558 = vpop.f32.mrb[0].mxu0
      %v1559 = vpop.f32.mrb[0].mxu0
      %v1560 = vadd.f32 0.0, %v1559
      %v1561 = vpop.f32.mrb[0].mxu0
      %1562 = vmatprep.mubr.bf16.mxu0 0
      %1563 = vmatmul.mubr.bf16.gmra.mrb[0].mxu0 %v1458
      %v1564 = vpop.f32.mrb[0].mxu0
      %v1565 = vadd.f32 0.0, %v1564
      %v1566 = vpop.f32.mrb[0].mxu0
      %v1567 = vpop.f32.mrb[0].mxu0
      %v1568 = vadd.f32 0.0, %v1567
      %v1569 = vpop.f32.mrb[0].mxu0
      %1570 = vmatprep.mubr.bf16.mxu0 0
      %1571 = vmatmul.mubr.bf16.gmra.mrb[0].mxu0 %v1460
      %v1572 = vpop.f32.mrb[0].mxu0
      %v1573 = vadd.f32 0.0, %v1572
      %v1574 = vpop.f32.mrb[0].mxu0
      %v1575 = vpop.f32.mrb[0].mxu0
      %v1576 = vadd.f32 0.0, %v1575
      %v1577 = vpop.f32.mrb[0].mxu0
      %1578 = vmatprep.mubr.bf16.mxu0 0
      %1579 = vmatmul.mubr.bf16.gmra.mrb[0].mxu0 %v1462
      %v1580 = vpop.f32.mrb[0].mxu0
      %v1581 = vadd.f32 0.0, %v1580
      %v1582 = vpop.f32.mrb[0].mxu0
      %v1583 = vpop.f32.mrb[0].mxu0
      %v1584 = vadd.f32 0.0, %v1583
      %v1585 = vpop.f32.mrb[0].mxu0
      %1586 = vmatprep.mubr.bf16.mxu0 0
      %1587 = vmatmul.mubr.bf16.gmra.mrb[0].mxu0 %v1464
      %v1588 = vpop.f32.mrb[0].mxu0
      %v1589 = vadd.f32 0.0, %v1588
      %v1590 = vpop.f32.mrb[0].mxu0
      %v1591 = vpop.f32.mrb[0].mxu0
      %v1592 = vadd.f32 0.0, %v1591
      %v1593 = vpop.f32.mrb[0].mxu0
      %1594 = vmatprep.mubr.bf16.mxu0 0
      %1595 = vmatmul.mubr.bf16.gmra.mrb[0].mxu0 %v1466
      %v1596 = vpop.f32.mrb[0].mxu0
      %v1597 = vadd.f32 0.0, %v1596
      %v1598 = vpop.f32.mrb[0].mxu0
      %v1599 = vpop.f32.mrb[0].mxu0
      %v1600 = vadd.f32 0.0, %v1599
      %v1601 = vpop.f32.mrb[0].mxu0
      %1602 = vmatprep.mubr.bf16.mxu0 0
      %1603 = vmatmul.mubr.bf16.gmra.mrb[0].mxu0 %v1468
      %v1604 = vpop.f32.mrb[0].mxu0
      %v1605 = vadd.f32 0.0, %v1604
      %v1606 = vpop.f32.mrb[0].mxu0
      %v1607 = vpop.f32.mrb[0].mxu0
      %v1608 = vadd.f32 0.0, %v1607
      %v1609 = vpop.f32.mrb[0].mxu0
      %1610 = vmatprep.mubr.bf16.mxu0 0
      %1611 = vmatmul.mubr.bf16.gmra.mrb[0].mxu0 %v1470
      %v1612 = vpop.f32.mrb[0].mxu0
      %v1613 = vadd.f32 0.0, %v1612
      %v1614 = vpop.f32.mrb[0].mxu0
      %v1615 = vpop.f32.mrb[0].mxu0
      %v1616 = vadd.f32 0.0, %v1615
      %v1617 = vpop.f32.mrb[0].mxu0
      %1618 = vmatprep.mubr.bf16.mxu0 0
      %1619 = vmatmul.mubr.bf16.gmra.mrb[0].mxu0 %v1472
      %v1620 = vpop.f32.mrb[0].mxu0
      %v1621 = vadd.f32 0.0, %v1620
      %v1622 = vpop.f32.mrb[0].mxu0
      %v1623 = vpop.f32.mrb[0].mxu0
      %v1624 = vadd.f32 0.0, %v1623
      %v1625 = vpop.f32.mrb[0].mxu0
      %1626 = vmatprep.mubr.bf16.mxu0 0
      %1627 = vmatmul.mubr.bf16.gmra.mrb[0].mxu0 %v1474
      %v1628 = vpop.f32.mrb[0].mxu0
      %v1629 = vadd.f32 0.0, %v1628
      %v1630 = vpop.f32.mrb[0].mxu0
      %v1631 = vpop.f32.mrb[0].mxu0
      %v1632 = vadd.f32 0.0, %v1631
      %v1633 = vpop.f32.mrb[0].mxu0
      %1634 = vmatprep.mubr.bf16.mxu0 0
      %1635 = vmatmul.mubr.bf16.gmra.mrb[0].mxu0 %v1476
      %v1636 = vpop.f32.mrb[0].mxu0
      %v1637 = vadd.f32 0.0, %v1636
      %v1638 = vpop.f32.mrb[0].mxu0
      %v1639 = vpop.f32.mrb[0].mxu0
      %v1640 = vadd.f32 0.0, %v1639
      %v1641 = vpop.f32.mrb[0].mxu0
      %1642 = vdwg.mxu0
      %v1643 = vadd.f32 %v1517, %v1520
      %v1644 = vadd.f32 %v1643, %v1525
      %v1645 = vadd.f32 %v1644, %v1528
      %v1646 = vadd.f32 %v1645, %v1533
      %v1647 = vadd.f32 %v1646, %v1536
      %v1648 = vadd.f32 %v1647, %v1541
      %v1649 = vadd.f32 %v1648, %v1544
      %v1650 = vadd.f32 %v1649, %v1549
      %v1651 = vadd.f32 %v1650, %v1552
      %v1652 = vadd.f32 %v1651, %v1557
      %v1653 = vadd.f32 %v1652, %v1560
      %v1654 = vadd.f32 %v1653, %v1565
      %v1655 = vadd.f32 %v1654, %v1568
      %v1656 = vadd.f32 %v1655, %v1573
      %v1657 = vadd.f32 %v1656, %v1576
      %v1658 = vadd.f32 %v1657, %v1581
      %v1659 = vadd.f32 %v1658, %v1584
      %v1660 = vadd.f32 %v1659, %v1589
      %v1661 = vadd.f32 %v1660, %v1592
      %v1662 = vadd.f32 %v1661, %v1597
      %v1663 = vadd.f32 %v1662, %v1600
      %v1664 = vadd.f32 %v1663, %v1605
      %v1665 = vadd.f32 %v1664, %v1608
      %v1666 = vadd.f32 %v1665, %v1613
      %v1667 = vadd.f32 %v1666, %v1616
      %v1668 = vadd.f32 %v1667, %v1621
      %v1669 = vadd.f32 %v1668, %v1624
      %v1670 = vadd.f32 %v1669, %v1629
      %v1671 = vadd.f32 %v1670, %v1632
      %v1672 = vadd.f32 %v1671, %v1637
      %v1673 = vadd.f32 %v1672, %v1640
      %v1674 = vrot.slane %v1673, 4
      %v1675 = vadd.f32 %v1673, %v1674
      %v1676 = vrot.slane %v1675, 2
      %v1677 = vadd.f32 %v1675, %v1676
      %v1678 = vrot.slane %v1677, 1
      %v1679 = vadd.f32 %v1677, %v1678
      %v1680 = vmul.f32 %v1517, %v1517
      %v1681 = vmul.f32 %v1520, %v1520
      %v1682 = vmul.f32 %v1525, %v1525
      %v1683 = vmul.f32 %v1528, %v1528
      %v1684 = vmul.f32 %v1533, %v1533
      %v1685 = vmul.f32 %v1536, %v1536
      %v1686 = vmul.f32 %v1541, %v1541
      %v1687 = vmul.f32 %v1544, %v1544
      %v1688 = vmul.f32 %v1549, %v1549
      %v1689 = vmul.f32 %v1552, %v1552
      %v1690 = vmul.f32 %v1557, %v1557
      %v1691 = vmul.f32 %v1560, %v1560
      %v1692 = vmul.f32 %v1565, %v1565
      %v1693 = vmul.f32 %v1568, %v1568
      %v1694 = vmul.f32 %v1573, %v1573
      %v1695 = vmul.f32 %v1576, %v1576
      %v1696 = vmul.f32 %v1581, %v1581
      %v1697 = vmul.f32 %v1584, %v1584
      %v1698 = vmul.f32 %v1589, %v1589
      %v1699 = vmul.f32 %v1592, %v1592
      %v1700 = vmul.f32 %v1597, %v1597
      %v1701 = vmul.f32 %v1600, %v1600
      %v1702 = vmul.f32 %v1605, %v1605
      %v1703 = vmul.f32 %v1608, %v1608
      %v1704 = vmul.f32 %v1613, %v1613
      %v1705 = vmul.f32 %v1616, %v1616
      %v1706 = vmul.f32 %v1621, %v1621
      %v1707 = vmul.f32 %v1624, %v1624
      %v1708 = vmul.f32 %v1629, %v1629
      %v1709 = vmul.f32 %v1632, %v1632
      %v1710 = vmul.f32 %v1637, %v1637
      %v1711 = vmul.f32 %v1640, %v1640
      %v1712 = vadd.f32 %v1680, %v1681
      %v1713 = vadd.f32 %v1712, %v1682
      %v1714 = vadd.f32 %v1713, %v1683
      %v1715 = vadd.f32 %v1714, %v1684
      %v1716 = vadd.f32 %v1715, %v1685
      %v1717 = vadd.f32 %v1716, %v1686
      %v1718 = vadd.f32 %v1717, %v1687
      %v1719 = vadd.f32 %v1718, %v1688
      %v1720 = vadd.f32 %v1719, %v1689
      %v1721 = vadd.f32 %v1720, %v1690
      %v1722 = vadd.f32 %v1721, %v1691
      %v1723 = vadd.f32 %v1722, %v1692
      %v1724 = vadd.f32 %v1723, %v1693
      %v1725 = vadd.f32 %v1724, %v1694
      %v1726 = vadd.f32 %v1725, %v1695
      %v1727 = vadd.f32 %v1726, %v1696
      %v1728 = vadd.f32 %v1727, %v1697
      %v1729 = vadd.f32 %v1728, %v1698
      %v1730 = vadd.f32 %v1729, %v1699
      %v1731 = vadd.f32 %v1730, %v1700
      %v1732 = vadd.f32 %v1731, %v1701
      %v1733 = vadd.f32 %v1732, %v1702
      %v1734 = vadd.f32 %v1733, %v1703
      %v1735 = vadd.f32 %v1734, %v1704
      %v1736 = vadd.f32 %v1735, %v1705
      %v1737 = vadd.f32 %v1736, %v1706
      %v1738 = vadd.f32 %v1737, %v1707
      %v1739 = vadd.f32 %v1738, %v1708
      %v1740 = vadd.f32 %v1739, %v1709
      %v1741 = vadd.f32 %v1740, %v1710
      %v1742 = vadd.f32 %v1741, %v1711
      %v1743 = vrot.slane %v1742, 4
      %v1744 = vadd.f32 %v1742, %v1743
      %v1745 = vrot.slane %v1744, 2
      %v1746 = vadd.f32 %v1744, %v1745
      %v1747 = vrot.slane %v1746, 1
      %v1748 = vadd.f32 %v1746, %v1747
      %vm1749 = vcmask 1040384
      %v1750 = vsel %vm1749, %v1679, %v1748
      %1751 = vst [vmem:[%s214] sm:$0x3] %v1750
      %v1752 = vpack.c.bf16 %v1520, %v1517
      %v1753 = vpack.c.bf16 %v1528, %v1525
      %v1754 = vpack.c.bf16 %v1536, %v1533
      %v1755 = vpack.c.bf16 %v1544, %v1541
      %v1756 = vpack.c.bf16 %v1552, %v1549
      %v1757 = vpack.c.bf16 %v1560, %v1557
      %v1758 = vpack.c.bf16 %v1568, %v1565
      %v1759 = vpack.c.bf16 %v1576, %v1573
      %v1760 = vpack.c.bf16 %v1584, %v1581
      %v1761 = vpack.c.bf16 %v1592, %v1589
      %v1762 = vpack.c.bf16 %v1600, %v1597
      %v1763 = vpack.c.bf16 %v1608, %v1605
      %v1764 = vpack.c.bf16 %v1616, %v1613
      %v1765 = vpack.c.bf16 %v1624, %v1621
      %v1766 = vpack.c.bf16 %v1632, %v1629
      %v1767 = vpack.c.bf16 %v1640, %v1637
      %v1784 = vunpack.c.l.b16 %v1752
      %v1785 = vunpack.c.h.b16 %v1752
      %v1786 = vunpack.c.l.b16 %v1753
      %v1787 = vunpack.c.h.b16 %v1753
      %v1788 = vunpack.c.l.b16 %v1754
      %v1789 = vunpack.c.h.b16 %v1754
      %v1790 = vunpack.c.l.b16 %v1755
      %v1791 = vunpack.c.h.b16 %v1755
      %v1792 = vunpack.c.l.b16 %v1756
      %v1793 = vunpack.c.h.b16 %v1756
      %v1794 = vunpack.c.l.b16 %v1757
      %v1795 = vunpack.c.h.b16 %v1757
      %v1796 = vunpack.c.l.b16 %v1758
      %v1797 = vunpack.c.h.b16 %v1758
      %v1798 = vunpack.c.l.b16 %v1759
      %v1799 = vunpack.c.h.b16 %v1759
      %v1800 = vunpack.c.l.b16 %v1760
      %v1801 = vunpack.c.h.b16 %v1760
      %v1802 = vunpack.c.l.b16 %v1761
      %v1803 = vunpack.c.h.b16 %v1761
      %v1804 = vunpack.c.l.b16 %v1762
      %v1805 = vunpack.c.h.b16 %v1762
      %v1806 = vunpack.c.l.b16 %v1763
      %v1807 = vunpack.c.h.b16 %v1763
      %v1808 = vunpack.c.l.b16 %v1764
      %v1809 = vunpack.c.h.b16 %v1764
      %v1810 = vunpack.c.l.b16 %v1765
      %v1811 = vunpack.c.h.b16 %v1765
      %v1812 = vunpack.c.l.b16 %v1766
      %v1813 = vunpack.c.h.b16 %v1766
      %v1814 = vunpack.c.l.b16 %v1767
      %v1815 = vunpack.c.h.b16 %v1767
      %v1816 = vpack.c.b16 %v1784, %v1784
      %v1817 = vpack.c.b16 %v1785, %v1785
      %v1818 = vpack.c.b16 %v1786, %v1786
      %v1819 = vpack.c.b16 %v1787, %v1787
      %v1820 = vpack.c.b16 %v1788, %v1788
      %v1821 = vpack.c.b16 %v1789, %v1789
      %v1822 = vpack.c.b16 %v1790, %v1790
      %v1823 = vpack.c.b16 %v1791, %v1791
      %v1824 = vpack.c.b16 %v1792, %v1792
      %v1825 = vpack.c.b16 %v1793, %v1793
      %v1826 = vpack.c.b16 %v1794, %v1794
      %v1827 = vpack.c.b16 %v1795, %v1795
      %v1828 = vpack.c.b16 %v1796, %v1796
      %v1829 = vpack.c.b16 %v1797, %v1797
      %v1830 = vpack.c.b16 %v1798, %v1798
      %v1831 = vpack.c.b16 %v1799, %v1799
      %v1832 = vpack.c.b16 %v1800, %v1800
      %v1833 = vpack.c.b16 %v1801, %v1801
      %v1834 = vpack.c.b16 %v1802, %v1802
      %v1835 = vpack.c.b16 %v1803, %v1803
      %v1836 = vpack.c.b16 %v1804, %v1804
      %v1837 = vpack.c.b16 %v1805, %v1805
      %v1838 = vpack.c.b16 %v1806, %v1806
      %v1839 = vpack.c.b16 %v1807, %v1807
      %v1840 = vpack.c.b16 %v1808, %v1808
      %v1841 = vpack.c.b16 %v1809, %v1809
      %v1842 = vpack.c.b16 %v1810, %v1810
      %v1843 = vpack.c.b16 %v1811, %v1811
      %v1844 = vpack.c.b16 %v1812, %v1812
      %v1845 = vpack.c.b16 %v1813, %v1813
      %v1846 = vpack.c.b16 %v1814, %v1814
      %v1847 = vpack.c.b16 %v1815, %v1815
      %1880 = vst [vmem:[%s206] sm:$0xf] %v1816
      %1881 = vst [vmem:[%s206 + $0x4] sm:$0xf] %v1817
      %1882 = vst [vmem:[%s206 + $0x8] sm:$0xf] %v1818
      %1883 = vst [vmem:[%s206 + $0xc] sm:$0xf] %v1819
      %1884 = vst [vmem:[%s206 + $0x10] sm:$0xf] %v1820
      %1885 = vst [vmem:[%s206 + $0x14] sm:$0xf] %v1821
      %1886 = vst [vmem:[%s206 + $0x18] sm:$0xf] %v1822
      %1887 = vst [vmem:[%s206 + $0x1c] sm:$0xf] %v1823
      %1888 = vst [vmem:[%s206 + $0x20] sm:$0xf] %v1824
      %1889 = vst [vmem:[%s206 + $0x24] sm:$0xf] %v1825
      %1890 = vst [vmem:[%s206 + $0x28] sm:$0xf] %v1826
      %1891 = vst [vmem:[%s206 + $0x2c] sm:$0xf] %v1827
      %1892 = vst [vmem:[%s206 + $0x30] sm:$0xf] %v1828
      %1893 = vst [vmem:[%s206 + $0x34] sm:$0xf] %v1829
      %1894 = vst [vmem:[%s206 + $0x38] sm:$0xf] %v1830
      %1895 = vst [vmem:[%s206 + $0x3c] sm:$0xf] %v1831
      %1896 = vst [vmem:[%s206 + $0x40] sm:$0xf] %v1832
      %1897 = vst [vmem:[%s206 + $0x44] sm:$0xf] %v1833
      %1898 = vst [vmem:[%s206 + $0x48] sm:$0xf] %v1834
      %1899 = vst [vmem:[%s206 + $0x4c] sm:$0xf] %v1835
      %1900 = vst [vmem:[%s206 + $0x50] sm:$0xf] %v1836
      %1901 = vst [vmem:[%s206 + $0x54] sm:$0xf] %v1837
      %1902 = vst [vmem:[%s206 + $0x58] sm:$0xf] %v1838
      %1903 = vst [vmem:[%s206 + $0x5c] sm:$0xf] %v1839
      %1904 = vst [vmem:[%s206 + $0x60] sm:$0xf] %v1840
      %1905 = vst [vmem:[%s206 + $0x64] sm:$0xf] %v1841
      %1906 = vst [vmem:[%s206 + $0x68] sm:$0xf] %v1842
      %1907 = vst [vmem:[%s206 + $0x6c] sm:$0xf] %v1843
      %1908 = vst [vmem:[%s206 + $0x70] sm:$0xf] %v1844
      %1909 = vst [vmem:[%s206 + $0x74] sm:$0xf] %v1845
      %1910 = vst [vmem:[%s206 + $0x78] sm:$0xf] %v1846
      %1911 = vst [vmem:[%s206 + $0x7c] sm:$0xf] %v1847
      %s1912 = smul.u32 16, %s20
      %p1913 = scmp.lt.s32.totalorder %s19, 1
      %s1914 = scalar_select %p1913, %s19, 1
      %p1915 = scmp.lt.s32.totalorder %s1912, 15
      %s1916 = scalar_select %p1915, %s1912, 15
      %s1917 = smul.addr %s1916, 2
      %s1918 = smul.addr %s1914, 32
      %s1919 = sadd.s32 %s1917, %s1918
      %s1920 = smul.addr %s1919, 4
      %s1921 = scalar_lea.vmem %s2, %s1920
      %p1922 = scmp.lt.s32.totalorder %s19, 1
      %s1923 = scalar_select %p1922, %s19, 1
      %p1924 = scmp.lt.s32.totalorder %s20, 0
      %s1925 = scalar_select %p1924, %s20, 0
      %s1926 = sadd.s32 %s1925, %s1923
      %s1927 = smul.addr %s1926, 2
      %s1928 = scalar_lea.vmem %s3, %s1927
      // Predicated region
      $region29: #{conv_block_forward.3} parent=27 // pred_check
        %p1929 = pneg %p94
      $region30: #{conv_block_forward.3} parent=27 // pred_check_branch
        %1931 = sbr.rel (%p1929) target = $region32
      $region31: #{conv_block_forward.3} parent=27 // pred_region
        %s1932 = smul.u32 16, %s20
      $region32: #{conv_block_forward.3} parent=27 // pred_fallthru
        _
      // Predicated region
      $region33: #{conv_block_forward.3} parent=27 // pred_check
        %p1933 = pneg %p122
      $region34: #{conv_block_forward.3} parent=27 // pred_check_branch
        %1935 = sbr.rel (%p1933) target = $region36
      $region35: #{conv_block_forward.3} parent=27 // pred_region
        _
      $region36: #{conv_block_forward.3} parent=27 // pred_fallthru
        _
    $region28: #{conv_block_forward.3} parent=5 // pred_fallthru
      _
    %p1936 = scmp.le.s32.totalorder 2, %s10
    // Predicated region
    $region37: #{conv_block_forward.3} parent=5 // pred_check
      %p1937 = pneg %p1936
    $region38: #{conv_block_forward.3} parent=5 // pred_check_branch
      %1939 = sbr.rel (%p1937) target = $region40
    $region39: #{conv_block_forward.3} parent=5 // pred_region
      %s1940 = ssub.s32 %s10, 2
      // Predicated region
      $region41: #{conv_block_forward.3} parent=39 // pred_check
        %p1941 = pneg %p100
      $region42: #{conv_block_forward.3} parent=39 // pred_check_branch
        %1943 = sbr.rel (%p1941) target = $region44
      $region43: #{conv_block_forward.3} parent=39 // pred_region
        %s1944 = smul.u32 16, %s22
        %p1945 = scmp.lt.s32.totalorder %s21, 1
        %s1946 = scalar_select %p1945, %s21, 1
        %p1947 = scmp.lt.s32.totalorder %s1944, 15
        %s1948 = scalar_select %p1947, %s1944, 15
        %s1949 = smul.addr %s1948, 2
        %s1950 = smul.addr %s1946, 32
        %s1951 = sadd.s32 %s1949, %s1950
        %s1952 = smul.addr %s1951, 4
        %s1953 = scalar_lea.vmem %s2, %s1952
      $region44: #{conv_block_forward.3} parent=39 // pred_fallthru
        _
      // Predicated region
      $region45: #{conv_block_forward.3} parent=39 // pred_check
        %p1954 = pneg %p128
      $region46: #{conv_block_forward.3} parent=39 // pred_check_branch
        %1956 = sbr.rel (%p1954) target = $region48
      $region47: #{conv_block_forward.3} parent=39 // pred_region
        %p1957 = scmp.lt.s32.totalorder %s21, 1
        %s1958 = scalar_select %p1957, %s21, 1
        %p1959 = scmp.lt.s32.totalorder %s22, 0
        %s1960 = scalar_select %p1959, %s22, 0
        %s1961 = sadd.s32 %s1960, %s1958
        %s1962 = smul.addr %s1961, 2
        %s1963 = scalar_lea.vmem %s3, %s1962
      $region48: #{conv_block_forward.3} parent=39 // pred_fallthru
        _
    $region40: #{conv_block_forward.3} parent=5 // pred_fallthru
      _
  $region6: #{conv_block_forward.3} parent=0 // loop_footer
    %s14 = sadd.s32 1, %s10
  $region7: #{conv_block_forward.3} parent=0 // loop_footer_branch
    %9 = sbr.rel target = $region3
  $region8: #{conv_block_forward.3} parent=0 // loop_exit
    _

// kernel: conv_block_forward.4
$region0: #{conv_block_forward.4}
  #allocation0 [shape = 'u32[]', space=smem, size = 0x4, offset = 0x4, fixed_abs, tag = 'smem constant byte address 0x4 - core index']
  #allocation1 [shape = 'u32[144,128]{1,0:T(1,128)}', space=vmem, size = 0x12000, scoped, tag = 'internal scratch']
  %s0 = inlined_call_operand.vmem [shape: bf16[2,16,16,128], index: 0, kind: input, shape index: {}]
  %s1 = inlined_call_operand.vmem [shape: bf16[1152,128], index: 1, kind: input, shape index: {}]
  %s2 = inlined_call_operand.vmem [shape: f32[1,128], index: 2, kind: input, shape index: {}]
  %s3 = inlined_call_operand.vmem [shape: f32[1,128], index: 3, kind: input, shape index: {}]
  %s4 = inlined_call_operand.vmem [shape: bf16[2,16,16,128], index: 4, kind: output, shape index: {0}]
  %s5 = inlined_call_operand.vmem [shape: f32[2,1,2,128], index: 5, kind: output, shape index: {1}]
  %6 = xla_tuple %s4, %s5
  %s7 = sld [smem:[#allocation0]]
  $region57: #{conv_block_forward.4} parent=0
    _
  %s9 = ssub.s32 1, %s7
  %s10 = scalar_select 0, %s9, %s7
  loop: start=0, step=1, limit=4
  $region2: #{conv_block_forward.4} parent=0 // loop_pre_header
    _
  $region3: #{conv_block_forward.4} parent=0 // loop_header
    %s12 = sphi 0, %s16
    %p13 = scmp.ge.s32.totalorder %s12, 4
    %s19 = sphi 0, %s31
    %s20 = sphi 0, %s27
    %s21 = sphi 0, %s19
    %s22 = sphi 0, %s20
    %s23 = sphi 0, %s21
    %s24 = sphi 0, %s22
    %s34 = sphi 0, %s36
    %s37 = sphi 0, %s34
    %s38 = sphi 0, %s37
    %s54 = sphi 0, %s38
    %s58 = sphi 0, %s58
    %s60 = sphi 0, %s58
    %s61 = sphi 0, %s60
    %s75 = sphi 0, %s61
    %s79 = sphi 0, %s79
    %s81 = sphi 0, %s79
    %s82 = sphi 0, %s81
    %s96 = sphi 0, %s82
    %s100 = sphi 0, %s100
    %s102 = sphi 0, %s100
    %s103 = sphi 0, %s102
    %s117 = sphi 0, %s103
    %s125 = sphi 0, %s127
    %s128 = sphi 0, %s125
    %s129 = sphi 0, %s128
    %s145 = sphi 0, %s129
    %s153 = sphi 0, %s155
    %s156 = sphi 0, %s153
    %s157 = sphi 0, %s156
    %s173 = sphi 0, %s157
  $region4: #{conv_block_forward.4} parent=0 // loop_header_branch
    %15 = sbr.rel (%p13) target = $region8
  $region5: #{conv_block_forward.4} parent=0 // loop_body
    %s17 = ssub.s32 %s12, 1
    %s18 = ssub.s32 %s12, 2
    %s25 = sadd.s32 1, %s20
    %p26 = scmp.ge.s32.totalorder %s25, 1
    %s27 = scalar_select %p26, 0, %s25
    %s28 = sadd.s32 1, %s19
    %s29 = scalar_select %p26, %s28, %s19
    %p30 = scmp.ge.s32.totalorder %s29, 2
    %s31 = scalar_select %p30, 0, %s29
    %s32 = ssub.s32 %s19, %s31
    %p33 = scmp.eq.s32.totalorder %s32, 0
    %s35 = sadd.s32 %s34, 1
    %s36 = scalar_select %p33, %s34, %s35
    %p39 = pneg %p33
    %p40 = scmp.eq.s32.totalorder %s12, 1
    %p41 = por %p39, %p40
    %p42 = scmp.ne.s32.totalorder %s34, %s37
    %p43 = scmp.eq.s32.totalorder %s12, 0
    %p44 = por %p42, %p43
    %p45 = scmp.ne.s32.totalorder %s34, %s37
    %p46 = scmp.eq.s32.totalorder %s17, 1
    %p47 = por %p45, %p46
    %p48 = scmp.ne.s32.totalorder %s37, %s38
    %p49 = scmp.eq.s32.totalorder %s17, 0
    %p50 = por %p48, %p49
    %p51 = scmp.ne.s32.totalorder %s37, %s38
    %p52 = scmp.eq.s32.totalorder %s18, 1
    %p53 = por %p51, %p52
    %p55 = scmp.ne.s32.totalorder %s38, %s54
    %p56 = scmp.eq.s32.totalorder %s18, 0
    %p57 = por %p55, %p56
    %s59 = sadd.s32 %s58, 1
    %p62 = scmp.eq.s32.totalorder %s12, 1
    %p63 = scmp.ne.s32.totalorder %s58, %s60
    %p64 = scmp.eq.s32.totalorder %s12, 0
    %p65 = por %p63, %p64
    %p66 = scmp.ne.s32.totalorder %s58, %s60
    %p67 = scmp.eq.s32.totalorder %s17, 1
    %p68 = por %p66, %p67
    %p69 = scmp.ne.s32.totalorder %s60, %s61
    %p70 = scmp.eq.s32.totalorder %s17, 0
    %p71 = por %p69, %p70
    %p72 = scmp.ne.s32.totalorder %s60, %s61
    %p73 = scmp.eq.s32.totalorder %s18, 1
    %p74 = por %p72, %p73
    %p76 = scmp.ne.s32.totalorder %s61, %s75
    %p77 = scmp.eq.s32.totalorder %s18, 0
    %p78 = por %p76, %p77
    %s80 = sadd.s32 %s79, 1
    %p83 = scmp.eq.s32.totalorder %s12, 1
    %p84 = scmp.ne.s32.totalorder %s79, %s81
    %p85 = scmp.eq.s32.totalorder %s12, 0
    %p86 = por %p84, %p85
    %p87 = scmp.ne.s32.totalorder %s79, %s81
    %p88 = scmp.eq.s32.totalorder %s17, 1
    %p89 = por %p87, %p88
    %p90 = scmp.ne.s32.totalorder %s81, %s82
    %p91 = scmp.eq.s32.totalorder %s17, 0
    %p92 = por %p90, %p91
    %p93 = scmp.ne.s32.totalorder %s81, %s82
    %p94 = scmp.eq.s32.totalorder %s18, 1
    %p95 = por %p93, %p94
    %p97 = scmp.ne.s32.totalorder %s82, %s96
    %p98 = scmp.eq.s32.totalorder %s18, 0
    %p99 = por %p97, %p98
    %s101 = sadd.s32 %s100, 1
    %p104 = scmp.eq.s32.totalorder %s12, 1
    %p105 = scmp.ne.s32.totalorder %s100, %s102
    %p106 = scmp.eq.s32.totalorder %s12, 0
    %p107 = por %p105, %p106
    %p108 = scmp.ne.s32.totalorder %s100, %s102
    %p109 = scmp.eq.s32.totalorder %s17, 1
    %p110 = por %p108, %p109
    %p111 = scmp.ne.s32.totalorder %s102, %s103
    %p112 = scmp.eq.s32.totalorder %s17, 0
    %p113 = por %p111, %p112
    %p114 = scmp.ne.s32.totalorder %s102, %s103
    %p115 = scmp.eq.s32.totalorder %s18, 1
    %p116 = por %p114, %p115
    %p118 = scmp.ne.s32.totalorder %s103, %s117
    %p119 = scmp.eq.s32.totalorder %s18, 0
    %p120 = por %p118, %p119
    %s121 = ssub.s32 %s19, %s31
    %s122 = ssub.s32 %s20, %s27
    %s123 = sor.u32 %s121, %s122
    %p124 = scmp.eq.s32.totalorder %s123, 0
    %s126 = sadd.s32 %s125, 1
    %s127 = scalar_select %p124, %s125, %s126
    %p130 = pneg %p124
    %p131 = scmp.eq.s32.totalorder %s12, 1
    %p132 = por %p130, %p131
    %p133 = scmp.ne.s32.totalorder %s125, %s128
    %p134 = scmp.eq.s32.totalorder %s12, 0
    %p135 = por %p133, %p134
    %p136 = scmp.ne.s32.totalorder %s125, %s128
    %p137 = scmp.eq.s32.totalorder %s17, 1
    %p138 = por %p136, %p137
    %p139 = scmp.ne.s32.totalorder %s128, %s129
    %p140 = scmp.eq.s32.totalorder %s17, 0
    %p141 = por %p139, %p140
    %p142 = scmp.ne.s32.totalorder %s128, %s129
    %p143 = scmp.eq.s32.totalorder %s18, 1
    %p144 = por %p142, %p143
    %p146 = scmp.ne.s32.totalorder %s129, %s145
    %p147 = scmp.eq.s32.totalorder %s18, 0
    %p148 = por %p146, %p147
    %s149 = ssub.s32 %s19, %s31
    %s150 = ssub.s32 %s20, %s27
    %s151 = sor.u32 %s149, %s150
    %p152 = scmp.eq.s32.totalorder %s151, 0
    %s154 = sadd.s32 %s153, 1
    %s155 = scalar_select %p152, %s153, %s154
    %p158 = pneg %p152
    %p159 = scmp.eq.s32.totalorder %s12, 1
    %p160 = por %p158, %p159
    %p161 = scmp.ne.s32.totalorder %s153, %s156
    %p162 = scmp.eq.s32.totalorder %s12, 0
    %p163 = por %p161, %p162
    %p164 = scmp.ne.s32.totalorder %s153, %s156
    %p165 = scmp.eq.s32.totalorder %s17, 1
    %p166 = por %p164, %p165
    %p167 = scmp.ne.s32.totalorder %s156, %s157
    %p168 = scmp.eq.s32.totalorder %s17, 0
    %p169 = por %p167, %p168
    %p170 = scmp.ne.s32.totalorder %s156, %s157
    %p171 = scmp.eq.s32.totalorder %s18, 1
    %p172 = por %p170, %p171
    %p174 = scmp.ne.s32.totalorder %s157, %s173
    %p175 = scmp.eq.s32.totalorder %s18, 0
    %p176 = por %p174, %p175
    %p177 = scmp.le.s32.totalorder 1, %s12
    %p178 = scmp.lt.s32.totalorder %s12, 3
    %p179 = pnand %p177, %p178
    %p180 = pneg %p179
    // Predicated region
    $region9: #{conv_block_forward.4} parent=5 // pred_check
      _
    $region10: #{conv_block_forward.4} parent=5 // pred_check_branch
      %182 = sbr.rel (%p179) target = $region12
    $region11: #{conv_block_forward.4} parent=5 // pred_region
      %s183 = ssub.s32 %s12, 1
      // Predicated region
      $region13: #{conv_block_forward.4} parent=11 // pred_check
        %p184 = pneg %p71
      $region14: #{conv_block_forward.4} parent=11 // pred_check_branch
        %186 = sbr.rel (%p184) target = $region16
      $region15: #{conv_block_forward.4} parent=11 // pred_region
        _
      $region16: #{conv_block_forward.4} parent=11 // pred_fallthru
        _
      // Predicated region
      $region17: #{conv_block_forward.4} parent=11 // pred_check
        %p187 = pneg %p92
      $region18: #{conv_block_forward.4} parent=11 // pred_check_branch
        %189 = sbr.rel (%p187) target = $region20
      $region19: #{conv_block_forward.4} parent=11 // pred_region
        _
      $region20: #{conv_block_forward.4} parent=11 // pred_fallthru
        _
      // Predicated region
      $region21: #{conv_block_forward.4} parent=11 // pred_check
        %p190 = pneg %p113
      $region22: #{conv_block_forward.4} parent=11 // pred_check_branch
        %192 = sbr.rel (%p190) target = $region24
      $region23: #{conv_block_forward.4} parent=11 // pred_region
        _
      $region24: #{conv_block_forward.4} parent=11 // pred_fallthru
        _
    $region12: #{conv_block_forward.4} parent=5 // pred_fallthru
      _
    %p193 = scmp.lt.s32.totalorder %s12, 2
    // Predicated region
    $region25: #{conv_block_forward.4} parent=5 // pred_check
      %p194 = pneg %p193
    $region26: #{conv_block_forward.4} parent=5 // pred_check_branch
      %196 = sbr.rel (%p194) target = $region28
    $region27: #{conv_block_forward.4} parent=5 // pred_region
      // Predicated region
      $region29: #{conv_block_forward.4} parent=27 // pred_check
        %p197 = pneg %p44
      $region30: #{conv_block_forward.4} parent=27 // pred_check_branch
        %199 = sbr.rel (%p197) target = $region32
      $region31: #{conv_block_forward.4} parent=27 // pred_region
        %p200 = scmp.lt.s32.totalorder %s19, 1
        %s201 = scalar_select %p200, %s19, 1
        %s202 = smul.addr %s201, 32
        %s203 = smul.addr %s202, 4
        %s204 = scalar_lea.vmem %s0, %s203
      $region32: #{conv_block_forward.4} parent=27 // pred_fallthru
        _
    $region28: #{conv_block_forward.4} parent=5 // pred_fallthru
      _
    %p205 = scmp.le.s32.totalorder 1, %s12
    %p206 = scmp.lt.s32.totalorder %s12, 3
    %p207 = pnand %p205, %p206
    %p208 = pneg %p207
    // Predicated region
    $region33: #{conv_block_forward.4} parent=5 // pred_check
      _
    $region34: #{conv_block_forward.4} parent=5 // pred_check_branch
      %210 = sbr.rel (%p207) target = $region36
    $region35: #{conv_block_forward.4} parent=5 // pred_region
      %s211 = ssub.s32 %s12, 1
      %p212 = scmp.lt.s32.totalorder %s21, 1
      %s213 = scalar_select %p212, %s21, 1
      %s214 = smul.addr %s213, 32
      %s215 = smul.addr %s214, 4
      %s216 = scalar_lea.vmem %s0, %s215
      %p217 = pneg %p50
      %p218 = pneg %p47
      %p219 = pneg %p71
      %p220 = pneg %p68
      %p221 = pneg %p92
      %p222 = pneg %p89
      %p223 = pneg %p113
      %p224 = pneg %p110
      %p225 = pneg %p141
      %p226 = pneg %p138
      %s227 = smul.u32 16, %s22
      %p228 = scmp.lt.s32.totalorder %s21, 1
      %s229 = scalar_select %p228, %s21, 1
      %p230 = scmp.lt.s32.totalorder %s227, 15
      %s231 = scalar_select %p230, %s227, 15
      %s232 = smul.addr %s231, 2
      %s233 = smul.addr %s229, 32
      %s234 = sadd.s32 %s232, %s233
      %s235 = smul.addr %s234, 4
      %s236 = scalar_lea.vmem %s4, %s235
      %p237 = pneg %p169
      %p238 = pneg %p166
      %p239 = scmp.lt.s32.totalorder %s21, 1
      %s240 = scalar_select %p239, %s21, 1
      %p241 = scmp.lt.s32.totalorder %s22, 0
      %s242 = scalar_select %p241, %s22, 0
      %s243 = sadd.s32 %s242, %s240
      %s244 = smul.addr %s243, 2
      %s245 = scalar_lea.vmem %s5, %s244
      %p246 = scmp.lt.s32.totalorder %s21, 1
      %s247 = scalar_select %p246, %s21, 1
      %s248 = smul.addr %s247, 32
      %s249 = smul.addr %s248, 4
      %s250 = scalar_lea.vmem %s0, %s249
      %s251 = smul.u32 16, %s22
      %p252 = scmp.lt.s32.totalorder %s21, 1
      %s253 = scalar_select %p252, %s21, 1
      %p254 = scmp.lt.s32.totalorder %s251, 15
      %s255 = scalar_select %p254, %s251, 15
      %s256 = smul.addr %s255, 2
      %s257 = smul.addr %s253, 32
      %s258 = sadd.s32 %s256, %s257
      %s259 = smul.addr %s258, 4
      %s260 = scalar_lea.vmem %s4, %s259
      %s261 = smul.u32 16, %s22
      %p262 = scmp.lt.s32.totalorder %s21, 1
      %s263 = scalar_select %p262, %s21, 1
      %p264 = scmp.lt.s32.totalorder %s22, 0
      %s265 = scalar_select %p264, %s22, 0
      %s266 = sadd.s32 %s265, %s263
      %s267 = smul.addr %s266, 2
      %s268 = scalar_lea.vmem %s5, %s267
      %s270 = smul.u32 %s22, 16
      %s271 = smul.u32 %s270, 2
      %s272 = smul.addr %s271, 4
      %s273 = scalar_lea.vmem %s250, %s272
      %v274 = vld [vmem:[%s273] sm:$0xf]
      %v275 = vld [vmem:[%s273 + $0x4] sm:$0xf]
      %v276 = vld [vmem:[%s273 + $0x8] sm:$0xf]
      %v277 = vld [vmem:[%s273 + $0xc] sm:$0xf]
      %v278 = vld [vmem:[%s273 + $0x10] sm:$0xf]
      %v279 = vld [vmem:[%s273 + $0x14] sm:$0xf]
      %v280 = vld [vmem:[%s273 + $0x18] sm:$0xf]
      %v281 = vld [vmem:[%s273 + $0x1c] sm:$0xf]
      %v282 = vld [vmem:[%s273 + $0x20] sm:$0xf]
      %v283 = vld [vmem:[%s273 + $0x24] sm:$0xf]
      %v284 = vld [vmem:[%s273 + $0x28] sm:$0xf]
      %v285 = vld [vmem:[%s273 + $0x2c] sm:$0xf]
      %v286 = vld [vmem:[%s273 + $0x30] sm:$0xf]
      %v287 = vld [vmem:[%s273 + $0x34] sm:$0xf]
      %v288 = vld [vmem:[%s273 + $0x38] sm:$0xf]
      %v289 = vld [vmem:[%s273 + $0x3c] sm:$0xf]
      %v290 = vld [vmem:[%s273 + $0x40] sm:$0xf]
      %v291 = vld [vmem:[%s273 + $0x44] sm:$0xf]
      %v292 = vld [vmem:[%s273 + $0x48] sm:$0xf]
      %v293 = vld [vmem:[%s273 + $0x4c] sm:$0xf]
      %v294 = vld [vmem:[%s273 + $0x50] sm:$0xf]
      %v295 = vld [vmem:[%s273 + $0x54] sm:$0xf]
      %v296 = vld [vmem:[%s273 + $0x58] sm:$0xf]
      %v297 = vld [vmem:[%s273 + $0x5c] sm:$0xf]
      %v298 = vld [vmem:[%s273 + $0x60] sm:$0xf]
      %v299 = vld [vmem:[%s273 + $0x64] sm:$0xf]
      %v300 = vld [vmem:[%s273 + $0x68] sm:$0xf]
      %v301 = vld [vmem:[%s273 + $0x6c] sm:$0xf]
      %v302 = vld [vmem:[%s273 + $0x70] sm:$0xf]
      %v303 = vld [vmem:[%s273 + $0x74] sm:$0xf]
      %v304 = vld [vmem:[%s273 + $0x78] sm:$0xf]
      %v305 = vld [vmem:[%s273 + $0x7c] sm:$0xf]
      %v306 = vld [vmem:[%s2] sm:$0x1]
      %v307 = vld [vmem:[%s3] sm:$0x1]
      %v308 = vunpack.c.l.bf16 %v274
      %v309 = vunpack.c.l.bf16 %v275
      %v310 = vunpack.c.l.bf16 %v276
      %v311 = vunpack.c.l.bf16 %v277
      %v312 = vunpack.c.l.bf16 %v278
      %v313 = vunpack.c.l.bf16 %v279
      %v314 = vunpack.c.l.bf16 %v280
      %v315 = vunpack.c.l.bf16 %v281
      %v316 = vunpack.c.l.bf16 %v282
      %v317 = vunpack.c.l.bf16 %v283
      %v318 = vunpack.c.l.bf16 %v284
      %v319 = vunpack.c.l.bf16 %v285
      %v320 = vunpack.c.l.bf16 %v286
      %v321 = vunpack.c.l.bf16 %v287
      %v322 = vunpack.c.l.bf16 %v288
      %v323 = vunpack.c.l.bf16 %v289
      %v324 = vunpack.c.l.bf16 %v290
      %v325 = vunpack.c.l.bf16 %v291
      %v326 = vunpack.c.l.bf16 %v292
      %v327 = vunpack.c.l.bf16 %v293
      %v328 = vunpack.c.l.bf16 %v294
      %v329 = vunpack.c.l.bf16 %v295
      %v330 = vunpack.c.l.bf16 %v296
      %v331 = vunpack.c.l.bf16 %v297
      %v332 = vunpack.c.l.bf16 %v298
      %v333 = vunpack.c.l.bf16 %v299
      %v334 = vunpack.c.l.bf16 %v300
      %v335 = vunpack.c.l.bf16 %v301
      %v336 = vunpack.c.l.bf16 %v302
      %v337 = vunpack.c.l.bf16 %v303
      %v338 = vunpack.c.l.bf16 %v304
      %v339 = vunpack.c.l.bf16 %v305
      %v341 = vlaneseq
      %v342 = vshrl.u32 %v341, 7
      %v343 = vsub.s32 0, %v342
      %v344 = vrot.slane %v306, %v343
      %v346 = vmul.f32 %v308, %v344
      %v347 = vmul.f32 %v309, %v344
      %v348 = vmul.f32 %v310, %v344
      %v349 = vmul.f32 %v311, %v344
      %v350 = vmul.f32 %v312, %v344
      %v351 = vmul.f32 %v313, %v344
      %v352 = vmul.f32 %v314, %v344
      %v353 = vmul.f32 %v315, %v344
      %v354 = vmul.f32 %v316, %v344
      %v355 = vmul.f32 %v317, %v344
      %v356 = vmul.f32 %v318, %v344
      %v357 = vmul.f32 %v319, %v344
      %v358 = vmul.f32 %v320, %v344
      %v359 = vmul.f32 %v321, %v344
      %v360 = vmul.f32 %v322, %v344
      %v361 = vmul.f32 %v323, %v344
      %v362 = vmul.f32 %v324, %v344
      %v363 = vmul.f32 %v325, %v344
      %v364 = vmul.f32 %v326, %v344
      %v365 = vmul.f32 %v327, %v344
      %v366 = vmul.f32 %v328, %v344
      %v367 = vmul.f32 %v329, %v344
      %v368 = vmul.f32 %v330, %v344
      %v369 = vmul.f32 %v331, %v344
      %v370 = vmul.f32 %v332, %v344
      %v371 = vmul.f32 %v333, %v344
      %v372 = vmul.f32 %v334, %v344
      %v373 = vmul.f32 %v335, %v344
      %v374 = vmul.f32 %v336, %v344
      %v375 = vmul.f32 %v337, %v344
      %v376 = vmul.f32 %v338, %v344
      %v377 = vmul.f32 %v339, %v344
      %v379 = vlaneseq
      %v380 = vshrl.u32 %v379, 7
      %v381 = vsub.s32 0, %v380
      %v382 = vrot.slane %v307, %v381
      %v384 = vadd.f32 %v346, %v382
      %v385 = vadd.f32 %v347, %v382
      %v386 = vadd.f32 %v348, %v382
      %v387 = vadd.f32 %v349, %v382
      %v388 = vadd.f32 %v350, %v382
      %v389 = vadd.f32 %v351, %v382
      %v390 = vadd.f32 %v352, %v382
      %v391 = vadd.f32 %v353, %v382
      %v392 = vadd.f32 %v354, %v382
      %v393 = vadd.f32 %v355, %v382
      %v394 = vadd.f32 %v356, %v382
      %v395 = vadd.f32 %v357, %v382
      %v396 = vadd.f32 %v358, %v382
      %v397 = vadd.f32 %v359, %v382
      %v398 = vadd.f32 %v360, %v382
      %v399 = vadd.f32 %v361, %v382
      %v400 = vadd.f32 %v362, %v382
      %v401 = vadd.f32 %v363, %v382
      %v402 = vadd.f32 %v364, %v382
      %v403 = vadd.f32 %v365, %v382
      %v404 = vadd.f32 %v366, %v382
      %v405 = vadd.f32 %v367, %v382
      %v406 = vadd.f32 %v368, %v382
      %v407 = vadd.f32 %v369, %v382
      %v408 = vadd.f32 %v370, %v382
      %v409 = vadd.f32 %v371, %v382
      %v410 = vadd.f32 %v372, %v382
      %v411 = vadd.f32 %v373, %v382
      %v412 = vadd.f32 %v374, %v382
      %v413 = vadd.f32 %v375, %v382
      %v414 = vadd.f32 %v376, %v382
      %v415 = vadd.f32 %v377, %v382
      %vm416 = vcmp.ge.f32.partialorder %v384, 0.0
      %vm417 = vcmp.ge.f32.partialorder %v385, 0.0
      %vm418 = vcmp.ge.f32.partialorder %v386, 0.0
      %vm419 = vcmp.ge.f32.partialorder %v387, 0.0
      %vm420 = vcmp.ge.f32.partialorder %v388, 0.0
      %vm421 = vcmp.ge.f32.partialorder %v389, 0.0
      %vm422 = vcmp.ge.f32.partialorder %v390, 0.0
      %vm423 = vcmp.ge.f32.partialorder %v391, 0.0
      %vm424 = vcmp.ge.f32.partialorder %v392, 0.0
      %vm425 = vcmp.ge.f32.partialorder %v393, 0.0
      %vm426 = vcmp.ge.f32.partialorder %v394, 0.0
      %vm427 = vcmp.ge.f32.partialorder %v395, 0.0
      %vm428 = vcmp.ge.f32.partialorder %v396, 0.0
      %vm429 = vcmp.ge.f32.partialorder %v397, 0.0
      %vm430 = vcmp.ge.f32.partialorder %v398, 0.0
      %vm431 = vcmp.ge.f32.partialorder %v399, 0.0
      %vm432 = vcmp.ge.f32.partialorder %v400, 0.0
      %vm433 = vcmp.ge.f32.partialorder %v401, 0.0
      %vm434 = vcmp.ge.f32.partialorder %v402, 0.0
      %vm435 = vcmp.ge.f32.partialorder %v403, 0.0
      %vm436 = vcmp.ge.f32.partialorder %v404, 0.0
      %vm437 = vcmp.ge.f32.partialorder %v405, 0.0
      %vm438 = vcmp.ge.f32.partialorder %v406, 0.0
      %vm439 = vcmp.ge.f32.partialorder %v407, 0.0
      %vm440 = vcmp.ge.f32.partialorder %v408, 0.0
      %vm441 = vcmp.ge.f32.partialorder %v409, 0.0
      %vm442 = vcmp.ge.f32.partialorder %v410, 0.0
      %vm443 = vcmp.ge.f32.partialorder %v411, 0.0
      %vm444 = vcmp.ge.f32.partialorder %v412, 0.0
      %vm445 = vcmp.ge.f32.partialorder %v413, 0.0
      %vm446 = vcmp.ge.f32.partialorder %v414, 0.0
      %vm447 = vcmp.ge.f32.partialorder %v415, 0.0
      %v448 = vmul.f32 %v384, 0.01
      %v449 = vmul.f32 %v385, 0.01
      %v450 = vmul.f32 %v386, 0.01
      %v451 = vmul.f32 %v387, 0.01
      %v452 = vmul.f32 %v388, 0.01
      %v453 = vmul.f32 %v389, 0.01
      %v454 = vmul.f32 %v390, 0.01
      %v455 = vmul.f32 %v391, 0.01
      %v456 = vmul.f32 %v392, 0.01
      %v457 = vmul.f32 %v393, 0.01
      %v458 = vmul.f32 %v394, 0.01
      %v459 = vmul.f32 %v395, 0.01
      %v460 = vmul.f32 %v396, 0.01
      %v461 = vmul.f32 %v397, 0.01
      %v462 = vmul.f32 %v398, 0.01
      %v463 = vmul.f32 %v399, 0.01
      %v464 = vmul.f32 %v400, 0.01
      %v465 = vmul.f32 %v401, 0.01
      %v466 = vmul.f32 %v402, 0.01
      %v467 = vmul.f32 %v403, 0.01
      %v468 = vmul.f32 %v404, 0.01
      %v469 = vmul.f32 %v405, 0.01
      %v470 = vmul.f32 %v406, 0.01
      %v471 = vmul.f32 %v407, 0.01
      %v472 = vmul.f32 %v408, 0.01
      %v473 = vmul.f32 %v409, 0.01
      %v474 = vmul.f32 %v410, 0.01
      %v475 = vmul.f32 %v411, 0.01
      %v476 = vmul.f32 %v412, 0.01
      %v477 = vmul.f32 %v413, 0.01
      %v478 = vmul.f32 %v414, 0.01
      %v479 = vmul.f32 %v415, 0.01
      %v480 = vsel %vm416, %v384, %v448
      %v481 = vsel %vm417, %v385, %v449
      %v482 = vsel %vm418, %v386, %v450
      %v483 = vsel %vm419, %v387, %v451
      %v484 = vsel %vm420, %v388, %v452
      %v485 = vsel %vm421, %v389, %v453
      %v486 = vsel %vm422, %v390, %v454
      %v487 = vsel %vm423, %v391, %v455
      %v488 = vsel %vm424, %v392, %v456
      %v489 = vsel %vm425, %v393, %v457
      %v490 = vsel %vm426, %v394, %v458
      %v491 = vsel %vm427, %v395, %v459
      %v492 = vsel %vm428, %v396, %v460
      %v493 = vsel %vm429, %v397, %v461
      %v494 = vsel %vm430, %v398, %v462
      %v495 = vsel %vm431, %v399, %v463
      %v496 = vsel %vm432, %v400, %v464
      %v497 = vsel %vm433, %v401, %v465
      %v498 = vsel %vm434, %v402, %v466
      %v499 = vsel %vm435, %v403, %v467
      %v500 = vsel %vm436, %v404, %v468
      %v501 = vsel %vm437, %v405, %v469
      %v502 = vsel %vm438, %v406, %v470
      %v503 = vsel %vm439, %v407, %v471
      %v504 = vsel %vm440, %v408, %v472
      %v505 = vsel %vm441, %v409, %v473
      %v506 = vsel %vm442, %v410, %v474
      %v507 = vsel %vm443, %v411, %v475
      %v508 = vsel %vm444, %v412, %v476
      %v509 = vsel %vm445, %v413, %v477
      %v510 = vsel %vm446, %v414, %v478
      %v511 = vsel %vm447, %v415, %v479
      %v512 = vpack.c.bf16 %v481, %v480
      %v513 = vpack.c.bf16 %v483, %v482
      %v514 = vpack.c.bf16 %v485, %v484
      %v515 = vpack.c.bf16 %v487, %v486
      %v516 = vpack.c.bf16 %v489, %v488
      %v517 = vpack.c.bf16 %v491, %v490
      %v518 = vpack.c.bf16 %v493, %v492
      %v519 = vpack.c.bf16 %v495, %v494
      %v520 = vpack.c.bf16 %v497, %v496
      %v521 = vpack.c.bf16 %v499, %v498
      %v522 = vpack.c.bf16 %v501, %v500
      %v523 = vpack.c.bf16 %v503, %v502
      %v524 = vpack.c.bf16 %v505, %v504
      %v525 = vpack.c.bf16 %v507, %v506
      %v526 = vpack.c.bf16 %v509, %v508
      %v527 = vpack.c.bf16 %v511, %v510
      %s528 = ssub.s32 %s270, 1
      %p529 = scmp.gt.s32.totalorder %s528, 0
      %s530 = scalar_select %p529, %s528, 0
      %s531 = smul.u32 %s530, 2
      %s532 = smul.addr %s531, 4
      %s533 = scalar_lea.vmem %s250, %s532
      %v534 = vld [vmem:[%s533] sm:$0xf]
      %v535 = vld [vmem:[%s533 + $0x4] sm:$0xf]
      %v536 = vunpack.c.l.bf16 %v534
      %v537 = vunpack.c.l.bf16 %v535
      %v538 = vmul.f32 %v536, %v344
      %v539 = vmul.f32 %v537, %v344
      %v540 = vadd.f32 %v538, %v382
      %v541 = vadd.f32 %v539, %v382
      %vm542 = vcmp.ge.f32.partialorder %v540, 0.0
      %vm543 = vcmp.ge.f32.partialorder %v541, 0.0
      %v544 = vmul.f32 %v540, 0.01
      %v545 = vmul.f32 %v541, 0.01
      %v546 = vsel %vm542, %v540, %v544
      %v547 = vsel %vm543, %v541, %v545
      %v548 = vpack.c.bf16 %v547, %v546
      %p549 = scmp.gt.s32.totalorder %s270, 0
      %s550 = scalar_select %p549, 1, 0
      %s551 = scvt.s32.f32 %s550
      %p553 = scmp.ne.f32.partialorder %s551, %s551
      %s554 = sshrl.u32 %s551, 16
      %s555 = sand.u32 %s554, 1
      %s556 = sadd.s32 32767, %s555
      %s557 = sadd.s32 %s551, %s556
      %s558 = sand.u32 %s557, 4294901760
      %s559 = scalar_select %p553, 2143289344, %s558
      %s561 = sshrl.u32 %s559, 16
      %s562 = sshll.u32 %s561, 16
      %s563 = sor.u32 %s561, %s562
      %v564 = vstv %s563
      %v566 = vmul.bf16 %v548, %v564
      %s567 = sadd.s32 %s270, 16
      %p568 = scmp.lt.s32.totalorder %s567, 15
      %s569 = scalar_select %p568, %s567, 15
      %s570 = smul.u32 %s569, 2
      %s571 = smul.addr %s570, 4
      %s572 = scalar_lea.vmem %s250, %s571
      %v573 = vld [vmem:[%s572] sm:$0xf]
      %v574 = vld [vmem:[%s572 + $0x4] sm:$0xf]
      %v575 = vunpack.c.l.bf16 %v573
      %v576 = vunpack.c.l.bf16 %v574
      %v577 = vmul.f32 %v575, %v344
      %v578 = vmul.f32 %v576, %v344
      %v579 = vadd.f32 %v577, %v382
      %v580 = vadd.f32 %v578, %v382
      %vm581 = vcmp.ge.f32.partialorder %v579, 0.0
      %vm582 = vcmp.ge.f32.partialorder %v580, 0.0
      %v583 = vmul.f32 %v579, 0.01
      %v584 = vmul.f32 %v580, 0.01
      %v585 = vsel %vm581, %v579, %v583
      %v586 = vsel %vm582, %v580, %v584
      %v587 = vpack.c.bf16 %v586, %v585
      %p588 = scmp.lt.s32.totalorder %s567, 16
      %s589 = scalar_select %p588, 1, 0
      %s590 = scvt.s32.f32 %s589
      %p592 = scmp.ne.f32.partialorder %s590, %s590
      %s593 = sshrl.u32 %s590, 16
      %s594 = sand.u32 %s593, 1
      %s595 = sadd.s32 32767, %s594
      %s596 = sadd.s32 %s590, %s595
      %s597 = sand.u32 %s596, 4294901760
      %s598 = scalar_select %p592, 2143289344, %s597
      %s600 = sshrl.u32 %s598, 16
      %s601 = sshll.u32 %s600, 16
      %s602 = sor.u32 %s600, %s601
      %v603 = vstv %s602
      %v605 = vmul.bf16 %v587, %v603
      %v607 = vshrl.u32 %v566, 16
      %v609 = vrot.slane %v607, 7
      %v610 = vshll.u32 %v566, 16
      %v612 = vor.u32 %v609, %v610
      %v614 = vshrl.u32 %v512, 16
      %v616 = vrot.slane %v614, 7
      %v617 = vshll.u32 %v512, 16
      %v619 = vor.u32 %v616, %v617
      %v621 = vshrl.u32 %v513, 16
      %v623 = vrot.slane %v621, 7
      %v624 = vshll.u32 %v513, 16
      %v626 = vor.u32 %v623, %v624
      %v628 = vshrl.u32 %v514, 16
      %v630 = vrot.slane %v628, 7
      %v631 = vshll.u32 %v514, 16
      %v633 = vor.u32 %v630, %v631
      %v635 = vshrl.u32 %v515, 16
      %v637 = vrot.slane %v635, 7
      %v638 = vshll.u32 %v515, 16
      %v640 = vor.u32 %v637, %v638
      %v642 = vshrl.u32 %v516, 16
      %v644 = vrot.slane %v642, 7
      %v645 = vshll.u32 %v516, 16
      %v647 = vor.u32 %v644, %v645
      %v649 = vshrl.u32 %v517, 16
      %v651 = vrot.slane %v649, 7
      %v652 = vshll.u32 %v517, 16
      %v654 = vor.u32 %v651, %v652
      %v656 = vshrl.u32 %v518, 16
      %v658 = vrot.slane %v656, 7
      %v659 = vshll.u32 %v518, 16
      %v661 = vor.u32 %v658, %v659
      %v663 = vshrl.u32 %v519, 16
      %v665 = vrot.slane %v663, 7
      %v666 = vshll.u32 %v519, 16
      %v668 = vor.u32 %v665, %v666
      %v670 = vshrl.u32 %v520, 16
      %v672 = vrot.slane %v670, 7
      %v673 = vshll.u32 %v520, 16
      %v675 = vor.u32 %v672, %v673
      %v677 = vshrl.u32 %v521, 16
      %v679 = vrot.slane %v677, 7
      %v680 = vshll.u32 %v521, 16
      %v682 = vor.u32 %v679, %v680
      %v684 = vshrl.u32 %v522, 16
      %v686 = vrot.slane %v684, 7
      %v687 = vshll.u32 %v522, 16
      %v689 = vor.u32 %v686, %v687
      %v691 = vshrl.u32 %v523, 16
      %v693 = vrot.slane %v691, 7
      %v694 = vshll.u32 %v523, 16
      %v696 = vor.u32 %v693, %v694
      %v698 = vshrl.u32 %v524, 16
      %v700 = vrot.slane %v698, 7
      %v701 = vshll.u32 %v524, 16
      %v703 = vor.u32 %v700, %v701
      %v705 = vshrl.u32 %v525, 16
      %v707 = vrot.slane %v705, 7
      %v708 = vshll.u32 %v525, 16
      %v710 = vor.u32 %v707, %v708
      %v712 = vshrl.u32 %v526, 16
      %v714 = vrot.slane %v712, 7
      %v715 = vshll.u32 %v526, 16
      %v717 = vor.u32 %v714, %v715
      %v719 = vshrl.u32 %v527, 16
      %v721 = vrot.slane %v719, 7
      %v722 = vshll.u32 %v527, 16
      %v724 = vor.u32 %v721, %v722
      %v726 = vshrl.u32 %v605, 16
      %v728 = vrot.slane %v726, 7
      %v729 = vshll.u32 %v605, 16
      %v731 = vor.u32 %v728, %v729
      %vm768 = vcmask 1040384
      %vm769 = vsmask.f32 256
      %vm770 = vmand %vm768, %vm769
      %v771 = vsel %vm770, 0, %v612
      %v772 = vsel %vm770, 0, %v619
      %v773 = vsel %vm770, 0, %v626
      %v774 = vsel %vm770, 0, %v633
      %v775 = vsel %vm770, 0, %v640
      %v776 = vsel %vm770, 0, %v647
      %v777 = vsel %vm770, 0, %v654
      %v778 = vsel %vm770, 0, %v661
      %v779 = vsel %vm770, 0, %v668
      %v780 = vsel %vm770, 0, %v675
      %v781 = vsel %vm770, 0, %v682
      %v782 = vsel %vm770, 0, %v689
      %v783 = vsel %vm770, 0, %v696
      %v784 = vsel %vm770, 0, %v703
      %v785 = vsel %vm770, 0, %v710
      %v786 = vsel %vm770, 0, %v717
      %v787 = vsel %vm770, 0, %v724
      %v788 = vsel %vm770, 0, %v731
      %v789 = vsel %vm770, %v609, 0
      %v790 = vsel %vm770, %v616, 0
      %v791 = vsel %vm770, %v623, 0
      %v792 = vsel %vm770, %v630, 0
      %v793 = vsel %vm770, %v637, 0
      %v794 = vsel %vm770, %v644, 0
      %v795 = vsel %vm770, %v651, 0
      %v796 = vsel %vm770, %v658, 0
      %v797 = vsel %vm770, %v665, 0
      %v798 = vsel %vm770, %v672, 0
      %v799 = vsel %vm770, %v679, 0
      %v800 = vsel %vm770, %v686, 0
      %v801 = vsel %vm770, %v693, 0
      %v802 = vsel %vm770, %v700, 0
      %v803 = vsel %vm770, %v707, 0
      %v804 = vsel %vm770, %v714, 0
      %v805 = vsel %vm770, %v721, 0
      %v806 = vsel %vm770, %v728, 0
      %vm807 = vsmask.f32 7424
      %v809 = vshrl.u32 %v771, 16
      %v811 = vshll.u32 %v771, 16
      %v813 = vrot.slane %v811, 1
      %v814 = vor.u32 %v809, %v813
      %v816 = vshll.u32 %v789, 16
      %v818 = vrot.slane %v816, 1
      %v819 = vsel %vm807, %v814, %v818
      %v821 = vshrl.u32 %v772, 16
      %v823 = vshll.u32 %v772, 16
      %v825 = vrot.slane %v823, 1
      %v826 = vor.u32 %v821, %v825
      %v828 = vshll.u32 %v790, 16
      %v830 = vrot.slane %v828, 1
      %v831 = vsel %vm807, %v826, %v830
      %v833 = vshrl.u32 %v773, 16
      %v835 = vshll.u32 %v773, 16
      %v837 = vrot.slane %v835, 1
      %v838 = vor.u32 %v833, %v837
      %v840 = vshll.u32 %v791, 16
      %v842 = vrot.slane %v840, 1
      %v843 = vsel %vm807, %v838, %v842
      %v845 = vshrl.u32 %v774, 16
      %v847 = vshll.u32 %v774, 16
      %v849 = vrot.slane %v847, 1
      %v850 = vor.u32 %v845, %v849
      %v852 = vshll.u32 %v792, 16
      %v854 = vrot.slane %v852, 1
      %v855 = vsel %vm807, %v850, %v854
      %v857 = vshrl.u32 %v775, 16
      %v859 = vshll.u32 %v775, 16
      %v861 = vrot.slane %v859, 1
      %v862 = vor.u32 %v857, %v861
      %v864 = vshll.u32 %v793, 16
      %v866 = vrot.slane %v864, 1
      %v867 = vsel %vm807, %v862, %v866
      %v869 = vshrl.u32 %v776, 16
      %v871 = vshll.u32 %v776, 16
      %v873 = vrot.slane %v871, 1
      %v874 = vor.u32 %v869, %v873
      %v876 = vshll.u32 %v794, 16
      %v878 = vrot.slane %v876, 1
      %v879 = vsel %vm807, %v874, %v878
      %v881 = vshrl.u32 %v777, 16
      %v883 = vshll.u32 %v777, 16
      %v885 = vrot.slane %v883, 1
      %v886 = vor.u32 %v881, %v885
      %v888 = vshll.u32 %v795, 16
      %v890 = vrot.slane %v888, 1
      %v891 = vsel %vm807, %v886, %v890
      %v893 = vshrl.u32 %v778, 16
      %v895 = vshll.u32 %v778, 16
      %v897 = vrot.slane %v895, 1
      %v898 = vor.u32 %v893, %v897
      %v900 = vshll.u32 %v796, 16
      %v902 = vrot.slane %v900, 1
      %v903 = vsel %vm807, %v898, %v902
      %v905 = vshrl.u32 %v779, 16
      %v907 = vshll.u32 %v779, 16
      %v909 = vrot.slane %v907, 1
      %v910 = vor.u32 %v905, %v909
      %v912 = vshll.u32 %v797, 16
      %v914 = vrot.slane %v912, 1
      %v915 = vsel %vm807, %v910, %v914
      %v917 = vshrl.u32 %v780, 16
      %v919 = vshll.u32 %v780, 16
      %v921 = vrot.slane %v919, 1
      %v922 = vor.u32 %v917, %v921
      %v924 = vshll.u32 %v798, 16
      %v926 = vrot.slane %v924, 1
      %v927 = vsel %vm807, %v922, %v926
      %v929 = vshrl.u32 %v781, 16
      %v931 = vshll.u32 %v781, 16
      %v933 = vrot.slane %v931, 1
      %v934 = vor.u32 %v929, %v933
      %v936 = vshll.u32 %v799, 16
      %v938 = vrot.slane %v936, 1
      %v939 = vsel %vm807, %v934, %v938
      %v941 = vshrl.u32 %v782, 16
      %v943 = vshll.u32 %v782, 16
      %v945 = vrot.slane %v943, 1
      %v946 = vor.u32 %v941, %v945
      %v948 = vshll.u32 %v800, 16
      %v950 = vrot.slane %v948, 1
      %v951 = vsel %vm807, %v946, %v950
      %v953 = vshrl.u32 %v783, 16
      %v955 = vshll.u32 %v783, 16
      %v957 = vrot.slane %v955, 1
      %v958 = vor.u32 %v953, %v957
      %v960 = vshll.u32 %v801, 16
      %v962 = vrot.slane %v960, 1
      %v963 = vsel %vm807, %v958, %v962
      %v965 = vshrl.u32 %v784, 16
      %v967 = vshll.u32 %v784, 16
      %v969 = vrot.slane %v967, 1
      %v970 = vor.u32 %v965, %v969
      %v972 = vshll.u32 %v802, 16
      %v974 = vrot.slane %v972, 1
      %v975 = vsel %vm807, %v970, %v974
      %v977 = vshrl.u32 %v785, 16
      %v979 = vshll.u32 %v785, 16
      %v981 = vrot.slane %v979, 1
      %v982 = vor.u32 %v977, %v981
      %v984 = vshll.u32 %v803, 16
      %v986 = vrot.slane %v984, 1
      %v987 = vsel %vm807, %v982, %v986
      %v989 = vshrl.u32 %v786, 16
      %v991 = vshll.u32 %v786, 16
      %v993 = vrot.slane %v991, 1
      %v994 = vor.u32 %v989, %v993
      %v996 = vshll.u32 %v804, 16
      %v998 = vrot.slane %v996, 1
      %v999 = vsel %vm807, %v994, %v998
      %vm1048 = vcmask 1046528
      %v1049 = vrot.slane %v771, 1
      %v1050 = vrot.slane %v789, 1
      %v1051 = vsel %vm1048, %v1049, %v1050
      %v1052 = vrot.slane %v772, 1
      %v1053 = vrot.slane %v790, 1
      %v1054 = vsel %vm1048, %v1052, %v1053
      %v1055 = vrot.slane %v773, 1
      %v1056 = vrot.slane %v791, 1
      %v1057 = vsel %vm1048, %v1055, %v1056
      %v1058 = vrot.slane %v774, 1
      %v1059 = vrot.slane %v792, 1
      %v1060 = vsel %vm1048, %v1058, %v1059
      %v1061 = vrot.slane %v775, 1
      %v1062 = vrot.slane %v793, 1
      %v1063 = vsel %vm1048, %v1061, %v1062
      %v1064 = vrot.slane %v776, 1
      %v1065 = vrot.slane %v794, 1
      %v1066 = vsel %vm1048, %v1064, %v1065
      %v1067 = vrot.slane %v777, 1
      %v1068 = vrot.slane %v795, 1
      %v1069 = vsel %vm1048, %v1067, %v1068
      %v1070 = vrot.slane %v778, 1
      %v1071 = vrot.slane %v796, 1
      %v1072 = vsel %vm1048, %v1070, %v1071
      %v1073 = vrot.slane %v779, 1
      %v1074 = vrot.slane %v797, 1
      %v1075 = vsel %vm1048, %v1073, %v1074
      %v1076 = vrot.slane %v780, 1
      %v1077 = vrot.slane %v798, 1
      %v1078 = vsel %vm1048, %v1076, %v1077
      %v1079 = vrot.slane %v781, 1
      %v1080 = vrot.slane %v799, 1
      %v1081 = vsel %vm1048, %v1079, %v1080
      %v1082 = vrot.slane %v782, 1
      %v1083 = vrot.slane %v800, 1
      %v1084 = vsel %vm1048, %v1082, %v1083
      %v1085 = vrot.slane %v783, 1
      %v1086 = vrot.slane %v801, 1
      %v1087 = vsel %vm1048, %v1085, %v1086
      %v1088 = vrot.slane %v784, 1
      %v1089 = vrot.slane %v802, 1
      %v1090 = vsel %vm1048, %v1088, %v1089
      %v1091 = vrot.slane %v785, 1
      %v1092 = vrot.slane %v803, 1
      %v1093 = vsel %vm1048, %v1091, %v1092
      %v1094 = vrot.slane %v786, 1
      %v1095 = vrot.slane %v804, 1
      %v1096 = vsel %vm1048, %v1094, %v1095
      %v1114 = vshrl.u32 %v787, 16
      %v1116 = vshll.u32 %v787, 16
      %v1118 = vrot.slane %v1116, 1
      %v1119 = vor.u32 %v1114, %v1118
      %v1121 = vshll.u32 %v805, 16
      %v1123 = vrot.slane %v1121, 1
      %v1124 = vsel %vm807, %v1119, %v1123
      %v1128 = vrot.slane %v787, 1
      %v1129 = vrot.slane %v805, 1
      %v1130 = vsel %vm1048, %v1128, %v1129
      %v1133 = vshrl.u32 %v788, 16
      %v1135 = vshll.u32 %v788, 16
      %v1137 = vrot.slane %v1135, 1
      %v1138 = vor.u32 %v1133, %v1137
      %v1140 = vshll.u32 %v806, 16
      %v1142 = vrot.slane %v1140, 1
      %v1143 = vsel %vm807, %v1138, %v1142
      %v1147 = vrot.slane %v788, 1
      %v1148 = vrot.slane %v806, 1
      %v1149 = vsel %vm1048, %v1147, %v1148
      %v1151 = vld [vmem:[%s1] sm:$0xf]
      %v1152 = vld [vmem:[%s1 + $0x4] sm:$0xf]
      %v1153 = vld [vmem:[%s1 + $0x8] sm:$0xf]
      %v1154 = vld [vmem:[%s1 + $0xc] sm:$0xf]
      %v1155 = vld [vmem:[%s1 + $0x10] sm:$0xf]
      %v1156 = vld [vmem:[%s1 + $0x14] sm:$0xf]
      %v1157 = vld [vmem:[%s1 + $0x18] sm:$0xf]
      %v1158 = vld [vmem:[%s1 + $0x1c] sm:$0xf]
      %v1159 = vld [vmem:[%s1 + $0x20] sm:$0xf]
      %v1160 = vld [vmem:[%s1 + $0x24] sm:$0xf]
      %v1161 = vld [vmem:[%s1 + $0x28] sm:$0xf]
      %v1162 = vld [vmem:[%s1 + $0x2c] sm:$0xf]
      %v1163 = vld [vmem:[%s1 + $0x30] sm:$0xf]
      %v1164 = vld [vmem:[%s1 + $0x34] sm:$0xf]
      %v1165 = vld [vmem:[%s1 + $0x38] sm:$0xf]
      %v1166 = vld [vmem:[%s1 + $0x3c] sm:$0xf]
      %v1167 = vld [vmem:[%s1 + $0x40] sm:$0xf]
      %v1168 = vld [vmem:[%s1 + $0x44] sm:$0xf]
      %v1169 = vld [vmem:[%s1 + $0x48] sm:$0xf]
      %v1170 = vld [vmem:[%s1 + $0x4c] sm:$0xf]
      %v1171 = vld [vmem:[%s1 + $0x50] sm:$0xf]
      %v1172 = vld [vmem:[%s1 + $0x54] sm:$0xf]
      %v1173 = vld [vmem:[%s1 + $0x58] sm:$0xf]
      %v1174 = vld [vmem:[%s1 + $0x5c] sm:$0xf]
      %v1175 = vld [vmem:[%s1 + $0x60] sm:$0xf]
      %v1176 = vld [vmem:[%s1 + $0x64] sm:$0xf]
      %v1177 = vld [vmem:[%s1 + $0x68] sm:$0xf]
      %v1178 = vld [vmem:[%s1 + $0x6c] sm:$0xf]
      %v1179 = vld [vmem:[%s1 + $0x70] sm:$0xf]
      %v1180 = vld [vmem:[%s1 + $0x74] sm:$0xf]
      %v1181 = vld [vmem:[%s1 + $0x78] sm:$0xf]
      %v1182 = vld [vmem:[%s1 + $0x7c] sm:$0xf]
      %v1183 = vld [vmem:[%s1 + $0x80] sm:$0xf]
      %v1184 = vld [vmem:[%s1 + $0x84] sm:$0xf]
      %v1185 = vld [vmem:[%s1 + $0x88] sm:$0xf]
      %v1186 = vld [vmem:[%s1 + $0x8c] sm:$0xf]
      %v1187 = vld [vmem:[%s1 + $0x90] sm:$0xf]
      %v1188 = vld [vmem:[%s1 + $0x94] sm:$0xf]
      %v1189 = vld [vmem:[%s1 + $0x98] sm:$0xf]
      %v1190 = vld [vmem:[%s1 + $0x9c] sm:$0xf]
      %v1191 = vld [vmem:[%s1 + $0xa0] sm:$0xf]
      %v1192 = vld [vmem:[%s1 + $0xa4] sm:$0xf]
      %v1193 = vld [vmem:[%s1 + $0xa8] sm:$0xf]
      %v1194 = vld [vmem:[%s1 + $0xac] sm:$0xf]
      %v1195 = vld [vmem:[%s1 + $0xb0] sm:$0xf]
      %v1196 = vld [vmem:[%s1 + $0xb4] sm:$0xf]
      %v1197 = vld [vmem:[%s1 + $0xb8] sm:$0xf]
      %v1198 = vld [vmem:[%s1 + $0xbc] sm:$0xf]
      %v1199 = vld [vmem:[%s1 + $0xc0] sm:$0xf]
      %v1200 = vld [vmem:[%s1 + $0xc4] sm:$0xf]
      %v1201 = vld [vmem:[%s1 + $0xc8] sm:$0xf]
      %v1202 = vld [vmem:[%s1 + $0xcc] sm:$0xf]
      %v1203 = vld [vmem:[%s1 + $0xd0] sm:$0xf]
      %v1204 = vld [vmem:[%s1 + $0xd4] sm:$0xf]
      %v1205 = vld [vmem:[%s1 + $0xd8] sm:$0xf]
      %v1206 = vld [vmem:[%s1 + $0xdc] sm:$0xf]
      %v1207 = vld [vmem:[%s1 + $0xe0] sm:$0xf]
      %v1208 = vld [vmem:[%s1 + $0xe4] sm:$0xf]
      %v1209 = vld [vmem:[%s1 + $0xe8] sm:$0xf]
      %v1210 = vld [vmem:[%s1 + $0xec] sm:$0xf]
      %v1211 = vld [vmem:[%s1 + $0xf0] sm:$0xf]
      %v1212 = vld [vmem:[%s1 + $0xf4] sm:$0xf]
      %v1213 = vld [vmem:[%s1 + $0xf8] sm:$0xf]
      %v1214 = vld [vmem:[%s1 + $0xfc] sm:$0xf]
      %v1215 = vld [vmem:[%s1 + $0x100] sm:$0xf]
      %v1216 = vld [vmem:[%s1 + $0x104] sm:$0xf]
      %v1217 = vld [vmem:[%s1 + $0x108] sm:$0xf]
      %v1218 = vld [vmem:[%s1 + $0x10c] sm:$0xf]
      %v1219 = vld [vmem:[%s1 + $0x110] sm:$0xf]
      %v1220 = vld [vmem:[%s1 + $0x114] sm:$0xf]
      %v1221 = vld [vmem:[%s1 + $0x118] sm:$0xf]
      %v1222 = vld [vmem:[%s1 + $0x11c] sm:$0xf]
      %v1223 = vld [vmem:[%s1 + $0x120] sm:$0xf]
      %v1224 = vld [vmem:[%s1 + $0x124] sm:$0xf]
      %v1225 = vld [vmem:[%s1 + $0x128] sm:$0xf]
      %v1226 = vld [vmem:[%s1 + $0x12c] sm:$0xf]
      %v1227 = vld [vmem:[%s1 + $0x130] sm:$0xf]
      %v1228 = vld [vmem:[%s1 + $0x134] sm:$0xf]
      %v1229 = vld [vmem:[%s1 + $0x138] sm:$0xf]
      %v1230 = vld [vmem:[%s1 + $0x13c] sm:$0xf]
      %v1231 = vld [vmem:[%s1 + $0x140] sm:$0xf]
      %v1232 = vld [vmem:[%s1 + $0x144] sm:$0xf]
      %v1233 = vld [vmem:[%s1 + $0x148] sm:$0xf]
      %v1234 = vld [vmem:[%s1 + $0x14c] sm:$0xf]
      %v1235 = vld [vmem:[%s1 + $0x150] sm:$0xf]
      %v1236 = vld [vmem:[%s1 + $0x154] sm:$0xf]
      %v1237 = vld [vmem:[%s1 + $0x158] sm:$0xf]
      %v1238 = vld [vmem:[%s1 + $0x15c] sm:$0xf]
      %v1239 = vld [vmem:[%s1 + $0x160] sm:$0xf]
      %v1240 = vld [vmem:[%s1 + $0x164] sm:$0xf]
      %v1241 = vld [vmem:[%s1 + $0x168] sm:$0xf]
      %v1242 = vld [vmem:[%s1 + $0x16c] sm:$0xf]
      %v1243 = vld [vmem:[%s1 + $0x170] sm:$0xf]
      %v1244 = vld [vmem:[%s1 + $0x174] sm:$0xf]
      %v1245 = vld [vmem:[%s1 + $0x178] sm:$0xf]
      %v1246 = vld [vmem:[%s1 + $0x17c] sm:$0xf]
      %v1247 = vld [vmem:[%s1 + $0x180] sm:$0xf]
      %v1248 = vld [vmem:[%s1 + $0x184] sm:$0xf]
      %v1249 = vld [vmem:[%s1 + $0x188] sm:$0xf]
      %v1250 = vld [vmem:[%s1 + $0x18c] sm:$0xf]
      %v1251 = vld [vmem:[%s1 + $0x190] sm:$0xf]
      %v1252 = vld [vmem:[%s1 + $0x194] sm:$0xf]
      %v1253 = vld [vmem:[%s1 + $0x198] sm:$0xf]
      %v1254 = vld [vmem:[%s1 + $0x19c] sm:$0xf]
      %v1255 = vld [vmem:[%s1 + $0x1a0] sm:$0xf]
      %v1256 = vld [vmem:[%s1 + $0x1a4] sm:$0xf]
      %v1257 = vld [vmem:[%s1 + $0x1a8] sm:$0xf]
      %v1258 = vld [vmem:[%s1 + $0x1ac] sm:$0xf]
      %v1259 = vld [vmem:[%s1 + $0x1b0] sm:$0xf]
      %v1260 = vld [vmem:[%s1 + $0x1b4] sm:$0xf]
      %v1261 = vld [vmem:[%s1 + $0x1b8] sm:$0xf]
      %v1262 = vld [vmem:[%s1 + $0x1bc] sm:$0xf]
      %v1263 = vld [vmem:[%s1 + $0x1c0] sm:$0xf]
      %v1264 = vld [vmem:[%s1 + $0x1c4] sm:$0xf]
      %v1265 = vld [vmem:[%s1 + $0x1c8] sm:$0xf]
      %v1266 = vld [vmem:[%s1 + $0x1cc] sm:$0xf]
      %v1267 = vld [vmem:[%s1 + $0x1d0] sm:$0xf]
      %v1268 = vld [vmem:[%s1 + $0x1d4] sm:$0xf]
      %v1269 = vld [vmem:[%s1 + $0x1d8] sm:$0xf]
      %v1270 = vld [vmem:[%s1 + $0x1dc] sm:$0xf]
      %v1271 = vld [vmem:[%s1 + $0x1e0] sm:$0xf]
      %v1272 = vld [vmem:[%s1 + $0x1e4] sm:$0xf]
      %v1273 = vld [vmem:[%s1 + $0x1e8] sm:$0xf]
      %v1274 = vld [vmem:[%s1 + $0x1ec] sm:$0xf]
      %v1275 = vld [vmem:[%s1 + $0x1f0] sm:$0xf]
      %v1276 = vld [vmem:[%s1 + $0x1f4] sm:$0xf]
      %v1277 = vld [vmem:[%s1 + $0x1f8] sm:$0xf]
      %v1278 = vld [vmem:[%s1 + $0x1fc] sm:$0xf]
      %v1279 = vld [vmem:[%s1 + $0x200] sm:$0xf]
      %v1280 = vld [vmem:[%s1 + $0x204] sm:$0xf]
      %v1281 = vld [vmem:[%s1 + $0x208] sm:$0xf]
      %v1282 = vld [vmem:[%s1 + $0x20c] sm:$0xf]
      %v1283 = vld [vmem:[%s1 + $0x210] sm:$0xf]
      %v1284 = vld [vmem:[%s1 + $0x214] sm:$0xf]
      %v1285 = vld [vmem:[%s1 + $0x218] sm:$0xf]
      %v1286 = vld [vmem:[%s1 + $0x21c] sm:$0xf]
      %v1287 = vld [vmem:[%s1 + $0x220] sm:$0xf]
      %v1288 = vld [vmem:[%s1 + $0x224] sm:$0xf]
      %v1289 = vld [vmem:[%s1 + $0x228] sm:$0xf]
      %v1290 = vld [vmem:[%s1 + $0x22c] sm:$0xf]
      %v1291 = vld [vmem:[%s1 + $0x230] sm:$0xf]
      %v1292 = vld [vmem:[%s1 + $0x234] sm:$0xf]
      %v1293 = vld [vmem:[%s1 + $0x238] sm:$0xf]
      %v1294 = vld [vmem:[%s1 + $0x23c] sm:$0xf]
      %v1439 = vunpack.c.l.b16 %v1151
      %v1440 = vunpack.c.l.b16 %v1152
      %v1441 = vunpack.c.l.b16 %v1153
      %v1442 = vunpack.c.l.b16 %v1154
      %v1443 = vunpack.c.l.b16 %v1155
      %v1444 = vunpack.c.l.b16 %v1156
      %v1445 = vunpack.c.l.b16 %v1157
      %v1446 = vunpack.c.l.b16 %v1158
      %v1447 = vunpack.c.l.b16 %v1159
      %v1448 = vunpack.c.l.b16 %v1160
      %v1449 = vunpack.c.l.b16 %v1161
      %v1450 = vunpack.c.l.b16 %v1162
      %v1451 = vunpack.c.l.b16 %v1163
      %v1452 = vunpack.c.l.b16 %v1164
      %v1453 = vunpack.c.l.b16 %v1165
      %v1454 = vunpack.c.l.b16 %v1166
      %v1455 = vunpack.c.l.b16 %v1167
      %v1456 = vunpack.c.l.b16 %v1168
      %v1457 = vunpack.c.l.b16 %v1169
      %v1458 = vunpack.c.l.b16 %v1170
      %v1459 = vunpack.c.l.b16 %v1171
      %v1460 = vunpack.c.l.b16 %v1172
      %v1461 = vunpack.c.l.b16 %v1173
      %v1462 = vunpack.c.l.b16 %v1174
      %v1463 = vunpack.c.l.b16 %v1175
      %v1464 = vunpack.c.l.b16 %v1176
      %v1465 = vunpack.c.l.b16 %v1177
      %v1466 = vunpack.c.l.b16 %v1178
      %v1467 = vunpack.c.l.b16 %v1179
      %v1468 = vunpack.c.l.b16 %v1180
      %v1469 = vunpack.c.l.b16 %v1181
      %v1470 = vunpack.c.l.b16 %v1182
      %v1471 = vunpack.c.l.b16 %v1183
      %v1472 = vunpack.c.l.b16 %v1184
      %v1473 = vunpack.c.l.b16 %v1185
      %v1474 = vunpack.c.l.b16 %v1186
      %v1475 = vunpack.c.l.b16 %v1187
      %v1476 = vunpack.c.l.b16 %v1188
      %v1477 = vunpack.c.l.b16 %v1189
      %v1478 = vunpack.c.l.b16 %v1190
      %v1479 = vunpack.c.l.b16 %v1191
      %v1480 = vunpack.c.l.b16 %v1192
      %v1481 = vunpack.c.l.b16 %v1193
      %v1482 = vunpack.c.l.b16 %v1194
      %v1483 = vunpack.c.l.b16 %v1195
      %v1484 = vunpack.c.l.b16 %v1196
      %v1485 = vunpack.c.l.b16 %v1197
      %v1486 = vunpack.c.l.b16 %v1198
      %v1487 = vunpack.c.l.b16 %v1199
      %v1488 = vunpack.c.l.b16 %v1200
      %v1489 = vunpack.c.l.b16 %v1201
      %v1490 = vunpack.c.l.b16 %v1202
      %v1491 = vunpack.c.l.b16 %v1203
      %v1492 = vunpack.c.l.b16 %v1204
      %v1493 = vunpack.c.l.b16 %v1205
      %v1494 = vunpack.c.l.b16 %v1206
      %v1495 = vunpack.c.l.b16 %v1207
      %v1496 = vunpack.c.l.b16 %v1208
      %v1497 = vunpack.c.l.b16 %v1209
      %v1498 = vunpack.c.l.b16 %v1210
      %v1499 = vunpack.c.l.b16 %v1211
      %v1500 = vunpack.c.l.b16 %v1212
      %v1501 = vunpack.c.l.b16 %v1213
      %v1502 = vunpack.c.l.b16 %v1214
      %v1503 = vunpack.c.l.b16 %v1215
      %v1504 = vunpack.c.l.b16 %v1216
      %v1505 = vunpack.c.l.b16 %v1217
      %v1506 = vunpack.c.l.b16 %v1218
      %v1507 = vunpack.c.l.b16 %v1219
      %v1508 = vunpack.c.l.b16 %v1220
      %v1509 = vunpack.c.l.b16 %v1221
      %v1510 = vunpack.c.l.b16 %v1222
      %v1511 = vunpack.c.l.b16 %v1223
      %v1512 = vunpack.c.l.b16 %v1224
      %v1513 = vunpack.c.l.b16 %v1225
      %v1514 = vunpack.c.l.b16 %v1226
      %v1515 = vunpack.c.l.b16 %v1227
      %v1516 = vunpack.c.l.b16 %v1228
      %v1517 = vunpack.c.l.b16 %v1229
      %v1518 = vunpack.c.l.b16 %v1230
      %v1519 = vunpack.c.l.b16 %v1231
      %v1520 = vunpack.c.l.b16 %v1232
      %v1521 = vunpack.c.l.b16 %v1233
      %v1522 = vunpack.c.l.b16 %v1234
      %v1523 = vunpack.c.l.b16 %v1235
      %v1524 = vunpack.c.l.b16 %v1236
      %v1525 = vunpack.c.l.b16 %v1237
      %v1526 = vunpack.c.l.b16 %v1238
      %v1527 = vunpack.c.l.b16 %v1239
      %v1528 = vunpack.c.l.b16 %v1240
      %v1529 = vunpack.c.l.b16 %v1241
      %v1530 = vunpack.c.l.b16 %v1242
      %v1531 = vunpack.c.l.b16 %v1243
      %v1532 = vunpack.c.l.b16 %v1244
      %v1533 = vunpack.c.l.b16 %v1245
      %v1534 = vunpack.c.l.b16 %v1246
      %v1535 = vunpack.c.l.b16 %v1247
      %v1536 = vunpack.c.l.b16 %v1248
      %v1537 = vunpack.c.l.b16 %v1249
      %v1538 = vunpack.c.l.b16 %v1250
      %v1539 = vunpack.c.l.b16 %v1251
      %v1540 = vunpack.c.l.b16 %v1252
      %v1541 = vunpack.c.l.b16 %v1253
      %v1542 = vunpack.c.l.b16 %v1254
      %v1543 = vunpack.c.l.b16 %v1255
      %v1544 = vunpack.c.l.b16 %v1256
      %v1545 = vunpack.c.l.b16 %v1257
      %v1546 = vunpack.c.l.b16 %v1258
      %v1547 = vunpack.c.l.b16 %v1259
      %v1548 = vunpack.c.l.b16 %v1260
      %v1549 = vunpack.c.l.b16 %v1261
      %v1550 = vunpack.c.l.b16 %v1262
      %v1551 = vunpack.c.l.b16 %v1263
      %v1552 = vunpack.c.l.b16 %v1264
      %v1553 = vunpack.c.l.b16 %v1265
      %v1554 = vunpack.c.l.b16 %v1266
      %v1555 = vunpack.c.l.b16 %v1267
      %v1556 = vunpack.c.l.b16 %v1268
      %v1557 = vunpack.c.l.b16 %v1269
      %v1558 = vunpack.c.l.b16 %v1270
      %v1559 = vunpack.c.l.b16 %v1271
      %v1560 = vunpack.c.l.b16 %v1272
      %v1561 = vunpack.c.l.b16 %v1273
      %v1562 = vunpack.c.l.b16 %v1274
      %v1563 = vunpack.c.l.b16 %v1275
      %v1564 = vunpack.c.l.b16 %v1276
      %v1565 = vunpack.c.l.b16 %v1277
      %v1566 = vunpack.c.l.b16 %v1278
      %v1567 = vunpack.c.l.b16 %v1279
      %v1568 = vunpack.c.l.b16 %v1280
      %v1569 = vunpack.c.l.b16 %v1281
      %v1570 = vunpack.c.l.b16 %v1282
      %v1571 = vunpack.c.l.b16 %v1283
      %v1572 = vunpack.c.l.b16 %v1284
      %v1573 = vunpack.c.l.b16 %v1285
      %v1574 = vunpack.c.l.b16 %v1286
      %v1575 = vunpack.c.l.b16 %v1287
      %v1576 = vunpack.c.l.b16 %v1288
      %v1577 = vunpack.c.l.b16 %v1289
      %v1578 = vunpack.c.l.b16 %v1290
      %v1579 = vunpack.c.l.b16 %v1291
      %v1580 = vunpack.c.l.b16 %v1292
      %v1581 = vunpack.c.l.b16 %v1293
      %v1582 = vunpack.c.l.b16 %v1294
      %v1583 = vpack.c.b16 %v1440, %v1439
      %v1584 = vpack.c.b16 %v1442, %v1441
      %v1585 = vpack.c.b16 %v1444, %v1443
      %v1586 = vpack.c.b16 %v1446, %v1445
      %v1587 = vpack.c.b16 %v1448, %v1447
      %v1588 = vpack.c.b16 %v1450, %v1449
      %v1589 = vpack.c.b16 %v1452, %v1451
      %v1590 = vpack.c.b16 %v1454, %v1453
      %v1591 = vpack.c.b16 %v1456, %v1455
      %v1592 = vpack.c.b16 %v1458, %v1457
      %v1593 = vpack.c.b16 %v1460, %v1459
      %v1594 = vpack.c.b16 %v1462, %v1461
      %v1595 = vpack.c.b16 %v1464, %v1463
      %v1596 = vpack.c.b16 %v1466, %v1465
      %v1597 = vpack.c.b16 %v1468, %v1467
      %v1598 = vpack.c.b16 %v1470, %v1469
      %v1599 = vpack.c.b16 %v1472, %v1471
      %v1600 = vpack.c.b16 %v1474, %v1473
      %v1601 = vpack.c.b16 %v1476, %v1475
      %v1602 = vpack.c.b16 %v1478, %v1477
      %v1603 = vpack.c.b16 %v1480, %v1479
      %v1604 = vpack.c.b16 %v1482, %v1481
      %v1605 = vpack.c.b16 %v1484, %v1483
      %v1606 = vpack.c.b16 %v1486, %v1485
      %v1607 = vpack.c.b16 %v1488, %v1487
      %v1608 = vpack.c.b16 %v1490, %v1489
      %v1609 = vpack.c.b16 %v1492, %v1491
      %v1610 = vpack.c.b16 %v1494, %v1493
      %v1611 = vpack.c.b16 %v1496, %v1495
      %v1612 = vpack.c.b16 %v1498, %v1497
      %v1613 = vpack.c.b16 %v1500, %v1499
      %v1614 = vpack.c.b16 %v1502, %v1501
      %v1615 = vpack.c.b16 %v1504, %v1503
      %v1616 = vpack.c.b16 %v1506, %v1505
      %v1617 = vpack.c.b16 %v1508, %v1507
      %v1618 = vpack.c.b16 %v1510, %v1509
      %v1619 = vpack.c.b16 %v1512, %v1511
      %v1620 = vpack.c.b16 %v1514, %v1513
      %v1621 = vpack.c.b16 %v1516, %v1515
      %v1622 = vpack.c.b16 %v1518, %v1517
      %v1623 = vpack.c.b16 %v1520, %v1519
      %v1624 = vpack.c.b16 %v1522, %v1521
      %v1625 = vpack.c.b16 %v1524, %v1523
      %v1626 = vpack.c.b16 %v1526, %v1525
      %v1627 = vpack.c.b16 %v1528, %v1527
      %v1628 = vpack.c.b16 %v1530, %v1529
      %v1629 = vpack.c.b16 %v1532, %v1531
      %v1630 = vpack.c.b16 %v1534, %v1533
      %v1631 = vpack.c.b16 %v1536, %v1535
      %v1632 = vpack.c.b16 %v1538, %v1537
      %v1633 = vpack.c.b16 %v1540, %v1539
      %v1634 = vpack.c.b16 %v1542, %v1541
      %v1635 = vpack.c.b16 %v1544, %v1543
      %v1636 = vpack.c.b16 %v1546, %v1545
      %v1637 = vpack.c.b16 %v1548, %v1547
      %v1638 = vpack.c.b16 %v1550, %v1549
      %v1639 = vpack.c.b16 %v1552, %v1551
      %v1640 = vpack.c.b16 %v1554, %v1553
      %v1641 = vpack.c.b16 %v1556, %v1555
      %v1642 = vpack.c.b16 %v1558, %v1557
      %v1643 = vpack.c.b16 %v1560, %v1559
      %v1644 = vpack.c.b16 %v1562, %v1561
      %v1645 = vpack.c.b16 %v1564, %v1563
      %v1646 = vpack.c.b16 %v1566, %v1565
      %v1647 = vpack.c.b16 %v1568, %v1567
      %v1648 = vpack.c.b16 %v1570, %v1569
      %v1649 = vpack.c.b16 %v1572, %v1571
      %v1650 = vpack.c.b16 %v1574, %v1573
      %v1651 = vpack.c.b16 %v1576, %v1575
      %v1652 = vpack.c.b16 %v1578, %v1577
      %v1653 = vpack.c.b16 %v1580, %v1579
      %v1654 = vpack.c.b16 %v1582, %v1581
      %1727 = vmatprep.subr.bf16.mxu0 0
      %1728 = vmatpush1.bf16.msra.mxu0 %v1583
      %1729 = vmatprep.subr.bf16.mxu0 0
      %1730 = vmatpush1.bf16.msra.mxu0 %v1584
      %1731 = vmatprep.subr.bf16.mxu0 0
      %1732 = vmatpush1.bf16.msra.mxu0 %v1585
      %1733 = vmatprep.subr.bf16.mxu0 0
      %1734 = vmatpush1.bf16.msra.mxu0 %v1586
      %1735 = vmatprep.subr.bf16.mxu0 0
      %1736 = vmatpush1.bf16.msra.mxu0 %v1587
      %1737 = vmatprep.subr.bf16.mxu0 0
      %1738 = vmatpush1.bf16.msra.mxu0 %v1588
      %1739 = vmatprep.subr.bf16.mxu0 0
      %1740 = vmatpush1.bf16.msra.mxu0 %v1589
      %1741 = vmatprep.subr.bf16.mxu0 0
      %1742 = vmatpush1.bf16.msra.mxu0 %v1590
      %1743 = vmatprep.subr.bf16.mxu0 0
      %1744 = vmatpush1.bf16.msra.mxu0 %v1591
      %1745 = vmatprep.subr.bf16.mxu0 0
      %1746 = vmatpush1.bf16.msra.mxu0 %v1592
      %1747 = vmatprep.subr.bf16.mxu0 0
      %1748 = vmatpush1.bf16.msra.mxu0 %v1593
      %1749 = vmatprep.subr.bf16.mxu0 0
      %1750 = vmatpush1.bf16.msra.mxu0 %v1594
      %1751 = vmatprep.subr.bf16.mxu0 0
      %1752 = vmatpush1.bf16.msra.mxu0 %v1595
      %1753 = vmatprep.subr.bf16.mxu0 0
      %1754 = vmatpush1.bf16.msra.mxu0 %v1596
      %1755 = vmatprep.subr.bf16.mxu0 0
      %1756 = vmatpush1.bf16.msra.mxu0 %v1597
      %1757 = vmatprep.subr.bf16.mxu0 0
      %1758 = vmatpush1.bf16.msra.mxu0 %v1598
      %1759 = vmatprep.mubr.bf16.mxu0 %v819
      %1760 = vmatmul.mubr.bf16.gmra.mrb[0].mxu0 %v771
      %v1761 = vpop.f32.mrb[0].mxu0
      %v1762 = vadd.f32 0.0, %v1761
      %v1763 = vpop.f32.mrb[0].mxu0
      %v1764 = vpop.f32.mrb[0].mxu0
      %v1765 = vadd.f32 0.0, %v1764
      %v1766 = vpop.f32.mrb[0].mxu0
      %1767 = vmatprep.mubr.bf16.mxu0 %v831
      %1768 = vmatmul.mubr.bf16.gmra.mrb[0].mxu0 %v772
      %v1769 = vpop.f32.mrb[0].mxu0
      %v1770 = vadd.f32 0.0, %v1769
      %v1771 = vpop.f32.mrb[0].mxu0
      %v1772 = vpop.f32.mrb[0].mxu0
      %v1773 = vadd.f32 0.0, %v1772
      %v1774 = vpop.f32.mrb[0].mxu0
      %1775 = vmatprep.mubr.bf16.mxu0 %v843
      %1776 = vmatmul.mubr.bf16.gmra.mrb[0].mxu0 %v773
      %v1777 = vpop.f32.mrb[0].mxu0
      %v1778 = vadd.f32 0.0, %v1777
      %v1779 = vpop.f32.mrb[0].mxu0
      %v1780 = vpop.f32.mrb[0].mxu0
      %v1781 = vadd.f32 0.0, %v1780
      %v1782 = vpop.f32.mrb[0].mxu0
      %1783 = vmatprep.mubr.bf16.mxu0 %v855
      %1784 = vmatmul.mubr.bf16.gmra.mrb[0].mxu0 %v774
      %v1785 = vpop.f32.mrb[0].mxu0
      %v1786 = vadd.f32 0.0, %v1785
      %v1787 = vpop.f32.mrb[0].mxu0
      %v1788 = vpop.f32.mrb[0].mxu0
      %v1789 = vadd.f32 0.0, %v1788
      %v1790 = vpop.f32.mrb[0].mxu0
      %1791 = vmatprep.mubr.bf16.mxu0 %v867
      %1792 = vmatmul.mubr.bf16.gmra.mrb[0].mxu0 %v775
      %v1793 = vpop.f32.mrb[0].mxu0
      %v1794 = vadd.f32 0.0, %v1793
      %v1795 = vpop.f32.mrb[0].mxu0
      %v1796 = vpop.f32.mrb[0].mxu0
      %v1797 = vadd.f32 0.0, %v1796
      %v1798 = vpop.f32.mrb[0].mxu0
      %1799 = vmatprep.mubr.bf16.mxu0 %v879
      %1800 = vmatmul.mubr.bf16.gmra.mrb[0].mxu0 %v776
      %v1801 = vpop.f32.mrb[0].mxu0
      %v1802 = vadd.f32 0.0, %v1801
      %v1803 = vpop.f32.mrb[0].mxu0
      %v1804 = vpop.f32.mrb[0].mxu0
      %v1805 = vadd.f32 0.0, %v1804
      %v1806 = vpop.f32.mrb[0].mxu0
      %1807 = vmatprep.mubr.bf16.mxu0 %v891
      %1808 = vmatmul.mubr.bf16.gmra.mrb[0].mxu0 %v777
      %v1809 = vpop.f32.mrb[0].mxu0
      %v1810 = vadd.f32 0.0, %v1809
      %v1811 = vpop.f32.mrb[0].mxu0
      %v1812 = vpop.f32.mrb[0].mxu0
      %v1813 = vadd.f32 0.0, %v1812
      %v1814 = vpop.f32.mrb[0].mxu0
      %1815 = vmatprep.mubr.bf16.mxu0 %v903
      %1816 = vmatmul.mubr.bf16.gmra.mrb[0].mxu0 %v778
      %v1817 = vpop.f32.mrb[0].mxu0
      %v1818 = vadd.f32 0.0, %v1817
      %v1819 = vpop.f32.mrb[0].mxu0
      %v1820 = vpop.f32.mrb[0].mxu0
      %v1821 = vadd.f32 0.0, %v1820
      %v1822 = vpop.f32.mrb[0].mxu0
      %1823 = vmatprep.mubr.bf16.mxu0 %v915
      %1824 = vmatmul.mubr.bf16.gmra.mrb[0].mxu0 %v779
      %v1825 = vpop.f32.mrb[0].mxu0
      %v1826 = vadd.f32 0.0, %v1825
      %v1827 = vpop.f32.mrb[0].mxu0
      %v1828 = vpop.f32.mrb[0].mxu0
      %v1829 = vadd.f32 0.0, %v1828
      %v1830 = vpop.f32.mrb[0].mxu0
      %1831 = vmatprep.mubr.bf16.mxu0 %v927
      %1832 = vmatmul.mubr.bf16.gmra.mrb[0].mxu0 %v780
      %v1833 = vpop.f32.mrb[0].mxu0
      %v1834 = vadd.f32 0.0, %v1833
      %v1835 = vpop.f32.mrb[0].mxu0
      %v1836 = vpop.f32.mrb[0].mxu0
      %v1837 = vadd.f32 0.0, %v1836
      %v1838 = vpop.f32.mrb[0].mxu0
      %1839 = vmatprep.mubr.bf16.mxu0 %v939
      %1840 = vmatmul.mubr.bf16.gmra.mrb[0].mxu0 %v781
      %v1841 = vpop.f32.mrb[0].mxu0
      %v1842 = vadd.f32 0.0, %v1841
      %v1843 = vpop.f32.mrb[0].mxu0
      %v1844 = vpop.f32.mrb[0].mxu0
      %v1845 = vadd.f32 0.0, %v1844
      %v1846 = vpop.f32.mrb[0].mxu0
      %1847 = vmatprep.mubr.bf16.mxu0 %v951
      %1848 = vmatmul.mubr.bf16.gmra.mrb[0].mxu0 %v782
      %v1849 = vpop.f32.mrb[0].mxu0
      %v1850 = vadd.f32 0.0, %v1849
      %v1851 = vpop.f32.mrb[0].mxu0
      %v1852 = vpop.f32.mrb[0].mxu0
      %v1853 = vadd.f32 0.0, %v1852
      %v1854 = vpop.f32.mrb[0].mxu0
      %1855 = vmatprep.mubr.bf16.mxu0 %v963
      %1856 = vmatmul.mubr.bf16.gmra.mrb[0].mxu0 %v783
      %v1857 = vpop.f32.mrb[0].mxu0
      %v1858 = vadd.f32 0.0, %v1857
      %v1859 = vpop.f32.mrb[0].mxu0
      %v1860 = vpop.f32.mrb[0].mxu0
      %v1861 = vadd.f32 0.0, %v1860
      %v1862 = vpop.f32.mrb[0].mxu0
      %1863 = vmatprep.mubr.bf16.mxu0 %v975
      %1864 = vmatmul.mubr.bf16.gmra.mrb[0].mxu0 %v784
      %v1865 = vpop.f32.mrb[0].mxu0
      %v1866 = vadd.f32 0.0, %v1865
      %v1867 = vpop.f32.mrb[0].mxu0
      %v1868 = vpop.f32.mrb[0].mxu0
      %v1869 = vadd.f32 0.0, %v1868
      %v1870 = vpop.f32.mrb[0].mxu0
      %1871 = vmatprep.mubr.bf16.mxu0 %v987
      %1872 = vmatmul.mubr.bf16.gmra.mrb[0].mxu0 %v785
      %v1873 = vpop.f32.mrb[0].mxu0
      %v1874 = vadd.f32 0.0, %v1873
      %v1875 = vpop.f32.mrb[0].mxu0
      %v1876 = vpop.f32.mrb[0].mxu0
      %v1877 = vadd.f32 0.0, %v1876
      %v1878 = vpop.f32.mrb[0].mxu0
      %1879 = vmatprep.mubr.bf16.mxu0 %v999
      %1880 = vmatmul.mubr.bf16.gmra.mrb[0].mxu0 %v786
      %v1881 = vpop.f32.mrb[0].mxu0
      %v1882 = vadd.f32 0.0, %v1881
      %v1883 = vpop.f32.mrb[0].mxu0
      %v1884 = vpop.f32.mrb[0].mxu0
      %v1885 = vadd.f32 0.0, %v1884
      %v1886 = vpop.f32.mrb[0].mxu0
      %1887 = vdwg.mxu0
      %1888 = vmatprep.subr.bf16.mxu0 0
      %1889 = vmatpush1.bf16.msra.mxu0 %v1599
      %1890 = vmatprep.subr.bf16.mxu0 0
      %1891 = vmatpush1.bf16.msra.mxu0 %v1600
      %1892 = vmatprep.subr.bf16.mxu0 0
      %1893 = vmatpush1.bf16.msra.mxu0 %v1601
      %1894 = vmatprep.subr.bf16.mxu0 0
      %1895 = vmatpush1.bf16.msra.mxu0 %v1602
      %1896 = vmatprep.subr.bf16.mxu0 0
      %1897 = vmatpush1.bf16.msra.mxu0 %v1603
      %1898 = vmatprep.subr.bf16.mxu0 0
      %1899 = vmatpush1.bf16.msra.mxu0 %v1604
      %1900 = vmatprep.subr.bf16.mxu0 0
      %1901 = vmatpush1.bf16.msra.mxu0 %v1605
      %1902 = vmatprep.subr.bf16.mxu0 0
      %1903 = vmatpush1.bf16.msra.mxu0 %v1606
      %1904 = vmatprep.subr.bf16.mxu0 0
      %1905 = vmatpush1.bf16.msra.mxu0 %v1607
      %1906 = vmatprep.subr.bf16.mxu0 0
      %1907 = vmatpush1.bf16.msra.mxu0 %v1608
      %1908 = vmatprep.subr.bf16.mxu0 0
      %1909 = vmatpush1.bf16.msra.mxu0 %v1609
      %1910 = vmatprep.subr.bf16.mxu0 0
      %1911 = vmatpush1.bf16.msra.mxu0 %v1610
      %1912 = vmatprep.subr.bf16.mxu0 0
      %1913 = vmatpush1.bf16.msra.mxu0 %v1611
      %1914 = vmatprep.subr.bf16.mxu0 0
      %1915 = vmatpush1.bf16.msra.mxu0 %v1612
      %1916 = vmatprep.subr.bf16.mxu0 0
      %1917 = vmatpush1.bf16.msra.mxu0 %v1613
      %1918 = vmatprep.subr.bf16.mxu0 0
      %1919 = vmatpush1.bf16.msra.mxu0 %v1614
      %1920 = vmatprep.mubr.bf16.mxu0 %v772
      %1921 = vmatmul.mubr.bf16.gmra.mrb[0].mxu0 %v1051
      %v1922 = vpop.f32.mrb[0].mxu0
      %v1923 = vadd.f32 %v1762, %v1922
      %v1924 = vpop.f32.mrb[0].mxu0
      %v1925 = vpop.f32.mrb[0].mxu0
      %v1926 = vadd.f32 %v1765, %v1925
      %v1927 = vpop.f32.mrb[0].mxu0
      %1928 = vmatprep.mubr.bf16.mxu0 %v773
      %1929 = vmatmul.mubr.bf16.gmra.mrb[0].mxu0 %v1054
      %v1930 = vpop.f32.mrb[0].mxu0
      %v1931 = vadd.f32 %v1770, %v1930
      %v1932 = vpop.f32.mrb[0].mxu0
      %v1933 = vpop.f32.mrb[0].mxu0
      %v1934 = vadd.f32 %v1773, %v1933
      %v1935 = vpop.f32.mrb[0].mxu0
      %1936 = vmatprep.mubr.bf16.mxu0 %v774
      %1937 = vmatmul.mubr.bf16.gmra.mrb[0].mxu0 %v1057
      %v1938 = vpop.f32.mrb[0].mxu0
      %v1939 = vadd.f32 %v1778, %v1938
      %v1940 = vpop.f32.mrb[0].mxu0
      %v1941 = vpop.f32.mrb[0].mxu0
      %v1942 = vadd.f32 %v1781, %v1941
      %v1943 = vpop.f32.mrb[0].mxu0
      %1944 = vmatprep.mubr.bf16.mxu0 %v775
      %1945 = vmatmul.mubr.bf16.gmra.mrb[0].mxu0 %v1060
      %v1946 = vpop.f32.mrb[0].mxu0
      %v1947 = vadd.f32 %v1786, %v1946
      %v1948 = vpop.f32.mrb[0].mxu0
      %v1949 = vpop.f32.mrb[0].mxu0
      %v1950 = vadd.f32 %v1789, %v1949
      %v1951 = vpop.f32.mrb[0].mxu0
      %1952 = vmatprep.mubr.bf16.mxu0 %v776
      %1953 = vmatmul.mubr.bf16.gmra.mrb[0].mxu0 %v1063
      %v1954 = vpop.f32.mrb[0].mxu0
      %v1955 = vadd.f32 %v1794, %v1954
      %v1956 = vpop.f32.mrb[0].mxu0
      %v1957 = vpop.f32.mrb[0].mxu0
      %v1958 = vadd.f32 %v1797, %v1957
      %v1959 = vpop.f32.mrb[0].mxu0
      %1960 = vmatprep.mubr.bf16.mxu0 %v777
      %1961 = vmatmul.mubr.bf16.gmra.mrb[0].mxu0 %v1066
      %v1962 = vpop.f32.mrb[0].mxu0
      %v1963 = vadd.f32 %v1802, %v1962
      %v1964 = vpop.f32.mrb[0].mxu0
      %v1965 = vpop.f32.mrb[0].mxu0
      %v1966 = vadd.f32 %v1805, %v1965
      %v1967 = vpop.f32.mrb[0].mxu0
      %1968 = vmatprep.mubr.bf16.mxu0 %v778
      %1969 = vmatmul.mubr.bf16.gmra.mrb[0].mxu0 %v1069
      %v1970 = vpop.f32.mrb[0].mxu0
      %v1971 = vadd.f32 %v1810, %v1970
      %v1972 = vpop.f32.mrb[0].mxu0
      %v1973 = vpop.f32.mrb[0].mxu0
      %v1974 = vadd.f32 %v1813, %v1973
      %v1975 = vpop.f32.mrb[0].mxu0
      %1976 = vmatprep.mubr.bf16.mxu0 %v779
      %1977 = vmatmul.mubr.bf16.gmra.mrb[0].mxu0 %v1072
      %v1978 = vpop.f32.mrb[0].mxu0
      %v1979 = vadd.f32 %v1818, %v1978
      %v1980 = vpop.f32.mrb[0].mxu0
      %v1981 = vpop.f32.mrb[0].mxu0
      %v1982 = vadd.f32 %v1821, %v1981
      %v1983 = vpop.f32.mrb[0].mxu0
      %1984 = vmatprep.mubr.bf16.mxu0 %v780
      %1985 = vmatmul.mubr.bf16.gmra.mrb[0].mxu0 %v1075
      %v1986 = vpop.f32.mrb[0].mxu0
      %v1987 = vadd.f32 %v1826, %v1986
      %v1988 = vpop.f32.mrb[0].mxu0
      %v1989 = vpop.f32.mrb[0].mxu0
      %v1990 = vadd.f32 %v1829, %v1989
      %v1991 = vpop.f32.mrb[0].mxu0
      %1992 = vmatprep.mubr.bf16.mxu0 %v781
      %1993 = vmatmul.mubr.bf16.gmra.mrb[0].mxu0 %v1078
      %v1994 = vpop.f32.mrb[0].mxu0
      %v1995 = vadd.f32 %v1834, %v1994
      %v1996 = vpop.f32.mrb[0].mxu0
      %v1997 = vpop.f32.mrb[0].mxu0
      %v1998 = vadd.f32 %v1837, %v1997
      %v1999 = vpop.f32.mrb[0].mxu0
      %2000 = vmatprep.mubr.bf16.mxu0 %v782
      %2001 = vmatmul.mubr.bf16.gmra.mrb[0].mxu0 %v1081
      %v2002 = vpop.f32.mrb[0].mxu0
      %v2003 = vadd.f32 %v1842, %v2002
      %v2004 = vpop.f32.mrb[0].mxu0
      %v2005 = vpop.f32.mrb[0].mxu0
      %v2006 = vadd.f32 %v1845, %v2005
      %v2007 = vpop.f32.mrb[0].mxu0
      %2008 = vmatprep.mubr.bf16.mxu0 %v783
      %2009 = vmatmul.mubr.bf16.gmra.mrb[0].mxu0 %v1084
      %v2010 = vpop.f32.mrb[0].mxu0
      %v2011 = vadd.f32 %v1850, %v2010
      %v2012 = vpop.f32.mrb[0].mxu0
      %v2013 = vpop.f32.mrb[0].mxu0
      %v2014 = vadd.f32 %v1853, %v2013
      %v2015 = vpop.f32.mrb[0].mxu0
      %2016 = vmatprep.mubr.bf16.mxu0 %v784
      %2017 = vmatmul.mubr.bf16.gmra.mrb[0].mxu0 %v1087
      %v2018 = vpop.f32.mrb[0].mxu0
      %v2019 = vadd.f32 %v1858, %v2018
      %v2020 = vpop.f32.mrb[0].mxu0
      %v2021 = vpop.f32.mrb[0].mxu0
      %v2022 = vadd.f32 %v1861, %v2021
      %v2023 = vpop.f32.mrb[0].mxu0
      %2024 = vmatprep.mubr.bf16.mxu0 %v785
      %2025 = vmatmul.mubr.bf16.gmra.mrb[0].mxu0 %v1090
      %v2026 = vpop.f32.mrb[0].mxu0
      %v2027 = vadd.f32 %v1866, %v2026
      %v2028 = vpop.f32.mrb[0].mxu0
      %v2029 = vpop.f32.mrb[0].mxu0
      %v2030 = vadd.f32 %v1869, %v2029
      %v2031 = vpop.f32.mrb[0].mxu0
      %2032 = vmatprep.mubr.bf16.mxu0 %v786
      %2033 = vmatmul.mubr.bf16.gmra.mrb[0].mxu0 %v1093
      %v2034 = vpop.f32.mrb[0].mxu0
      %v2035 = vadd.f32 %v1874, %v2034
      %v2036 = vpop.f32.mrb[0].mxu0
      %v2037 = vpop.f32.mrb[0].mxu0
      %v2038 = vadd.f32 %v1877, %v2037
      %v2039 = vpop.f32.mrb[0].mxu0
      %2040 = vmatprep.mubr.bf16.mxu0 %v787
      %2041 = vmatmul.mubr.bf16.gmra.mrb[0].mxu0 %v1096
      %v2042 = vpop.f32.mrb[0].mxu0
      %v2043 = vadd.f32 %v1882, %v2042
      %v2044 = vpop.f32.mrb[0].mxu0
      %v2045 = vpop.f32.mrb[0].mxu0
      %v2046 = vadd.f32 %v1885, %v2045
      %v2047 = vpop.f32.mrb[0].mxu0
      %2048 = vdwg.mxu0
      %2049 = vmatprep.subr.bf16.mxu0 0
      %2050 = vmatpush1.bf16.msra.mxu0 %v1615
      %2051 = vmatprep.subr.bf16.mxu0 0
      %2052 = vmatpush1.bf16.msra.mxu0 %v1616
      %2053 = vmatprep.subr.bf16.mxu0 0
      %2054 = vmatpush1.bf16.msra.mxu0 %v1617
      %2055 = vmatprep.subr.bf16.mxu0 0
      %2056 = vmatpush1.bf16.msra.mxu0 %v1618
      %2057 = vmatprep.subr.bf16.mxu0 0
      %2058 = vmatpush1.bf16.msra.mxu0 %v1619
      %2059 = vmatprep.subr.bf16.mxu0 0
      %2060 = vmatpush1.bf16.msra.mxu0 %v1620
      %2061 = vmatprep.subr.bf16.mxu0 0
      %2062 = vmatpush1.bf16.msra.mxu0 %v1621
      %2063 = vmatprep.subr.bf16.mxu0 0
      %2064 = vmatpush1.bf16.msra.mxu0 %v1622
      %2065 = vmatprep.subr.bf16.mxu0 0
      %2066 = vmatpush1.bf16.msra.mxu0 %v1623
      %2067 = vmatprep.subr.bf16.mxu0 0
      %2068 = vmatpush1.bf16.msra.mxu0 %v1624
      %2069 = vmatprep.subr.bf16.mxu0 0
      %2070 = vmatpush1.bf16.msra.mxu0 %v1625
      %2071 = vmatprep.subr.bf16.mxu0 0
      %2072 = vmatpush1.bf16.msra.mxu0 %v1626
      %2073 = vmatprep.subr.bf16.mxu0 0
      %2074 = vmatpush1.bf16.msra.mxu0 %v1627
      %2075 = vmatprep.subr.bf16.mxu0 0
      %2076 = vmatpush1.bf16.msra.mxu0 %v1628
      %2077 = vmatprep.subr.bf16.mxu0 0
      %2078 = vmatpush1.bf16.msra.mxu0 %v1629
      %2079 = vmatprep.subr.bf16.mxu0 0
      %2080 = vmatpush1.bf16.msra.mxu0 %v1630
      %2081 = vmatprep.mubr.bf16.mxu0 %v1054
      %2082 = vmatmul.mubr.bf16.gmra.mrb[0].mxu0 %v831
      %v2083 = vpop.f32.mrb[0].mxu0
      %v2084 = vadd.f32 %v1923, %v2083
      %v2085 = vpop.f32.mrb[0].mxu0
      %v2086 = vpop.f32.mrb[0].mxu0
      %v2087 = vadd.f32 %v1926, %v2086
      %v2088 = vpop.f32.mrb[0].mxu0
      %2089 = vmatprep.mubr.bf16.mxu0 %v1057
      %2090 = vmatmul.mubr.bf16.gmra.mrb[0].mxu0 %v843
      %v2091 = vpop.f32.mrb[0].mxu0
      %v2092 = vadd.f32 %v1931, %v2091
      %v2093 = vpop.f32.mrb[0].mxu0
      %v2094 = vpop.f32.mrb[0].mxu0
      %v2095 = vadd.f32 %v1934, %v2094
      %v2096 = vpop.f32.mrb[0].mxu0
      %2097 = vmatprep.mubr.bf16.mxu0 %v1060
      %2098 = vmatmul.mubr.bf16.gmra.mrb[0].mxu0 %v855
      %v2099 = vpop.f32.mrb[0].mxu0
      %v2100 = vadd.f32 %v1939, %v2099
      %v2101 = vpop.f32.mrb[0].mxu0
      %v2102 = vpop.f32.mrb[0].mxu0
      %v2103 = vadd.f32 %v1942, %v2102
      %v2104 = vpop.f32.mrb[0].mxu0
      %2105 = vmatprep.mubr.bf16.mxu0 %v1063
      %2106 = vmatmul.mubr.bf16.gmra.mrb[0].mxu0 %v867
      %v2107 = vpop.f32.mrb[0].mxu0
      %v2108 = vadd.f32 %v1947, %v2107
      %v2109 = vpop.f32.mrb[0].mxu0
      %v2110 = vpop.f32.mrb[0].mxu0
      %v2111 = vadd.f32 %v1950, %v2110
      %v2112 = vpop.f32.mrb[0].mxu0
      %2113 = vmatprep.mubr.bf16.mxu0 %v1066
      %2114 = vmatmul.mubr.bf16.gmra.mrb[0].mxu0 %v879
      %v2115 = vpop.f32.mrb[0].mxu0
      %v2116 = vadd.f32 %v1955, %v2115
      %v2117 = vpop.f32.mrb[0].mxu0
      %v2118 = vpop.f32.mrb[0].mxu0
      %v2119 = vadd.f32 %v1958, %v2118
      %v2120 = vpop.f32.mrb[0].mxu0
      %2121 = vmatprep.mubr.bf16.mxu0 %v1069
      %2122 = vmatmul.mubr.bf16.gmra.mrb[0].mxu0 %v891
      %v2123 = vpop.f32.mrb[0].mxu0
      %v2124 = vadd.f32 %v1963, %v2123
      %v2125 = vpop.f32.mrb[0].mxu0
      %v2126 = vpop.f32.mrb[0].mxu0
      %v2127 = vadd.f32 %v1966, %v2126
      %v2128 = vpop.f32.mrb[0].mxu0
      %2129 = vmatprep.mubr.bf16.mxu0 %v1072
      %2130 = vmatmul.mubr.bf16.gmra.mrb[0].mxu0 %v903
      %v2131 = vpop.f32.mrb[0].mxu0
      %v2132 = vadd.f32 %v1971, %v2131
      %v2133 = vpop.f32.mrb[0].mxu0
      %v2134 = vpop.f32.mrb[0].mxu0
      %v2135 = vadd.f32 %v1974, %v2134
      %v2136 = vpop.f32.mrb[0].mxu0
      %2137 = vmatprep.mubr.bf16.mxu0 %v1075
      %2138 = vmatmul.mubr.bf16.gmra.mrb[0].mxu0 %v915
      %v2139 = vpop.f32.mrb[0].mxu0
      %v2140 = vadd.f32 %v1979, %v2139
      %v2141 = vpop.f32.mrb[0].mxu0
      %v2142 = vpop.f32.mrb[0].mxu0
      %v2143 = vadd.f32 %v1982, %v2142
      %v2144 = vpop.f32.mrb[0].mxu0
      %2145 = vmatprep.mubr.bf16.mxu0 %v1078
      %2146 = vmatmul.mubr.bf16.gmra.mrb[0].mxu0 %v927
      %v2147 = vpop.f32.mrb[0].mxu0
      %v2148 = vadd.f32 %v1987, %v2147
      %v2149 = vpop.f32.mrb[0].mxu0
      %v2150 = vpop.f32.mrb[0].mxu0
      %v2151 = vadd.f32 %v1990, %v2150
      %v2152 = vpop.f32.mrb[0].mxu0
      %2153 = vmatprep.mubr.bf16.mxu0 %v1081
      %2154 = vmatmul.mubr.bf16.gmra.mrb[0].mxu0 %v939
      %v2155 = vpop.f32.mrb[0].mxu0
      %v2156 = vadd.f32 %v1995, %v2155
      %v2157 = vpop.f32.mrb[0].mxu0
      %v2158 = vpop.f32.mrb[0].mxu0
      %v2159 = vadd.f32 %v1998, %v2158
      %v2160 = vpop.f32.mrb[0].mxu0
      %2161 = vmatprep.mubr.bf16.mxu0 %v1084
      %2162 = vmatmul.mubr.bf16.gmra.mrb[0].mxu0 %v951
      %v2163 = vpop.f32.mrb[0].mxu0
      %v2164 = vadd.f32 %v2003, %v2163
      %v2165 = vpop.f32.mrb[0].mxu0
      %v2166 = vpop.f32.mrb[0].mxu0
      %v2167 = vadd.f32 %v2006, %v2166
      %v2168 = vpop.f32.mrb[0].mxu0
      %2169 = vmatprep.mubr.bf16.mxu0 %v1087
      %2170 = vmatmul.mubr.bf16.gmra.mrb[0].mxu0 %v963
      %v2171 = vpop.f32.mrb[0].mxu0
      %v2172 = vadd.f32 %v2011, %v2171
      %v2173 = vpop.f32.mrb[0].mxu0
      %v2174 = vpop.f32.mrb[0].mxu0
      %v2175 = vadd.f32 %v2014, %v2174
      %v2176 = vpop.f32.mrb[0].mxu0
      %2177 = vmatprep.mubr.bf16.mxu0 %v1090
      %2178 = vmatmul.mubr.bf16.gmra.mrb[0].mxu0 %v975
      %v2179 = vpop.f32.mrb[0].mxu0
      %v2180 = vadd.f32 %v2019, %v2179
      %v2181 = vpop.f32.mrb[0].mxu0
      %v2182 = vpop.f32.mrb[0].mxu0
      %v2183 = vadd.f32 %v2022, %v2182
      %v2184 = vpop.f32.mrb[0].mxu0
      %2185 = vmatprep.mubr.bf16.mxu0 %v1093
      %2186 = vmatmul.mubr.bf16.gmra.mrb[0].mxu0 %v987
      %v2187 = vpop.f32.mrb[0].mxu0
      %v2188 = vadd.f32 %v2027, %v2187
      %v2189 = vpop.f32.mrb[0].mxu0
      %v2190 = vpop.f32.mrb[0].mxu0
      %v2191 = vadd.f32 %v2030, %v2190
      %v2192 = vpop.f32.mrb[0].mxu0
      %2193 = vmatprep.mubr.bf16.mxu0 %v1096
      %2194 = vmatmul.mubr.bf16.gmra.mrb[0].mxu0 %v999
      %v2195 = vpop.f32.mrb[0].mxu0
      %v2196 = vadd.f32 %v2035, %v2195
      %v2197 = vpop.f32.mrb[0].mxu0
      %v2198 = vpop.f32.mrb[0].mxu0
      %v2199 = vadd.f32 %v2038, %v2198
      %v2200 = vpop.f32.mrb[0].mxu0
      %2201 = vmatprep.mubr.bf16.mxu0 %v1130
      %2202 = vmatmul.mubr.bf16.gmra.mrb[0].mxu0 %v1124
      %v2203 = vpop.f32.mrb[0].mxu0
      %v2204 = vadd.f32 %v2043, %v2203
      %v2205 = vpop.f32.mrb[0].mxu0
      %v2206 = vpop.f32.mrb[0].mxu0
      %v2207 = vadd.f32 %v2046, %v2206
      %v2208 = vpop.f32.mrb[0].mxu0
      %2209 = vdwg.mxu0
      %2210 = vmatprep.subr.bf16.mxu0 0
      %2211 = vmatpush1.bf16.msra.mxu0 %v1631
      %2212 = vmatprep.subr.bf16.mxu0 0
      %2213 = vmatpush1.bf16.msra.mxu0 %v1632
      %2214 = vmatprep.subr.bf16.mxu0 0
      %2215 = vmatpush1.bf16.msra.mxu0 %v1633
      %2216 = vmatprep.subr.bf16.mxu0 0
      %2217 = vmatpush1.bf16.msra.mxu0 %v1634
      %2218 = vmatprep.subr.bf16.mxu0 0
      %2219 = vmatpush1.bf16.msra.mxu0 %v1635
      %2220 = vmatprep.subr.bf16.mxu0 0
      %2221 = vmatpush1.bf16.msra.mxu0 %v1636
      %2222 = vmatprep.subr.bf16.mxu0 0
      %2223 = vmatpush1.bf16.msra.mxu0 %v1637
      %2224 = vmatprep.subr.bf16.mxu0 0
      %2225 = vmatpush1.bf16.msra.mxu0 %v1638
      %2226 = vmatprep.subr.bf16.mxu0 0
      %2227 = vmatpush1.bf16.msra.mxu0 %v1639
      %2228 = vmatprep.subr.bf16.mxu0 0
      %2229 = vmatpush1.bf16.msra.mxu0 %v1640
      %2230 = vmatprep.subr.bf16.mxu0 0
      %2231 = vmatpush1.bf16.msra.mxu0 %v1641
      %2232 = vmatprep.subr.bf16.mxu0 0
      %2233 = vmatpush1.bf16.msra.mxu0 %v1642
      %2234 = vmatprep.subr.bf16.mxu0 0
      %2235 = vmatpush1.bf16.msra.mxu0 %v1643
      %2236 = vmatprep.subr.bf16.mxu0 0
      %2237 = vmatpush1.bf16.msra.mxu0 %v1644
      %2238 = vmatprep.subr.bf16.mxu0 0
      %2239 = vmatpush1.bf16.msra.mxu0 %v1645
      %2240 = vmatprep.subr.bf16.mxu0 0
      %2241 = vmatpush1.bf16.msra.mxu0 %v1646
      %2242 = vmatprep.mubr.bf16.mxu0 %v843
      %2243 = vmatmul.mubr.bf16.gmra.mrb[0].mxu0 %v773
      %v2244 = vpop.f32.mrb[0].mxu0
      %v2245 = vadd.f32 %v2084, %v2244
      %v2246 = vpop.f32.mrb[0].mxu0
      %v2247 = vpop.f32.mrb[0].mxu0
      %v2248 = vadd.f32 %v2087, %v2247
      %v2249 = vpop.f32.mrb[0].mxu0
      %2250 = vmatprep.mubr.bf16.mxu0 %v855
      %2251 = vmatmul.mubr.bf16.gmra.mrb[0].mxu0 %v774
      %v2252 = vpop.f32.mrb[0].mxu0
      %v2253 = vadd.f32 %v2092, %v2252
      %v2254 = vpop.f32.mrb[0].mxu0
      %v2255 = vpop.f32.mrb[0].mxu0
      %v2256 = vadd.f32 %v2095, %v2255
      %v2257 = vpop.f32.mrb[0].mxu0
      %2258 = vmatprep.mubr.bf16.mxu0 %v867
      %2259 = vmatmul.mubr.bf16.gmra.mrb[0].mxu0 %v775
      %v2260 = vpop.f32.mrb[0].mxu0
      %v2261 = vadd.f32 %v2100, %v2260
      %v2262 = vpop.f32.mrb[0].mxu0
      %v2263 = vpop.f32.mrb[0].mxu0
      %v2264 = vadd.f32 %v2103, %v2263
      %v2265 = vpop.f32.mrb[0].mxu0
      %2266 = vmatprep.mubr.bf16.mxu0 %v879
      %2267 = vmatmul.mubr.bf16.gmra.mrb[0].mxu0 %v776
      %v2268 = vpop.f32.mrb[0].mxu0
      %v2269 = vadd.f32 %v2108, %v2268
      %v2270 = vpop.f32.mrb[0].mxu0
      %v2271 = vpop.f32.mrb[0].mxu0
      %v2272 = vadd.f32 %v2111, %v2271
      %v2273 = vpop.f32.mrb[0].mxu0
      %2274 = vmatprep.mubr.bf16.mxu0 %v891
      %2275 = vmatmul.mubr.bf16.gmra.mrb[0].mxu0 %v777
      %v2276 = vpop.f32.mrb[0].mxu0
      %v2277 = vadd.f32 %v2116, %v2276
      %v2278 = vpop.f32.mrb[0].mxu0
      %v2279 = vpop.f32.mrb[0].mxu0
      %v2280 = vadd.f32 %v2119, %v2279
      %v2281 = vpop.f32.mrb[0].mxu0
      %2282 = vmatprep.mubr.bf16.mxu0 %v903
      %2283 = vmatmul.mubr.bf16.gmra.mrb[0].mxu0 %v778
      %v2284 = vpop.f32.mrb[0].mxu0
      %v2285 = vadd.f32 %v2124, %v2284
      %v2286 = vpop.f32.mrb[0].mxu0
      %v2287 = vpop.f32.mrb[0].mxu0
      %v2288 = vadd.f32 %v2127, %v2287
      %v2289 = vpop.f32.mrb[0].mxu0
      %2290 = vmatprep.mubr.bf16.mxu0 %v915
      %2291 = vmatmul.mubr.bf16.gmra.mrb[0].mxu0 %v779
      %v2292 = vpop.f32.mrb[0].mxu0
      %v2293 = vadd.f32 %v2132, %v2292
      %v2294 = vpop.f32.mrb[0].mxu0
      %v2295 = vpop.f32.mrb[0].mxu0
      %v2296 = vadd.f32 %v2135, %v2295
      %v2297 = vpop.f32.mrb[0].mxu0
      %2298 = vmatprep.mubr.bf16.mxu0 %v927
      %2299 = vmatmul.mubr.bf16.gmra.mrb[0].mxu0 %v780
      %v2300 = vpop.f32.mrb[0].mxu0
      %v2301 = vadd.f32 %v2140, %v2300
      %v2302 = vpop.f32.mrb[0].mxu0
      %v2303 = vpop.f32.mrb[0].mxu0
      %v2304 = vadd.f32 %v2143, %v2303
      %v2305 = vpop.f32.mrb[0].mxu0
      %2306 = vmatprep.mubr.bf16.mxu0 %v939
      %2307 = vmatmul.mubr.bf16.gmra.mrb[0].mxu0 %v781
      %v2308 = vpop.f32.mrb[0].mxu0
      %v2309 = vadd.f32 %v2148, %v2308
      %v2310 = vpop.f32.mrb[0].mxu0
      %v2311 = vpop.f32.mrb[0].mxu0
      %v2312 = vadd.f32 %v2151, %v2311
      %v2313 = vpop.f32.mrb[0].mxu0
      %2314 = vmatprep.mubr.bf16.mxu0 %v951
      %2315 = vmatmul.mubr.bf16.gmra.mrb[0].mxu0 %v782
      %v2316 = vpop.f32.mrb[0].mxu0
      %v2317 = vadd.f32 %v2156, %v2316
      %v2318 = vpop.f32.mrb[0].mxu0
      %v2319 = vpop.f32.mrb[0].mxu0
      %v2320 = vadd.f32 %v2159, %v2319
      %v2321 = vpop.f32.mrb[0].mxu0
      %2322 = vmatprep.mubr.bf16.mxu0 %v963
      %2323 = vmatmul.mubr.bf16.gmra.mrb[0].mxu0 %v783
      %v2324 = vpop.f32.mrb[0].mxu0
      %v2325 = vadd.f32 %v2164, %v2324
      %v2326 = vpop.f32.mrb[0].mxu0
      %v2327 = vpop.f32.mrb[0].mxu0
      %v2328 = vadd.f32 %v2167, %v2327
      %v2329 = vpop.f32.mrb[0].mxu0
      %2330 = vmatprep.mubr.bf16.mxu0 %v975
      %2331 = vmatmul.mubr.bf16.gmra.mrb[0].mxu0 %v784
      %v2332 = vpop.f32.mrb[0].mxu0
      %v2333 = vadd.f32 %v2172, %v2332
      %v2334 = vpop.f32.mrb[0].mxu0
      %v2335 = vpop.f32.mrb[0].mxu0
      %v2336 = vadd.f32 %v2175, %v2335
      %v2337 = vpop.f32.mrb[0].mxu0
      %2338 = vmatprep.mubr.bf16.mxu0 %v987
      %2339 = vmatmul.mubr.bf16.gmra.mrb[0].mxu0 %v785
      %v2340 = vpop.f32.mrb[0].mxu0
      %v2341 = vadd.f32 %v2180, %v2340
      %v2342 = vpop.f32.mrb[0].mxu0
      %v2343 = vpop.f32.mrb[0].mxu0
      %v2344 = vadd.f32 %v2183, %v2343
      %v2345 = vpop.f32.mrb[0].mxu0
      %2346 = vmatprep.mubr.bf16.mxu0 %v999
      %2347 = vmatmul.mubr.bf16.gmra.mrb[0].mxu0 %v786
      %v2348 = vpop.f32.mrb[0].mxu0
      %v2349 = vadd.f32 %v2188, %v2348
      %v2350 = vpop.f32.mrb[0].mxu0
      %v2351 = vpop.f32.mrb[0].mxu0
      %v2352 = vadd.f32 %v2191, %v2351
      %v2353 = vpop.f32.mrb[0].mxu0
      %2354 = vmatprep.mubr.bf16.mxu0 %v1124
      %2355 = vmatmul.mubr.bf16.gmra.mrb[0].mxu0 %v787
      %v2356 = vpop.f32.mrb[0].mxu0
      %v2357 = vadd.f32 %v2196, %v2356
      %v2358 = vpop.f32.mrb[0].mxu0
      %v2359 = vpop.f32.mrb[0].mxu0
      %v2360 = vadd.f32 %v2199, %v2359
      %v2361 = vpop.f32.mrb[0].mxu0
      %2362 = vmatprep.mubr.bf16.mxu0 %v1143
      %2363 = vmatmul.mubr.bf16.gmra.mrb[0].mxu0 %v788
      %v2364 = vpop.f32.mrb[0].mxu0
      %v2365 = vadd.f32 %v2204, %v2364
      %v2366 = vpop.f32.mrb[0].mxu0
      %v2367 = vpop.f32.mrb[0].mxu0
      %v2368 = vadd.f32 %v2207, %v2367
      %v2369 = vpop.f32.mrb[0].mxu0
      %2370 = vdwg.mxu0
      %2371 = vmatprep.subr.bf16.mxu0 0
      %2372 = vmatpush1.bf16.msra.mxu0 %v1647
      %2373 = vmatprep.subr.bf16.mxu0 0
      %2374 = vmatpush1.bf16.msra.mxu0 %v1648
      %2375 = vmatprep.subr.bf16.mxu0 0
      %2376 = vmatpush1.bf16.msra.mxu0 %v1649
      %2377 = vmatprep.subr.bf16.mxu0 0
      %2378 = vmatpush1.bf16.msra.mxu0 %v1650
      %2379 = vmatprep.subr.bf16.mxu0 0
      %2380 = vmatpush1.bf16.msra.mxu0 %v1651
      %2381 = vmatprep.subr.bf16.mxu0 0
      %2382 = vmatpush1.bf16.msra.mxu0 %v1652
      %2383 = vmatprep.subr.bf16.mxu0 0
      %2384 = vmatpush1.bf16.msra.mxu0 %v1653
      %2385 = vmatprep.subr.bf16.mxu0 0
      %2386 = vmatpush1.bf16.msra.mxu0 %v1654
      %2387 = vmatprep.subr.bf16.mxu0 0
      %2388 = vmatpush1.bf16.msra.mxu0 0
      %2389 = vmatprep.subr.bf16.mxu0 0
      %2390 = vmatpush1.bf16.msra.mxu0 0
      %2391 = vmatprep.subr.bf16.mxu0 0
      %2392 = vmatpush1.bf16.msra.mxu0 0
      %2393 = vmatprep.subr.bf16.mxu0 0
      %2394 = vmatpush1.bf16.msra.mxu0 0
      %2395 = vmatprep.subr.bf16.mxu0 0
      %2396 = vmatpush1.bf16.msra.mxu0 0
      %2397 = vmatprep.subr.bf16.mxu0 0
      %2398 = vmatpush1.bf16.msra.mxu0 0
      %2399 = vmatprep.subr.bf16.mxu0 0
      %2400 = vmatpush1.bf16.msra.mxu0 0
      %2401 = vmatprep.subr.bf16.mxu0 0
      %2402 = vmatpush1.bf16.msra.mxu0 0
      %2403 = vmatprep.mubr.bf16.mxu0 0
      %2404 = vmatmul.mubr.bf16.gmra.mrb[0].mxu0 %v1057
      %v2405 = vpop.f32.mrb[0].mxu0
      %v2406 = vadd.f32 %v2245, %v2405
      %v2407 = vpop.f32.mrb[0].mxu0
      %v2408 = vpop.f32.mrb[0].mxu0
      %v2409 = vadd.f32 %v2248, %v2408
      %v2410 = vpop.f32.mrb[0].mxu0
      %2411 = vmatprep.mubr.bf16.mxu0 0
      %2412 = vmatmul.mubr.bf16.gmra.mrb[0].mxu0 %v1060
      %v2413 = vpop.f32.mrb[0].mxu0
      %v2414 = vadd.f32 %v2253, %v2413
      %v2415 = vpop.f32.mrb[0].mxu0
      %v2416 = vpop.f32.mrb[0].mxu0
      %v2417 = vadd.f32 %v2256, %v2416
      %v2418 = vpop.f32.mrb[0].mxu0
      %2419 = vmatprep.mubr.bf16.mxu0 0
      %2420 = vmatmul.mubr.bf16.gmra.mrb[0].mxu0 %v1063
      %v2421 = vpop.f32.mrb[0].mxu0
      %v2422 = vadd.f32 %v2261, %v2421
      %v2423 = vpop.f32.mrb[0].mxu0
      %v2424 = vpop.f32.mrb[0].mxu0
      %v2425 = vadd.f32 %v2264, %v2424
      %v2426 = vpop.f32.mrb[0].mxu0
      %2427 = vmatprep.mubr.bf16.mxu0 0
      %2428 = vmatmul.mubr.bf16.gmra.mrb[0].mxu0 %v1066
      %v2429 = vpop.f32.mrb[0].mxu0
      %v2430 = vadd.f32 %v2269, %v2429
      %v2431 = vpop.f32.mrb[0].mxu0
      %v2432 = vpop.f32.mrb[0].mxu0
      %v2433 = vadd.f32 %v2272, %v2432
      %v2434 = vpop.f32.mrb[0].mxu0
      %2435 = vmatprep.mubr.bf16.mxu0 0
      %2436 = vmatmul.mubr.bf16.gmra.mrb[0].mxu0 %v1069
      %v2437 = vpop.f32.mrb[0].mxu0
      %v2438 = vadd.f32 %v2277, %v2437
      %v2439 = vpop.f32.mrb[0].mxu0
      %v2440 = vpop.f32.mrb[0].mxu0
      %v2441 = vadd.f32 %v2280, %v2440
      %v2442 = vpop.f32.mrb[0].mxu0
      %2443 = vmatprep.mubr.bf16.mxu0 0
      %2444 = vmatmul.mubr.bf16.gmra.mrb[0].mxu0 %v1072
      %v2445 = vpop.f32.mrb[0].mxu0
      %v2446 = vadd.f32 %v2285, %v2445
      %v2447 = vpop.f32.mrb[0].mxu0
      %v2448 = vpop.f32.mrb[0].mxu0
      %v2449 = vadd.f32 %v2288, %v2448
      %v2450 = vpop.f32.mrb[0].mxu0
      %2451 = vmatprep.mubr.bf16.mxu0 0
      %2452 = vmatmul.mubr.bf16.gmra.mrb[0].mxu0 %v1075
      %v2453 = vpop.f32.mrb[0].mxu0
      %v2454 = vadd.f32 %v2293, %v2453
      %v2455 = vpop.f32.mrb[0].mxu0
      %v2456 = vpop.f32.mrb[0].mxu0
      %v2457 = vadd.f32 %v2296, %v2456
      %v2458 = vpop.f32.mrb[0].mxu0
      %2459 = vmatprep.mubr.bf16.mxu0 0
      %2460 = vmatmul.mubr.bf16.gmra.mrb[0].mxu0 %v1078
      %v2461 = vpop.f32.mrb[0].mxu0
      %v2462 = vadd.f32 %v2301, %v2461
      %v2463 = vpop.f32.mrb[0].mxu0
      %v2464 = vpop.f32.mrb[0].mxu0
      %v2465 = vadd.f32 %v2304, %v2464
      %v2466 = vpop.f32.mrb[0].mxu0
      %2467 = vmatprep.mubr.bf16.mxu0 0
      %2468 = vmatmul.mubr.bf16.gmra.mrb[0].mxu0 %v1081
      %v2469 = vpop.f32.mrb[0].mxu0
      %v2470 = vadd.f32 %v2309, %v2469
      %v2471 = vpop.f32.mrb[0].mxu0
      %v2472 = vpop.f32.mrb[0].mxu0
      %v2473 = vadd.f32 %v2312, %v2472
      %v2474 = vpop.f32.mrb[0].mxu0
      %2475 = vmatprep.mubr.bf16.mxu0 0
      %2476 = vmatmul.mubr.bf16.gmra.mrb[0].mxu0 %v1084
      %v2477 = vpop.f32.mrb[0].mxu0
      %v2478 = vadd.f32 %v2317, %v2477
      %v2479 = vpop.f32.mrb[0].mxu0
      %v2480 = vpop.f32.mrb[0].mxu0
      %v2481 = vadd.f32 %v2320, %v2480
      %v2482 = vpop.f32.mrb[0].mxu0
      %2483 = vmatprep.mubr.bf16.mxu0 0
      %2484 = vmatmul.mubr.bf16.gmra.mrb[0].mxu0 %v1087
      %v2485 = vpop.f32.mrb[0].mxu0
      %v2486 = vadd.f32 %v2325, %v2485
      %v2487 = vpop.f32.mrb[0].mxu0
      %v2488 = vpop.f32.mrb[0].mxu0
      %v2489 = vadd.f32 %v2328, %v2488
      %v2490 = vpop.f32.mrb[0].mxu0
      %2491 = vmatprep.mubr.bf16.mxu0 0
      %2492 = vmatmul.mubr.bf16.gmra.mrb[0].mxu0 %v1090
      %v2493 = vpop.f32.mrb[0].mxu0
      %v2494 = vadd.f32 %v2333, %v2493
      %v2495 = vpop.f32.mrb[0].mxu0
      %v2496 = vpop.f32.mrb[0].mxu0
      %v2497 = vadd.f32 %v2336, %v2496
      %v2498 = vpop.f32.mrb[0].mxu0
      %2499 = vmatprep.mubr.bf16.mxu0 0
      %2500 = vmatmul.mubr.bf16.gmra.mrb[0].mxu0 %v1093
      %v2501 = vpop.f32.mrb[0].mxu0
      %v2502 = vadd.f32 %v2341, %v2501
      %v2503 = vpop.f32.mrb[0].mxu0
      %v2504 = vpop.f32.mrb[0].mxu0
      %v2505 = vadd.f32 %v2344, %v2504
      %v2506 = vpop.f32.mrb[0].mxu0
      %2507 = vmatprep.mubr.bf16.mxu0 0
      %2508 = vmatmul.mubr.bf16.gmra.mrb[0].mxu0 %v1096
      %v2509 = vpop.f32.mrb[0].mxu0
      %v2510 = vadd.f32 %v2349, %v2509
      %v2511 = vpop.f32.mrb[0].mxu0
      %v2512 = vpop.f32.mrb[0].mxu0
      %v2513 = vadd.f32 %v2352, %v2512
      %v2514 = vpop.f32.mrb[0].mxu0
      %2515 = vmatprep.mubr.bf16.mxu0 0
      %2516 = vmatmul.mubr.bf16.gmra.mrb[0].mxu0 %v1130
      %v2517 = vpop.f32.mrb[0].mxu0
      %v2518 = vadd.f32 %v2357, %v2517
      %v2519 = vpop.f32.mrb[0].mxu0
      %v2520 = vpop.f32.mrb[0].mxu0
      %v2521 = vadd.f32 %v2360, %v2520
      %v2522 = vpop.f32.mrb[0].mxu0
      %2523 = vmatprep.mubr.bf16.mxu0 0
      %2524 = vmatmul.mubr.bf16.gmra.mrb[0].mxu0 %v1149
      %v2525 = vpop.f32.mrb[0].mxu0
      %v2526 = vadd.f32 %v2365, %v2525
      %v2527 = vpop.f32.mrb[0].mxu0
      %v2528 = vpop.f32.mrb[0].mxu0
      %v2529 = vadd.f32 %v2368, %v2528
      %v2530 = vpop.f32.mrb[0].mxu0
      %2531 = vdwg.mxu0
      %v2532 = vadd.f32 %v2406, %v2409
      %v2533 = vadd.f32 %v2532, %v2414
      %v2534 = vadd.f32 %v2533, %v2417
      %v2535 = vadd.f32 %v2534, %v2422
      %v2536 = vadd.f32 %v2535, %v2425
      %v2537 = vadd.f32 %v2536, %v2430
      %v2538 = vadd.f32 %v2537, %v2433
      %v2539 = vadd.f32 %v2538, %v2438
      %v2540 = vadd.f32 %v2539, %v2441
      %v2541 = vadd.f32 %v2540, %v2446
      %v2542 = vadd.f32 %v2541, %v2449
      %v2543 = vadd.f32 %v2542, %v2454
      %v2544 = vadd.f32 %v2543, %v2457
      %v2545 = vadd.f32 %v2544, %v2462
      %v2546 = vadd.f32 %v2545, %v2465
      %v2547 = vadd.f32 %v2546, %v2470
      %v2548 = vadd.f32 %v2547, %v2473
      %v2549 = vadd.f32 %v2548, %v2478
      %v2550 = vadd.f32 %v2549, %v2481
      %v2551 = vadd.f32 %v2550, %v2486
      %v2552 = vadd.f32 %v2551, %v2489
      %v2553 = vadd.f32 %v2552, %v2494
      %v2554 = vadd.f32 %v2553, %v2497
      %v2555 = vadd.f32 %v2554, %v2502
      %v2556 = vadd.f32 %v2555, %v2505
      %v2557 = vadd.f32 %v2556, %v2510
      %v2558 = vadd.f32 %v2557, %v2513
      %v2559 = vadd.f32 %v2558, %v2518
      %v2560 = vadd.f32 %v2559, %v2521
      %v2561 = vadd.f32 %v2560, %v2526
      %v2562 = vadd.f32 %v2561, %v2529
      %v2563 = vrot.slane %v2562, 4
      %v2564 = vadd.f32 %v2562, %v2563
      %v2565 = vrot.slane %v2564, 2
      %v2566 = vadd.f32 %v2564, %v2565
      %v2567 = vrot.slane %v2566, 1
      %v2568 = vadd.f32 %v2566, %v2567
      %v2569 = vmul.f32 %v2406, %v2406
      %v2570 = vmul.f32 %v2409, %v2409
      %v2571 = vmul.f32 %v2414, %v2414
      %v2572 = vmul.f32 %v2417, %v2417
      %v2573 = vmul.f32 %v2422, %v2422
      %v2574 = vmul.f32 %v2425, %v2425
      %v2575 = vmul.f32 %v2430, %v2430
      %v2576 = vmul.f32 %v2433, %v2433
      %v2577 = vmul.f32 %v2438, %v2438
      %v2578 = vmul.f32 %v2441, %v2441
      %v2579 = vmul.f32 %v2446, %v2446
      %v2580 = vmul.f32 %v2449, %v2449
      %v2581 = vmul.f32 %v2454, %v2454
      %v2582 = vmul.f32 %v2457, %v2457
      %v2583 = vmul.f32 %v2462, %v2462
      %v2584 = vmul.f32 %v2465, %v2465
      %v2585 = vmul.f32 %v2470, %v2470
      %v2586 = vmul.f32 %v2473, %v2473
      %v2587 = vmul.f32 %v2478, %v2478
      %v2588 = vmul.f32 %v2481, %v2481
      %v2589 = vmul.f32 %v2486, %v2486
      %v2590 = vmul.f32 %v2489, %v2489
      %v2591 = vmul.f32 %v2494, %v2494
      %v2592 = vmul.f32 %v2497, %v2497
      %v2593 = vmul.f32 %v2502, %v2502
      %v2594 = vmul.f32 %v2505, %v2505
      %v2595 = vmul.f32 %v2510, %v2510
      %v2596 = vmul.f32 %v2513, %v2513
      %v2597 = vmul.f32 %v2518, %v2518
      %v2598 = vmul.f32 %v2521, %v2521
      %v2599 = vmul.f32 %v2526, %v2526
      %v2600 = vmul.f32 %v2529, %v2529
      %v2601 = vadd.f32 %v2569, %v2570
      %v2602 = vadd.f32 %v2601, %v2571
      %v2603 = vadd.f32 %v2602, %v2572
      %v2604 = vadd.f32 %v2603, %v2573
      %v2605 = vadd.f32 %v2604, %v2574
      %v2606 = vadd.f32 %v2605, %v2575
      %v2607 = vadd.f32 %v2606, %v2576
      %v2608 = vadd.f32 %v2607, %v2577
      %v2609 = vadd.f32 %v2608, %v2578
      %v2610 = vadd.f32 %v2609, %v2579
      %v2611 = vadd.f32 %v2610, %v2580
      %v2612 = vadd.f32 %v2611, %v2581
      %v2613 = vadd.f32 %v2612, %v2582
      %v2614 = vadd.f32 %v2613, %v2583
      %v2615 = vadd.f32 %v2614, %v2584
      %v2616 = vadd.f32 %v2615, %v2585
      %v2617 = vadd.f32 %v2616, %v2586
      %v2618 = vadd.f32 %v2617, %v2587
      %v2619 = vadd.f32 %v2618, %v2588
      %v2620 = vadd.f32 %v2619, %v2589
      %v2621 = vadd.f32 %v2620, %v2590
      %v2622 = vadd.f32 %v2621, %v2591
      %v2623 = vadd.f32 %v2622, %v2592
      %v2624 = vadd.f32 %v2623, %v2593
      %v2625 = vadd.f32 %v2624, %v2594
      %v2626 = vadd.f32 %v2625, %v2595
      %v2627 = vadd.f32 %v2626, %v2596
      %v2628 = vadd.f32 %v2627, %v2597
      %v2629 = vadd.f32 %v2628, %v2598
      %v2630 = vadd.f32 %v2629, %v2599
      %v2631 = vadd.f32 %v2630, %v2600
      %v2632 = vrot.slane %v2631, 4
      %v2633 = vadd.f32 %v2631, %v2632
      %v2634 = vrot.slane %v2633, 2
      %v2635 = vadd.f32 %v2633, %v2634
      %v2636 = vrot.slane %v2635, 1
      %v2637 = vadd.f32 %v2635, %v2636
      %vm2638 = vcmask 1040384
      %v2639 = vsel %vm2638, %v2568, %v2637
      %2640 = vst [vmem:[%s268] sm:$0x3] %v2639
      %v2641 = vpack.c.bf16 %v2409, %v2406
      %v2642 = vpack.c.bf16 %v2417, %v2414
      %v2643 = vpack.c.bf16 %v2425, %v2422
      %v2644 = vpack.c.bf16 %v2433, %v2430
      %v2645 = vpack.c.bf16 %v2441, %v2438
      %v2646 = vpack.c.bf16 %v2449, %v2446
      %v2647 = vpack.c.bf16 %v2457, %v2454
      %v2648 = vpack.c.bf16 %v2465, %v2462
      %v2649 = vpack.c.bf16 %v2473, %v2470
      %v2650 = vpack.c.bf16 %v2481, %v2478
      %v2651 = vpack.c.bf16 %v2489, %v2486
      %v2652 = vpack.c.bf16 %v2497, %v2494
      %v2653 = vpack.c.bf16 %v2505, %v2502
      %v2654 = vpack.c.bf16 %v2513, %v2510
      %v2655 = vpack.c.bf16 %v2521, %v2518
      %v2656 = vpack.c.bf16 %v2529, %v2526
      %v2673 = vunpack.c.l.b16 %v2641
      %v2674 = vunpack.c.h.b16 %v2641
      %v2675 = vunpack.c.l.b16 %v2642
      %v2676 = vunpack.c.h.b16 %v2642
      %v2677 = vunpack.c.l.b16 %v2643
      %v2678 = vunpack.c.h.b16 %v2643
      %v2679 = vunpack.c.l.b16 %v2644
      %v2680 = vunpack.c.h.b16 %v2644
      %v2681 = vunpack.c.l.b16 %v2645
      %v2682 = vunpack.c.h.b16 %v2645
      %v2683 = vunpack.c.l.b16 %v2646
      %v2684 = vunpack.c.h.b16 %v2646
      %v2685 = vunpack.c.l.b16 %v2647
      %v2686 = vunpack.c.h.b16 %v2647
      %v2687 = vunpack.c.l.b16 %v2648
      %v2688 = vunpack.c.h.b16 %v2648
      %v2689 = vunpack.c.l.b16 %v2649
      %v2690 = vunpack.c.h.b16 %v2649
      %v2691 = vunpack.c.l.b16 %v2650
      %v2692 = vunpack.c.h.b16 %v2650
      %v2693 = vunpack.c.l.b16 %v2651
      %v2694 = vunpack.c.h.b16 %v2651
      %v2695 = vunpack.c.l.b16 %v2652
      %v2696 = vunpack.c.h.b16 %v2652
      %v2697 = vunpack.c.l.b16 %v2653
      %v2698 = vunpack.c.h.b16 %v2653
      %v2699 = vunpack.c.l.b16 %v2654
      %v2700 = vunpack.c.h.b16 %v2654
      %v2701 = vunpack.c.l.b16 %v2655
      %v2702 = vunpack.c.h.b16 %v2655
      %v2703 = vunpack.c.l.b16 %v2656
      %v2704 = vunpack.c.h.b16 %v2656
      %v2705 = vpack.c.b16 %v2673, %v2673
      %v2706 = vpack.c.b16 %v2674, %v2674
      %v2707 = vpack.c.b16 %v2675, %v2675
      %v2708 = vpack.c.b16 %v2676, %v2676
      %v2709 = vpack.c.b16 %v2677, %v2677
      %v2710 = vpack.c.b16 %v2678, %v2678
      %v2711 = vpack.c.b16 %v2679, %v2679
      %v2712 = vpack.c.b16 %v2680, %v2680
      %v2713 = vpack.c.b16 %v2681, %v2681
      %v2714 = vpack.c.b16 %v2682, %v2682
      %v2715 = vpack.c.b16 %v2683, %v2683
      %v2716 = vpack.c.b16 %v2684, %v2684
      %v2717 = vpack.c.b16 %v2685, %v2685
      %v2718 = vpack.c.b16 %v2686, %v2686
      %v2719 = vpack.c.b16 %v2687, %v2687
      %v2720 = vpack.c.b16 %v2688, %v2688
      %v2721 = vpack.c.b16 %v2689, %v2689
      %v2722 = vpack.c.b16 %v2690, %v2690
      %v2723 = vpack.c.b16 %v2691, %v2691
      %v2724 = vpack.c.b16 %v2692, %v2692
      %v2725 = vpack.c.b16 %v2693, %v2693
      %v2726 = vpack.c.b16 %v2694, %v2694
      %v2727 = vpack.c.b16 %v2695, %v2695
      %v2728 = vpack.c.b16 %v2696, %v2696
      %v2729 = vpack.c.b16 %v2697, %v2697
      %v2730 = vpack.c.b16 %v2698, %v2698
      %v2731 = vpack.c.b16 %v2699, %v2699
      %v2732 = vpack.c.b16 %v2700, %v2700
      %v2733 = vpack.c.b16 %v2701, %v2701
      %v2734 = vpack.c.b16 %v2702, %v2702
      %v2735 = vpack.c.b16 %v2703, %v2703
      %v2736 = vpack.c.b16 %v2704, %v2704
      %2769 = vst [vmem:[%s260] sm:$0xf] %v2705
      %2770 = vst [vmem:[%s260 + $0x4] sm:$0xf] %v2706
      %2771 = vst [vmem:[%s260 + $0x8] sm:$0xf] %v2707
      %2772 = vst [vmem:[%s260 + $0xc] sm:$0xf] %v2708
      %2773 = vst [vmem:[%s260 + $0x10] sm:$0xf] %v2709
      %2774 = vst [vmem:[%s260 + $0x14] sm:$0xf] %v2710
      %2775 = vst [vmem:[%s260 + $0x18] sm:$0xf] %v2711
      %2776 = vst [vmem:[%s260 + $0x1c] sm:$0xf] %v2712
      %2777 = vst [vmem:[%s260 + $0x20] sm:$0xf] %v2713
      %2778 = vst [vmem:[%s260 + $0x24] sm:$0xf] %v2714
      %2779 = vst [vmem:[%s260 + $0x28] sm:$0xf] %v2715
      %2780 = vst [vmem:[%s260 + $0x2c] sm:$0xf] %v2716
      %2781 = vst [vmem:[%s260 + $0x30] sm:$0xf] %v2717
      %2782 = vst [vmem:[%s260 + $0x34] sm:$0xf] %v2718
      %2783 = vst [vmem:[%s260 + $0x38] sm:$0xf] %v2719
      %2784 = vst [vmem:[%s260 + $0x3c] sm:$0xf] %v2720
      %2785 = vst [vmem:[%s260 + $0x40] sm:$0xf] %v2721
      %2786 = vst [vmem:[%s260 + $0x44] sm:$0xf] %v2722
      %2787 = vst [vmem:[%s260 + $0x48] sm:$0xf] %v2723
      %2788 = vst [vmem:[%s260 + $0x4c] sm:$0xf] %v2724
      %2789 = vst [vmem:[%s260 + $0x50] sm:$0xf] %v2725
      %2790 = vst [vmem:[%s260 + $0x54] sm:$0xf] %v2726
      %2791 = vst [vmem:[%s260 + $0x58] sm:$0xf] %v2727
      %2792 = vst [vmem:[%s260 + $0x5c] sm:$0xf] %v2728
      %2793 = vst [vmem:[%s260 + $0x60] sm:$0xf] %v2729
      %2794 = vst [vmem:[%s260 + $0x64] sm:$0xf] %v2730
      %2795 = vst [vmem:[%s260 + $0x68] sm:$0xf] %v2731
      %2796 = vst [vmem:[%s260 + $0x6c] sm:$0xf] %v2732
      %2797 = vst [vmem:[%s260 + $0x70] sm:$0xf] %v2733
      %2798 = vst [vmem:[%s260 + $0x74] sm:$0xf] %v2734
      %2799 = vst [vmem:[%s260 + $0x78] sm:$0xf] %v2735
      %2800 = vst [vmem:[%s260 + $0x7c] sm:$0xf] %v2736
      %s2801 = smul.u32 16, %s22
      %p2802 = scmp.lt.s32.totalorder %s21, 1
      %s2803 = scalar_select %p2802, %s21, 1
      %p2804 = scmp.lt.s32.totalorder %s2801, 15
      %s2805 = scalar_select %p2804, %s2801, 15
      %s2806 = smul.addr %s2805, 2
      %s2807 = smul.addr %s2803, 32
      %s2808 = sadd.s32 %s2806, %s2807
      %s2809 = smul.addr %s2808, 4
      %s2810 = scalar_lea.vmem %s4, %s2809
      %p2811 = scmp.lt.s32.totalorder %s21, 1
      %s2812 = scalar_select %p2811, %s21, 1
      %p2813 = scmp.lt.s32.totalorder %s22, 0
      %s2814 = scalar_select %p2813, %s22, 0
      %s2815 = sadd.s32 %s2814, %s2812
      %s2816 = smul.addr %s2815, 2
      %s2817 = scalar_lea.vmem %s5, %s2816
      // Predicated region
      $region37: #{conv_block_forward.4} parent=35 // pred_check
        %p2818 = pneg %p138
      $region38: #{conv_block_forward.4} parent=35 // pred_check_branch
        %2820 = sbr.rel (%p2818) target = $region40
      $region39: #{conv_block_forward.4} parent=35 // pred_region
        %s2821 = smul.u32 16, %s22
      $region40: #{conv_block_forward.4} parent=35 // pred_fallthru
        _
      // Predicated region
      $region41: #{conv_block_forward.4} parent=35 // pred_check
        %p2822 = pneg %p166
      $region42: #{conv_block_forward.4} parent=35 // pred_check_branch
        %2824 = sbr.rel (%p2822) target = $region44
      $region43: #{conv_block_forward.4} parent=35 // pred_region
        _
      $region44: #{conv_block_forward.4} parent=35 // pred_fallthru
        _
    $region36: #{conv_block_forward.4} parent=5 // pred_fallthru
      _
    %p2825 = scmp.le.s32.totalorder 2, %s12
    // Predicated region
    $region45: #{conv_block_forward.4} parent=5 // pred_check
      %p2826 = pneg %p2825
    $region46: #{conv_block_forward.4} parent=5 // pred_check_branch
      %2828 = sbr.rel (%p2826) target = $region48
    $region47: #{conv_block_forward.4} parent=5 // pred_region
      %s2829 = ssub.s32 %s12, 2
      // Predicated region
      $region49: #{conv_block_forward.4} parent=47 // pred_check
        %p2830 = pneg %p144
      $region50: #{conv_block_forward.4} parent=47 // pred_check_branch
        %2832 = sbr.rel (%p2830) target = $region52
      $region51: #{conv_block_forward.4} parent=47 // pred_region
        %s2833 = smul.u32 16, %s24
        %p2834 = scmp.lt.s32.totalorder %s23, 1
        %s2835 = scalar_select %p2834, %s23, 1
        %p2836 = scmp.lt.s32.totalorder %s2833, 15
        %s2837 = scalar_select %p2836, %s2833, 15
        %s2838 = smul.addr %s2837, 2
        %s2839 = smul.addr %s2835, 32
        %s2840 = sadd.s32 %s2838, %s2839
        %s2841 = smul.addr %s2840, 4
        %s2842 = scalar_lea.vmem %s4, %s2841
      $region52: #{conv_block_forward.4} parent=47 // pred_fallthru
        _
      // Predicated region
      $region53: #{conv_block_forward.4} parent=47 // pred_check
        %p2843 = pneg %p172
      $region54: #{conv_block_forward.4} parent=47 // pred_check_branch
        %2845 = sbr.rel (%p2843) target = $region56
      $region55: #{conv_block_forward.4} parent=47 // pred_region
        %p2846 = scmp.lt.s32.totalorder %s23, 1
        %s2847 = scalar_select %p2846, %s23, 1
        %p2848 = scmp.lt.s32.totalorder %s24, 0
        %s2849 = scalar_select %p2848, %s24, 0
        %s2850 = sadd.s32 %s2849, %s2847
        %s2851 = smul.addr %s2850, 2
        %s2852 = scalar_lea.vmem %s5, %s2851
      $region56: #{conv_block_forward.4} parent=47 // pred_fallthru
        _
    $region48: #{conv_block_forward.4} parent=5 // pred_fallthru
      _
  $region6: #{conv_block_forward.4} parent=0 // loop_footer
    %s16 = sadd.s32 1, %s12
  $region7: #{conv_block_forward.4} parent=0 // loop_footer_branch
    %11 = sbr.rel target = $region3
  $region8: #{conv_block_forward.4} parent=0 // loop_exit
    _

</llo_original>
